<compile_context>
chip_gen: v7x
topology: tpu7x:2x2x1
jax: 0.10.0
libtpu: 0.0.40
codegen_flags: <defaults>
</compile_context>

<pallas_src>
import functools

import numpy as np

import jax
import jax.numpy as jnp
from jax import lax
from jax.experimental import pallas as pl
from jax.experimental.pallas import tpu as pltpu

BN_EPS = 1e-5
KERNEL_SIZE = 6
PAD = KERNEL_SIZE // 2
POOL = 3
NC_PAD = 128          # lane-dense class padding for the kernel output
C1 = 16               # conv1 out channels (fixed by the module)
C2 = 32               # conv2 out channels (fixed by the module)
FC1_OUT = 200         # fc1 output width (fixed by the module)


def _ru(x, m):
    return (x + m - 1) // m * m


# ---------------------------------------------------------------------------
# Fused kernel
# ---------------------------------------------------------------------------
def fused_cnn_kernel(x_ref, convw_ref, fcw_ref, out_ref,
                     xpad1_ref, y1_ref, xpad2_ref, y2_ref, p2_ref):
    f32 = jnp.float32
    B, L1, CIN = x_ref.shape
    M1 = y1_ref.shape[0]          # B * SEG1
    M2 = y2_ref.shape[0]          # B * SEG2
    SEG1 = M1 // B
    SEG2 = M2 // B
    K = KERNEL_SIZE

    L1_pad = L1 + 2 * PAD
    L1_out = L1_pad - K + 1
    L1_pool = L1_out // POOL
    L2_pad = L1_pool + 2 * PAD
    L2_out = L2_pad - K + 1
    L2_pool = L2_out // POOL

    # packed-weight row offsets (must match init_params packing)
    B1_ROW = K * CIN
    B2_ROW = K * CIN + 1
    W2_BASE = _ru(K * CIN + 2, 8)
    FC1_IN = L2_pool * C2
    FC1B_ROW = FC1_IN
    FC2B_ROW = FC1_IN + 1
    FC2W_BASE = _ru(FC1_IN + 2, 8)

    # ---- Stage 1: replicate ("edge") pad, one concat value + one store per b
    xpad1_ref[...] = jnp.zeros_like(xpad1_ref)          # zero segment gaps/tail
    for b in range(B):
        xb = x_ref[b]                                    # (L1, CIN)
        lo = xb[0:1, :]
        hi = xb[L1 - 1:L1, :]
        xpad1_ref[b * SEG1:b * SEG1 + L1_pad, :] = jnp.concatenate(
            [lo] * PAD + [xb] + [hi] * PAD, axis=0)

    # ---- conv1: K batched tap matmuls over ALL batch segments at once -------
    y = jnp.dot(xpad1_ref[0:M1, :], convw_ref[0:CIN, 0:C1],
                preferred_element_type=f32)
    for j in range(1, K):
        y = y + jnp.dot(xpad1_ref[j:j + M1, :],
                        convw_ref[j * CIN:(j + 1) * CIN, 0:C1],
                        preferred_element_type=f32)
    y = y + convw_ref[B1_ROW:B1_ROW + 1, 0:C1]
    y1_ref[...] = y                                      # one full (M1, C1) store

    # ---- BN1 batch statistics (valid rows only; boundary garbage excluded) --
    s1 = jnp.zeros((1, C1), f32)
    ss1 = jnp.zeros((1, C1), f32)
    for b in range(B):
        yb = y1_ref[b * SEG1:b * SEG1 + L1_out, :]
        s1 = s1 + jnp.sum(yb, axis=0, keepdims=True)
        ss1 = ss1 + jnp.sum(yb * yb, axis=0, keepdims=True)
    n1 = float(B * L1_out)
    mean1 = s1 / n1
    var1 = jnp.maximum(ss1 / n1 - mean1 * mean1, 0.0)
    inv1 = lax.rsqrt(var1 + BN_EPS)

    # ---- pool1 on the PRE-BN output (max commutes with monotone BN + ReLU),
    #      BN+ReLU on pooled rows only, then build the stage-2 padded slab ----
    xpad2_ref[...] = jnp.zeros_like(xpad2_ref)
    for b in range(B):
        base = b * SEG1
        pooled = jnp.maximum(
            jnp.maximum(y1_ref[pl.ds(base + 0, L1_pool, stride=POOL), :],
                        y1_ref[pl.ds(base + 1, L1_pool, stride=POOL), :]),
            y1_ref[pl.ds(base + 2, L1_pool, stride=POOL), :])     # (L1_pool, C1)
        pooled = jnp.maximum((pooled - mean1) * inv1, 0.0)
        lo = pooled[0:1, :]
        hi = pooled[L1_pool - 1:L1_pool, :]
        xpad2_ref[b * SEG2:b * SEG2 + L2_pad, :] = jnp.concatenate(
            [lo] * PAD + [pooled] + [hi] * PAD, axis=0)

    # ---- conv2: K batched tap matmuls ---------------------------------------
    y = jnp.dot(xpad2_ref[0:M2, :], convw_ref[W2_BASE:W2_BASE + C1, 0:C2],
                preferred_element_type=f32)
    for j in range(1, K):
        y = y + jnp.dot(xpad2_ref[j:j + M2, :],
                        convw_ref[W2_BASE + j * C1:W2_BASE + (j + 1) * C1, 0:C2],
                        preferred_element_type=f32)
    y = y + convw_ref[B2_ROW:B2_ROW + 1, 0:C2]
    y2_ref[...] = y                                      # one full (M2, C2) store

    # ---- BN2 batch statistics ------------------------------------------------
    s2 = jnp.zeros((1, C2), f32)
    ss2 = jnp.zeros((1, C2), f32)
    for b in range(B):
        yb = y2_ref[b * SEG2:b * SEG2 + L2_out, :]
        s2 = s2 + jnp.sum(yb, axis=0, keepdims=True)
        ss2 = ss2 + jnp.sum(yb * yb, axis=0, keepdims=True)
    n2 = float(B * L2_out)
    mean2 = s2 / n2
    var2 = jnp.maximum(ss2 / n2 - mean2 * mean2, 0.0)
    inv2 = lax.rsqrt(var2 + BN_EPS)

    # ---- pool2 for ALL batches in one stride-3 sweep (SEG2 % POOL == 0):
    #      p2 row (PER*b + l) holds pooled2[b, l, :] for l < L2_pool ----------
    PROWS = p2_ref.shape[0]
    PER = PROWS // B                                     # = SEG2 // POOL
    p_raw = jnp.maximum(
        jnp.maximum(y2_ref[pl.ds(0, PROWS, stride=POOL), :],
                    y2_ref[pl.ds(1, PROWS, stride=POOL), :]),
        y2_ref[pl.ds(2, PROWS, stride=POOL), :])
    p2_ref[...] = jnp.maximum((p_raw - mean2) * inv2, 0.0)

    # ---- FC1: L2_pool dots with M = B (torch flatten folded into the weight
    #      row-blocks at init; each block operand is one stride-PER load) -----
    h = jnp.dot(p2_ref[pl.ds(0, B, stride=PER), :], fcw_ref[0:C2, :],
                preferred_element_type=f32)
    for l in range(1, L2_pool):
        h = h + jnp.dot(p2_ref[pl.ds(l, B, stride=PER), :],
                        fcw_ref[l * C2:(l + 1) * C2, :],
                        preferred_element_type=f32)
    h = jnp.maximum(h + fcw_ref[FC1B_ROW:FC1B_ROW + 1, :], 0.0)     # (B, 200)

    # ---- FC2 (classes lane-padded to NC_PAD) + log_softmax ------------------
    logits = jnp.dot(h, fcw_ref[FC2W_BASE:FC2W_BASE + FC1_OUT, 0:NC_PAD],
                     preferred_element_type=f32)
    logits = logits + fcw_ref[FC2B_ROW:FC2B_ROW + 1, 0:NC_PAD]
    m = jnp.max(logits, axis=1, keepdims=True)
    lse = m + jnp.log(jnp.sum(jnp.exp(logits - m), axis=1, keepdims=True))
    out_ref[...] = logits - lse


# ---------------------------------------------------------------------------
# Wrapper (single pallas_call, whole forward)
# ---------------------------------------------------------------------------
def _vmem():
    return pl.BlockSpec(memory_space=pltpu.MemorySpace.VMEM)


def cnn_forward(x_ncl, params, *, num_classes=2):
    B, CIN, L1 = x_ncl.shape
    L1_pad = L1 + 2 * PAD
    L1_out = L1_pad - KERNEL_SIZE + 1
    L1_pool = L1_out // POOL
    L2_pad = L1_pool + 2 * PAD

    SEG1 = _ru(L1_pad, 8)        # 8-aligned per-batch segment (stage 1)
    SEG2 = _ru(L2_pad, 24)       # multiple of 8 (alignment) and 3 (pool sweep)

    # one-time layout plumbing: NCL -> NLC so channels sit on lanes in-kernel
    x_nlc = jnp.transpose(x_ncl, (0, 2, 1))

    out_pad = pl.pallas_call(
        fused_cnn_kernel,
        out_shape=jax.ShapeDtypeStruct((B, NC_PAD), jnp.float32),
        in_specs=[_vmem(), _vmem(), _vmem()],
        out_specs=_vmem(),
        scratch_shapes=[
            pltpu.VMEM((B * SEG1 + 8, CIN), jnp.float32),        # xpad1
            pltpu.VMEM((B * SEG1, C1), jnp.float32),             # y1 (pre-BN conv1)
            pltpu.VMEM((B * SEG2 + 8, C1), jnp.float32),         # xpad2
            pltpu.VMEM((B * SEG2, C2), jnp.float32),             # y2 (pre-BN conv2)
            pltpu.VMEM((B * (SEG2 // POOL), C2), jnp.float32),   # p2 (pooled, BN'd)
        ],
    )(x_nlc, params["convw"], params["fcw"])

    return out_pad[:, :num_classes]


# ---------------------------------------------------------------------------
# Parameter initialization (shapes from CNN.__init__, layers=2) + one-time
# packing of all weights into two flat VMEM slabs (kernel-layout, bias rows).
# ---------------------------------------------------------------------------
def grouped_conv_to_tap_dense(w, groups):
    """(Cout, Cin_g, K) grouped-conv weight -> dense (K*Cin, Cout).

    Row order is (tap j, in-channel c): r = j*Cin + c, block-diagonal across
    groups, so conv == sum_j xpad[l+j, :] @ Wd[j*Cin:(j+1)*Cin, :].
    """
    w = np.asarray(w)
    cout, cin_g, k = w.shape
    cin = cin_g * groups
    cout_g = cout // groups
    wd = np.zeros((k * cin, cout), np.float32)
    for g in range(groups):
        for cl in range(cin_g):
            c = g * cin_g + cl
            for j in range(k):
                wd[j * cin + c, g * cout_g:(g + 1) * cout_g] = \
                    w[g * cout_g:(g + 1) * cout_g, cl, j]
    return wd


def init_params(key, seq_length, num_classes=2):
    # same arithmetic as CNN._calculate_fc1_input_dim (layers=2)
    length = (seq_length + 2 * PAD - KERNEL_SIZE) + 1
    length = length // POOL
    length = (length + 2 * PAD - KERNEL_SIZE) + 1
    length = length // POOL
    fc1_in = length * C2

    CIN = 2
    ks = jax.random.split(key, 8)

    def xavier(k, shape, fan_in, fan_out):
        bound = (6.0 / (fan_in + fan_out)) ** 0.5
        return jax.random.uniform(k, shape, jnp.float32, -bound, bound)

    def torch_default(k, shape, fan_in):
        bound = 1.0 / (fan_in ** 0.5)
        return jax.random.uniform(k, shape, jnp.float32, -bound, bound)

    # PyTorch-layout parameters
    w1 = xavier(ks[0], (C1, 1, KERNEL_SIZE), 1 * KERNEL_SIZE, C1 * KERNEL_SIZE)
    b1 = torch_default(ks[1], (C1,), 1 * KERNEL_SIZE)
    w2 = xavier(ks[2], (C2, C1 // 2, KERNEL_SIZE),
                (C1 // 2) * KERNEL_SIZE, C2 * KERNEL_SIZE)
    b2 = torch_default(ks[3], (C2,), (C1 // 2) * KERNEL_SIZE)
    fc1_w = torch_default(ks[4], (FC1_OUT, fc1_in), fc1_in)
    fc1_b = torch_default(ks[5], (FC1_OUT,), fc1_in)
    fc2_w = xavier(ks[6], (num_classes, FC1_OUT), FC1_OUT, num_classes)
    fc2_b = torch_default(ks[7], (num_classes,), FC1_OUT)

    # --- pack conv taps + biases into ONE (112, 32) slab ---------------------
    w1_dense = grouped_conv_to_tap_dense(w1, groups=2)            # (12, 16)
    w2_dense = grouped_conv_to_tap_dense(w2, groups=2)            # (96, 32)
    w2_base = _ru(KERNEL_SIZE * CIN + 2, 8)
    convw = np.zeros((w2_base + KERNEL_SIZE * C1, C2), np.float32)
    convw[0:KERNEL_SIZE * CIN, 0:C1] = w1_dense
    convw[KERNEL_SIZE * CIN, 0:C1] = np.asarray(b1)
    convw[KERNEL_SIZE * CIN + 1, 0:C2] = np.asarray(b2)
    convw[w2_base:w2_base + KERNEL_SIZE * C1, 0:C2] = w2_dense

    # --- pack FC weights + biases into ONE (400, 200) slab -------------------
    # fc1 columns permuted once from torch NCL flatten (c*L + l) to NLC (l*C + c)
    fc1_w_np = np.asarray(fc1_w).reshape(FC1_OUT, C2, length)
    fc1_w_t = np.transpose(fc1_w_np, (2, 1, 0)).reshape(fc1_in, FC1_OUT)

    fc2w_base = _ru(fc1_in + 2, 8)
    fcw = np.zeros((fc2w_base + FC1_OUT, FC1_OUT), np.float32)
    fcw[0:fc1_in, :] = fc1_w_t
    fcw[fc1_in, :] = np.asarray(fc1_b)
    fcw[fc1_in + 1, 0:NC_PAD] = -1e30        # padded-class biases vanish in softmax
    fcw[fc1_in + 1, 0:num_classes] = np.asarray(fc2_b)
    fcw[fc2w_base:fc2w_base + FC1_OUT, 0:num_classes] = np.asarray(fc2_w).T

    params = dict(convw=jnp.asarray(convw), fcw=jnp.asarray(fcw))
    return params, fc1_in


if __name__ == "__main__":
    BATCH, CIN, SEQ_LEN, NUM_CLASSES = 4, 2, 53, 2

    key = jax.random.PRNGKey(0)
    k_x, k_p = jax.random.split(key)
    x = jax.random.normal(k_x, (BATCH, CIN, SEQ_LEN), jnp.float32)

    params, fc1_in = init_params(k_p, SEQ_LEN, NUM_CLASSES)
    assert fc1_in == 192  # (53 -> 54 -> 18 -> 19 -> 6) * 32 channels

    fwd = jax.jit(functools.partial(cnn_forward, num_classes=NUM_CLASSES))
    out = jax.block_until_ready(fwd(x, params))

    assert out.shape == (BATCH, NUM_CLASSES)
    row_sums = jnp.sum(jnp.exp(out), axis=1)          # log_softmax rows -> 1
    assert bool(jnp.all(jnp.abs(row_sums - 1.0) < 1e-4))
    assert bool(jnp.all(jnp.isfinite(out)))
    print("KERNEL_OK")
</pallas_src>

<mosaic_0001>
module attributes {stable_mosaic.version = 11 : i64} {
  func.func @fused_cnn_kernel(%arg0: memref<4x53x2xf32, #tpu.memory_space<vmem>>, %arg1: memref<112x32xf32, #tpu.memory_space<vmem>>, %arg2: memref<400x200xf32, #tpu.memory_space<vmem>>, %arg3: memref<4x128xf32, #tpu.memory_space<vmem>>, %arg4: memref<264x2xf32, #tpu.memory_space<vmem>>, %arg5: memref<256x16xf32, #tpu.memory_space<vmem>>, %arg6: memref<104x16xf32, #tpu.memory_space<vmem>>, %arg7: memref<96x32xf32, #tpu.memory_space<vmem>>, %arg8: memref<32x32xf32, #tpu.memory_space<vmem>>) attributes {dimension_semantics = [], scalar_prefetch = 0 : i64, scratch_operands = 5 : i64, tpu.core_type = #tpu.core_type<tc>} {
    %cst = arith.constant 0.000000e+00 : f32
    %0 = vector.broadcast %cst : f32 to vector<264x2xf32>
    %c0 = arith.constant 0 : index
    %c0_0 = arith.constant 0 : index
    %1 = vector.load %arg4[%c0, %c0_0] : memref<264x2xf32, #tpu.memory_space<vmem>>, vector<264x2xf32>
    tpu.vector_store %arg4[%c0, %c0_0], %0 {strides = array<i32>} : memref<264x2xf32, #tpu.memory_space<vmem>>, vector<264x2xf32>,
    %c0_1 = arith.constant 0 : index
    %c0_2 = arith.constant 0 : index
    %c0_3 = arith.constant 0 : index
    %2 = vector.load %arg0[%c0_1, %c0_2, %c0_3] : memref<4x53x2xf32, #tpu.memory_space<vmem>>, vector<1x53x2xf32>
    %3 = vector.shape_cast %2 : vector<1x53x2xf32> to vector<53x2xf32>
    %4 = vector.extract_strided_slice %3 {offsets = [0, 0], sizes = [1, 2], strides = [1, 1]} : vector<53x2xf32> to vector<1x2xf32>
    %5 = vector.extract_strided_slice %3 {offsets = [52, 0], sizes = [1, 2], strides = [1, 1]} : vector<53x2xf32> to vector<1x2xf32>
    %6 = tpu.concatenate %4, %4, %4, %3, %5, %5, %5 in 0 : vector<1x2xf32>, vector<1x2xf32>, vector<1x2xf32>, vector<53x2xf32>, vector<1x2xf32>, vector<1x2xf32>, vector<1x2xf32> -> vector<59x2xf32>
    %c0_4 = arith.constant 0 : index
    %c0_5 = arith.constant 0 : index
    %7 = vector.load %arg4[%c0_4, %c0_5] : memref<264x2xf32, #tpu.memory_space<vmem>>, vector<59x2xf32>
    tpu.vector_store %arg4[%c0_4, %c0_5], %6 {strides = array<i32>} : memref<264x2xf32, #tpu.memory_space<vmem>>, vector<59x2xf32>,
    %c1 = arith.constant 1 : index
    %c0_6 = arith.constant 0 : index
    %c0_7 = arith.constant 0 : index
    %8 = vector.load %arg0[%c1, %c0_6, %c0_7] : memref<4x53x2xf32, #tpu.memory_space<vmem>>, vector<1x53x2xf32>
    %9 = vector.shape_cast %8 : vector<1x53x2xf32> to vector<53x2xf32>
    %10 = vector.extract_strided_slice %9 {offsets = [0, 0], sizes = [1, 2], strides = [1, 1]} : vector<53x2xf32> to vector<1x2xf32>
    %11 = vector.extract_strided_slice %9 {offsets = [52, 0], sizes = [1, 2], strides = [1, 1]} : vector<53x2xf32> to vector<1x2xf32>
    %12 = tpu.concatenate %10, %10, %10, %9, %11, %11, %11 in 0 : vector<1x2xf32>, vector<1x2xf32>, vector<1x2xf32>, vector<53x2xf32>, vector<1x2xf32>, vector<1x2xf32>, vector<1x2xf32> -> vector<59x2xf32>
    %c64 = arith.constant 64 : index
    %c0_8 = arith.constant 0 : index
    %13 = vector.load %arg4[%c64, %c0_8] : memref<264x2xf32, #tpu.memory_space<vmem>>, vector<59x2xf32>
    tpu.vector_store %arg4[%c64, %c0_8], %12 {strides = array<i32>} : memref<264x2xf32, #tpu.memory_space<vmem>>, vector<59x2xf32>,
    %c2 = arith.constant 2 : index
    %c0_9 = arith.constant 0 : index
    %c0_10 = arith.constant 0 : index
    %14 = vector.load %arg0[%c2, %c0_9, %c0_10] : memref<4x53x2xf32, #tpu.memory_space<vmem>>, vector<1x53x2xf32>
    %15 = vector.shape_cast %14 : vector<1x53x2xf32> to vector<53x2xf32>
    %16 = vector.extract_strided_slice %15 {offsets = [0, 0], sizes = [1, 2], strides = [1, 1]} : vector<53x2xf32> to vector<1x2xf32>
    %17 = vector.extract_strided_slice %15 {offsets = [52, 0], sizes = [1, 2], strides = [1, 1]} : vector<53x2xf32> to vector<1x2xf32>
    %18 = tpu.concatenate %16, %16, %16, %15, %17, %17, %17 in 0 : vector<1x2xf32>, vector<1x2xf32>, vector<1x2xf32>, vector<53x2xf32>, vector<1x2xf32>, vector<1x2xf32>, vector<1x2xf32> -> vector<59x2xf32>
    %c128 = arith.constant 128 : index
    %c0_11 = arith.constant 0 : index
    %19 = vector.load %arg4[%c128, %c0_11] : memref<264x2xf32, #tpu.memory_space<vmem>>, vector<59x2xf32>
    tpu.vector_store %arg4[%c128, %c0_11], %18 {strides = array<i32>} : memref<264x2xf32, #tpu.memory_space<vmem>>, vector<59x2xf32>,
    %c3 = arith.constant 3 : index
    %c0_12 = arith.constant 0 : index
    %c0_13 = arith.constant 0 : index
    %20 = vector.load %arg0[%c3, %c0_12, %c0_13] : memref<4x53x2xf32, #tpu.memory_space<vmem>>, vector<1x53x2xf32>
    %21 = vector.shape_cast %20 : vector<1x53x2xf32> to vector<53x2xf32>
    %22 = vector.extract_strided_slice %21 {offsets = [0, 0], sizes = [1, 2], strides = [1, 1]} : vector<53x2xf32> to vector<1x2xf32>
    %23 = vector.extract_strided_slice %21 {offsets = [52, 0], sizes = [1, 2], strides = [1, 1]} : vector<53x2xf32> to vector<1x2xf32>
    %24 = tpu.concatenate %22, %22, %22, %21, %23, %23, %23 in 0 : vector<1x2xf32>, vector<1x2xf32>, vector<1x2xf32>, vector<53x2xf32>, vector<1x2xf32>, vector<1x2xf32>, vector<1x2xf32> -> vector<59x2xf32>
    %c192 = arith.constant 192 : index
    %c0_14 = arith.constant 0 : index
    %25 = vector.load %arg4[%c192, %c0_14] : memref<264x2xf32, #tpu.memory_space<vmem>>, vector<59x2xf32>
    tpu.vector_store %arg4[%c192, %c0_14], %24 {strides = array<i32>} : memref<264x2xf32, #tpu.memory_space<vmem>>, vector<59x2xf32>,
    %c0_15 = arith.constant 0 : index
    %c0_16 = arith.constant 0 : index
    %26 = vector.load %arg4[%c0_15, %c0_16] : memref<264x2xf32, #tpu.memory_space<vmem>>, vector<256x2xf32>
    %c0_17 = arith.constant 0 : index
    %c0_18 = arith.constant 0 : index
    %27 = vector.load %arg1[%c0_17, %c0_18] : memref<112x32xf32, #tpu.memory_space<vmem>>, vector<2x16xf32>
    %cst_19 = arith.constant dense<0.000000e+00> : vector<256x16xf32>
    %28 = tpu.matmul %26, %27, %cst_19 {dimension_numbers = #tpu.dot_dimension_numbers<[1], [0], [0], [1], [0, 0, 1, 1], [], []>} : vector<256x2xf32>, vector<2x16xf32>, vector<256x16xf32> -> vector<256x16xf32>
    %c1_20 = arith.constant 1 : index
    %c0_21 = arith.constant 0 : index
    %29 = vector.load %arg4[%c1_20, %c0_21] : memref<264x2xf32, #tpu.memory_space<vmem>>, vector<256x2xf32>
    %c2_22 = arith.constant 2 : index
    %c0_23 = arith.constant 0 : index
    %30 = vector.load %arg1[%c2_22, %c0_23] : memref<112x32xf32, #tpu.memory_space<vmem>>, vector<2x16xf32>
    %cst_24 = arith.constant dense<0.000000e+00> : vector<256x16xf32>
    %31 = tpu.matmul %29, %30, %cst_24 {dimension_numbers = #tpu.dot_dimension_numbers<[1], [0], [0], [1], [0, 0, 1, 1], [], []>} : vector<256x2xf32>, vector<2x16xf32>, vector<256x16xf32> -> vector<256x16xf32>
    %32 = arith.addf %28, %31 : vector<256x16xf32>
    %c2_25 = arith.constant 2 : index
    %c0_26 = arith.constant 0 : index
    %33 = vector.load %arg4[%c2_25, %c0_26] : memref<264x2xf32, #tpu.memory_space<vmem>>, vector<256x2xf32>
    %c4 = arith.constant 4 : index
    %c0_27 = arith.constant 0 : index
    %34 = vector.load %arg1[%c4, %c0_27] : memref<112x32xf32, #tpu.memory_space<vmem>>, vector<2x16xf32>
    %cst_28 = arith.constant dense<0.000000e+00> : vector<256x16xf32>
    %35 = tpu.matmul %33, %34, %cst_28 {dimension_numbers = #tpu.dot_dimension_numbers<[1], [0], [0], [1], [0, 0, 1, 1], [], []>} : vector<256x2xf32>, vector<2x16xf32>, vector<256x16xf32> -> vector<256x16xf32>
    %36 = arith.addf %32, %35 : vector<256x16xf32>
    %c3_29 = arith.constant 3 : index
    %c0_30 = arith.constant 0 : index
    %37 = vector.load %arg4[%c3_29, %c0_30] : memref<264x2xf32, #tpu.memory_space<vmem>>, vector<256x2xf32>
    %c6 = arith.constant 6 : index
    %c0_31 = arith.constant 0 : index
    %38 = vector.load %arg1[%c6, %c0_31] : memref<112x32xf32, #tpu.memory_space<vmem>>, vector<2x16xf32>
    %cst_32 = arith.constant dense<0.000000e+00> : vector<256x16xf32>
    %39 = tpu.matmul %37, %38, %cst_32 {dimension_numbers = #tpu.dot_dimension_numbers<[1], [0], [0], [1], [0, 0, 1, 1], [], []>} : vector<256x2xf32>, vector<2x16xf32>, vector<256x16xf32> -> vector<256x16xf32>
    %40 = arith.addf %36, %39 : vector<256x16xf32>
    %c4_33 = arith.constant 4 : index
    %c0_34 = arith.constant 0 : index
    %41 = vector.load %arg4[%c4_33, %c0_34] : memref<264x2xf32, #tpu.memory_space<vmem>>, vector<256x2xf32>
    %c8 = arith.constant 8 : index
    %c0_35 = arith.constant 0 : index
    %42 = vector.load %arg1[%c8, %c0_35] : memref<112x32xf32, #tpu.memory_space<vmem>>, vector<2x16xf32>
    %cst_36 = arith.constant dense<0.000000e+00> : vector<256x16xf32>
    %43 = tpu.matmul %41, %42, %cst_36 {dimension_numbers = #tpu.dot_dimension_numbers<[1], [0], [0], [1], [0, 0, 1, 1], [], []>} : vector<256x2xf32>, vector<2x16xf32>, vector<256x16xf32> -> vector<256x16xf32>
    %44 = arith.addf %40, %43 : vector<256x16xf32>
    %c5 = arith.constant 5 : index
    %c0_37 = arith.constant 0 : index
    %45 = vector.load %arg4[%c5, %c0_37] : memref<264x2xf32, #tpu.memory_space<vmem>>, vector<256x2xf32>
    %c10 = arith.constant 10 : index
    %c0_38 = arith.constant 0 : index
    %46 = vector.load %arg1[%c10, %c0_38] : memref<112x32xf32, #tpu.memory_space<vmem>>, vector<2x16xf32>
    %cst_39 = arith.constant dense<0.000000e+00> : vector<256x16xf32>
    %47 = tpu.matmul %45, %46, %cst_39 {dimension_numbers = #tpu.dot_dimension_numbers<[1], [0], [0], [1], [0, 0, 1, 1], [], []>} : vector<256x2xf32>, vector<2x16xf32>, vector<256x16xf32> -> vector<256x16xf32>
    %48 = arith.addf %44, %47 : vector<256x16xf32>
    %c12 = arith.constant 12 : index
    %c0_40 = arith.constant 0 : index
    %49 = vector.load %arg1[%c12, %c0_40] : memref<112x32xf32, #tpu.memory_space<vmem>>, vector<1x16xf32>
    %50 = vector.broadcast %49 : vector<1x16xf32> to vector<256x16xf32>
    %51 = arith.addf %48, %50 : vector<256x16xf32>
    %c0_41 = arith.constant 0 : index
    %c0_42 = arith.constant 0 : index
    %52 = vector.load %arg5[%c0_41, %c0_42] : memref<256x16xf32, #tpu.memory_space<vmem>>, vector<256x16xf32>
    tpu.vector_store %arg5[%c0_41, %c0_42], %51 {strides = array<i32>} : memref<256x16xf32, #tpu.memory_space<vmem>>, vector<256x16xf32>,
    %cst_43 = arith.constant 0.000000e+00 : f32
    %53 = vector.broadcast %cst_43 : f32 to vector<1x16xf32>
    %cst_44 = arith.constant 0.000000e+00 : f32
    %54 = vector.broadcast %cst_44 : f32 to vector<1x16xf32>
    %c0_45 = arith.constant 0 : index
    %c0_46 = arith.constant 0 : index
    %55 = vector.load %arg5[%c0_45, %c0_46] : memref<256x16xf32, #tpu.memory_space<vmem>>, vector<54x16xf32>
    %cst_47 = arith.constant dense<0.000000e+00> : vector<16xf32>
    %56 = vector.multi_reduction <add>, %55, %cst_47 [0] : vector<54x16xf32> to vector<16xf32>
    %57 = vector.shape_cast %56 : vector<16xf32> to vector<1x16xf32>
    %58 = arith.addf %53, %57 : vector<1x16xf32>
    %59 = arith.mulf %55, %55 : vector<54x16xf32>
    %cst_48 = arith.constant dense<0.000000e+00> : vector<16xf32>
    %60 = vector.multi_reduction <add>, %59, %cst_48 [0] : vector<54x16xf32> to vector<16xf32>
    %61 = vector.shape_cast %60 : vector<16xf32> to vector<1x16xf32>
    %62 = arith.addf %54, %61 : vector<1x16xf32>
    %c64_49 = arith.constant 64 : index
    %c0_50 = arith.constant 0 : index
    %63 = vector.load %arg5[%c64_49, %c0_50] : memref<256x16xf32, #tpu.memory_space<vmem>>, vector<54x16xf32>
    %cst_51 = arith.constant dense<0.000000e+00> : vector<16xf32>
    %64 = vector.multi_reduction <add>, %63, %cst_51 [0] : vector<54x16xf32> to vector<16xf32>
    %65 = vector.shape_cast %64 : vector<16xf32> to vector<1x16xf32>
    %66 = arith.addf %58, %65 : vector<1x16xf32>
    %67 = arith.mulf %63, %63 : vector<54x16xf32>
    %cst_52 = arith.constant dense<0.000000e+00> : vector<16xf32>
    %68 = vector.multi_reduction <add>, %67, %cst_52 [0] : vector<54x16xf32> to vector<16xf32>
    %69 = vector.shape_cast %68 : vector<16xf32> to vector<1x16xf32>
    %70 = arith.addf %62, %69 : vector<1x16xf32>
    %c128_53 = arith.constant 128 : index
    %c0_54 = arith.constant 0 : index
    %71 = vector.load %arg5[%c128_53, %c0_54] : memref<256x16xf32, #tpu.memory_space<vmem>>, vector<54x16xf32>
    %cst_55 = arith.constant dense<0.000000e+00> : vector<16xf32>
    %72 = vector.multi_reduction <add>, %71, %cst_55 [0] : vector<54x16xf32> to vector<16xf32>
    %73 = vector.shape_cast %72 : vector<16xf32> to vector<1x16xf32>
    %74 = arith.addf %66, %73 : vector<1x16xf32>
    %75 = arith.mulf %71, %71 : vector<54x16xf32>
    %cst_56 = arith.constant dense<0.000000e+00> : vector<16xf32>
    %76 = vector.multi_reduction <add>, %75, %cst_56 [0] : vector<54x16xf32> to vector<16xf32>
    %77 = vector.shape_cast %76 : vector<16xf32> to vector<1x16xf32>
    %78 = arith.addf %70, %77 : vector<1x16xf32>
    %c192_57 = arith.constant 192 : index
    %c0_58 = arith.constant 0 : index
    %79 = vector.load %arg5[%c192_57, %c0_58] : memref<256x16xf32, #tpu.memory_space<vmem>>, vector<54x16xf32>
    %cst_59 = arith.constant dense<0.000000e+00> : vector<16xf32>
    %80 = vector.multi_reduction <add>, %79, %cst_59 [0] : vector<54x16xf32> to vector<16xf32>
    %81 = vector.shape_cast %80 : vector<16xf32> to vector<1x16xf32>
    %82 = arith.addf %74, %81 : vector<1x16xf32>
    %83 = arith.mulf %79, %79 : vector<54x16xf32>
    %cst_60 = arith.constant dense<0.000000e+00> : vector<16xf32>
    %84 = vector.multi_reduction <add>, %83, %cst_60 [0] : vector<54x16xf32> to vector<16xf32>
    %85 = vector.shape_cast %84 : vector<16xf32> to vector<1x16xf32>
    %86 = arith.addf %78, %85 : vector<1x16xf32>
    %cst_61 = arith.constant 2.160000e+02 : f32
    %87 = vector.broadcast %cst_61 : f32 to vector<1x16xf32>
    %88 = arith.divf %82, %87 : vector<1x16xf32>
    %cst_62 = arith.constant 2.160000e+02 : f32
    %89 = vector.broadcast %cst_62 : f32 to vector<1x16xf32>
    %90 = arith.divf %86, %89 : vector<1x16xf32>
    %91 = arith.mulf %88, %88 : vector<1x16xf32>
    %92 = arith.subf %90, %91 : vector<1x16xf32>
    %cst_63 = arith.constant 0.000000e+00 : f32
    %93 = vector.broadcast %cst_63 : f32 to vector<1x16xf32>
    %94 = arith.maximumf %92, %93 : vector<1x16xf32>
    %cst_64 = arith.constant 9.99999974E-6 : f32
    %95 = vector.broadcast %cst_64 : f32 to vector<1x16xf32>
    %96 = arith.addf %94, %95 : vector<1x16xf32>
    %97 = math.rsqrt %96 : vector<1x16xf32>
    %cst_65 = arith.constant 0.000000e+00 : f32
    %98 = vector.broadcast %cst_65 : f32 to vector<104x16xf32>
    %c0_66 = arith.constant 0 : index
    %c0_67 = arith.constant 0 : index
    %99 = vector.load %arg6[%c0_66, %c0_67] : memref<104x16xf32, #tpu.memory_space<vmem>>, vector<104x16xf32>
    tpu.vector_store %arg6[%c0_66, %c0_67], %98 {strides = array<i32>} : memref<104x16xf32, #tpu.memory_space<vmem>>, vector<104x16xf32>,
    %c0_68 = arith.constant 0 : index
    %c0_69 = arith.constant 0 : index
    %100 = tpu.strided_load %arg5[%c0_68, %c0_69] {strides = array<i32: 3, 1>} : memref<256x16xf32, #tpu.memory_space<vmem>>, vector<18x16xf32>
    %c1_70 = arith.constant 1 : index
    %c0_71 = arith.constant 0 : index
    %101 = tpu.strided_load %arg5[%c1_70, %c0_71] {strides = array<i32: 3, 1>} : memref<256x16xf32, #tpu.memory_space<vmem>>, vector<18x16xf32>
    %102 = arith.maximumf %100, %101 : vector<18x16xf32>
    %c2_72 = arith.constant 2 : index
    %c0_73 = arith.constant 0 : index
    %103 = tpu.strided_load %arg5[%c2_72, %c0_73] {strides = array<i32: 3, 1>} : memref<256x16xf32, #tpu.memory_space<vmem>>, vector<18x16xf32>
    %104 = arith.maximumf %102, %103 : vector<18x16xf32>
    %105 = vector.broadcast %88 : vector<1x16xf32> to vector<18x16xf32>
    %106 = arith.subf %104, %105 : vector<18x16xf32>
    %107 = vector.broadcast %97 : vector<1x16xf32> to vector<18x16xf32>
    %108 = arith.mulf %106, %107 : vector<18x16xf32>
    %cst_74 = arith.constant 0.000000e+00 : f32
    %109 = vector.broadcast %cst_74 : f32 to vector<18x16xf32>
    %110 = arith.maximumf %108, %109 : vector<18x16xf32>
    %111 = vector.extract_strided_slice %110 {offsets = [0, 0], sizes = [1, 16], strides = [1, 1]} : vector<18x16xf32> to vector<1x16xf32>
    %112 = vector.extract_strided_slice %110 {offsets = [17, 0], sizes = [1, 16], strides = [1, 1]} : vector<18x16xf32> to vector<1x16xf32>
    %113 = tpu.concatenate %111, %111, %111, %110, %112, %112, %112 in 0 : vector<1x16xf32>, vector<1x16xf32>, vector<1x16xf32>, vector<18x16xf32>, vector<1x16xf32>, vector<1x16xf32>, vector<1x16xf32> -> vector<24x16xf32>
    %c0_75 = arith.constant 0 : index
    %c0_76 = arith.constant 0 : index
    %114 = vector.load %arg6[%c0_75, %c0_76] : memref<104x16xf32, #tpu.memory_space<vmem>>, vector<24x16xf32>
    tpu.vector_store %arg6[%c0_75, %c0_76], %113 {strides = array<i32>} : memref<104x16xf32, #tpu.memory_space<vmem>>, vector<24x16xf32>,
    %c64_77 = arith.constant 64 : index
    %c0_78 = arith.constant 0 : index
    %115 = tpu.strided_load %arg5[%c64_77, %c0_78] {strides = array<i32: 3, 1>} : memref<256x16xf32, #tpu.memory_space<vmem>>, vector<18x16xf32>
    %c65 = arith.constant 65 : index
    %c0_79 = arith.constant 0 : index
    %116 = tpu.strided_load %arg5[%c65, %c0_79] {strides = array<i32: 3, 1>} : memref<256x16xf32, #tpu.memory_space<vmem>>, vector<18x16xf32>
    %117 = arith.maximumf %115, %116 : vector<18x16xf32>
    %c66 = arith.constant 66 : index
    %c0_80 = arith.constant 0 : index
    %118 = tpu.strided_load %arg5[%c66, %c0_80] {strides = array<i32: 3, 1>} : memref<256x16xf32, #tpu.memory_space<vmem>>, vector<18x16xf32>
    %119 = arith.maximumf %117, %118 : vector<18x16xf32>
    %120 = vector.broadcast %88 : vector<1x16xf32> to vector<18x16xf32>
    %121 = arith.subf %119, %120 : vector<18x16xf32>
    %122 = vector.broadcast %97 : vector<1x16xf32> to vector<18x16xf32>
    %123 = arith.mulf %121, %122 : vector<18x16xf32>
    %cst_81 = arith.constant 0.000000e+00 : f32
    %124 = vector.broadcast %cst_81 : f32 to vector<18x16xf32>
    %125 = arith.maximumf %123, %124 : vector<18x16xf32>
    %126 = vector.extract_strided_slice %125 {offsets = [0, 0], sizes = [1, 16], strides = [1, 1]} : vector<18x16xf32> to vector<1x16xf32>
    %127 = vector.extract_strided_slice %125 {offsets = [17, 0], sizes = [1, 16], strides = [1, 1]} : vector<18x16xf32> to vector<1x16xf32>
    %128 = tpu.concatenate %126, %126, %126, %125, %127, %127, %127 in 0 : vector<1x16xf32>, vector<1x16xf32>, vector<1x16xf32>, vector<18x16xf32>, vector<1x16xf32>, vector<1x16xf32>, vector<1x16xf32> -> vector<24x16xf32>
    %c24 = arith.constant 24 : index
    %c0_82 = arith.constant 0 : index
    %129 = vector.load %arg6[%c24, %c0_82] : memref<104x16xf32, #tpu.memory_space<vmem>>, vector<24x16xf32>
    tpu.vector_store %arg6[%c24, %c0_82], %128 {strides = array<i32>} : memref<104x16xf32, #tpu.memory_space<vmem>>, vector<24x16xf32>,
    %c128_83 = arith.constant 128 : index
    %c0_84 = arith.constant 0 : index
    %130 = tpu.strided_load %arg5[%c128_83, %c0_84] {strides = array<i32: 3, 1>} : memref<256x16xf32, #tpu.memory_space<vmem>>, vector<18x16xf32>
    %c129 = arith.constant 129 : index
    %c0_85 = arith.constant 0 : index
    %131 = tpu.strided_load %arg5[%c129, %c0_85] {strides = array<i32: 3, 1>} : memref<256x16xf32, #tpu.memory_space<vmem>>, vector<18x16xf32>
    %132 = arith.maximumf %130, %131 : vector<18x16xf32>
    %c130 = arith.constant 130 : index
    %c0_86 = arith.constant 0 : index
    %133 = tpu.strided_load %arg5[%c130, %c0_86] {strides = array<i32: 3, 1>} : memref<256x16xf32, #tpu.memory_space<vmem>>, vector<18x16xf32>
    %134 = arith.maximumf %132, %133 : vector<18x16xf32>
    %135 = vector.broadcast %88 : vector<1x16xf32> to vector<18x16xf32>
    %136 = arith.subf %134, %135 : vector<18x16xf32>
    %137 = vector.broadcast %97 : vector<1x16xf32> to vector<18x16xf32>
    %138 = arith.mulf %136, %137 : vector<18x16xf32>
    %cst_87 = arith.constant 0.000000e+00 : f32
    %139 = vector.broadcast %cst_87 : f32 to vector<18x16xf32>
    %140 = arith.maximumf %138, %139 : vector<18x16xf32>
    %141 = vector.extract_strided_slice %140 {offsets = [0, 0], sizes = [1, 16], strides = [1, 1]} : vector<18x16xf32> to vector<1x16xf32>
    %142 = vector.extract_strided_slice %140 {offsets = [17, 0], sizes = [1, 16], strides = [1, 1]} : vector<18x16xf32> to vector<1x16xf32>
    %143 = tpu.concatenate %141, %141, %141, %140, %142, %142, %142 in 0 : vector<1x16xf32>, vector<1x16xf32>, vector<1x16xf32>, vector<18x16xf32>, vector<1x16xf32>, vector<1x16xf32>, vector<1x16xf32> -> vector<24x16xf32>
    %c48 = arith.constant 48 : index
    %c0_88 = arith.constant 0 : index
    %144 = vector.load %arg6[%c48, %c0_88] : memref<104x16xf32, #tpu.memory_space<vmem>>, vector<24x16xf32>
    tpu.vector_store %arg6[%c48, %c0_88], %143 {strides = array<i32>} : memref<104x16xf32, #tpu.memory_space<vmem>>, vector<24x16xf32>,
    %c192_89 = arith.constant 192 : index
    %c0_90 = arith.constant 0 : index
    %145 = tpu.strided_load %arg5[%c192_89, %c0_90] {strides = array<i32: 3, 1>} : memref<256x16xf32, #tpu.memory_space<vmem>>, vector<18x16xf32>
    %c193 = arith.constant 193 : index
    %c0_91 = arith.constant 0 : index
    %146 = tpu.strided_load %arg5[%c193, %c0_91] {strides = array<i32: 3, 1>} : memref<256x16xf32, #tpu.memory_space<vmem>>, vector<18x16xf32>
    %147 = arith.maximumf %145, %146 : vector<18x16xf32>
    %c194 = arith.constant 194 : index
    %c0_92 = arith.constant 0 : index
    %148 = tpu.strided_load %arg5[%c194, %c0_92] {strides = array<i32: 3, 1>} : memref<256x16xf32, #tpu.memory_space<vmem>>, vector<18x16xf32>
    %149 = arith.maximumf %147, %148 : vector<18x16xf32>
    %150 = vector.broadcast %88 : vector<1x16xf32> to vector<18x16xf32>
    %151 = arith.subf %149, %150 : vector<18x16xf32>
    %152 = vector.broadcast %97 : vector<1x16xf32> to vector<18x16xf32>
    %153 = arith.mulf %151, %152 : vector<18x16xf32>
    %cst_93 = arith.constant 0.000000e+00 : f32
    %154 = vector.broadcast %cst_93 : f32 to vector<18x16xf32>
    %155 = arith.maximumf %153, %154 : vector<18x16xf32>
    %156 = vector.extract_strided_slice %155 {offsets = [0, 0], sizes = [1, 16], strides = [1, 1]} : vector<18x16xf32> to vector<1x16xf32>
    %157 = vector.extract_strided_slice %155 {offsets = [17, 0], sizes = [1, 16], strides = [1, 1]} : vector<18x16xf32> to vector<1x16xf32>
    %158 = tpu.concatenate %156, %156, %156, %155, %157, %157, %157 in 0 : vector<1x16xf32>, vector<1x16xf32>, vector<1x16xf32>, vector<18x16xf32>, vector<1x16xf32>, vector<1x16xf32>, vector<1x16xf32> -> vector<24x16xf32>
    %c72 = arith.constant 72 : index
    %c0_94 = arith.constant 0 : index
    %159 = vector.load %arg6[%c72, %c0_94] : memref<104x16xf32, #tpu.memory_space<vmem>>, vector<24x16xf32>
    tpu.vector_store %arg6[%c72, %c0_94], %158 {strides = array<i32>} : memref<104x16xf32, #tpu.memory_space<vmem>>, vector<24x16xf32>,
    %c0_95 = arith.constant 0 : index
    %c0_96 = arith.constant 0 : index
    %160 = vector.load %arg6[%c0_95, %c0_96] : memref<104x16xf32, #tpu.memory_space<vmem>>, vector<96x16xf32>
    %c16 = arith.constant 16 : index
    %c0_97 = arith.constant 0 : index
    %161 = vector.load %arg1[%c16, %c0_97] : memref<112x32xf32, #tpu.memory_space<vmem>>, vector<16x32xf32>
    %cst_98 = arith.constant dense<0.000000e+00> : vector<96x32xf32>
    %162 = tpu.matmul %160, %161, %cst_98 {dimension_numbers = #tpu.dot_dimension_numbers<[1], [0], [0], [1], [0, 0, 1, 1], [], []>} : vector<96x16xf32>, vector<16x32xf32>, vector<96x32xf32> -> vector<96x32xf32>
    %c1_99 = arith.constant 1 : index
    %c0_100 = arith.constant 0 : index
    %163 = vector.load %arg6[%c1_99, %c0_100] : memref<104x16xf32, #tpu.memory_space<vmem>>, vector<96x16xf32>
    %c32 = arith.constant 32 : index
    %c0_101 = arith.constant 0 : index
    %164 = vector.load %arg1[%c32, %c0_101] : memref<112x32xf32, #tpu.memory_space<vmem>>, vector<16x32xf32>
    %cst_102 = arith.constant dense<0.000000e+00> : vector<96x32xf32>
    %165 = tpu.matmul %163, %164, %cst_102 {dimension_numbers = #tpu.dot_dimension_numbers<[1], [0], [0], [1], [0, 0, 1, 1], [], []>} : vector<96x16xf32>, vector<16x32xf32>, vector<96x32xf32> -> vector<96x32xf32>
    %166 = arith.addf %162, %165 : vector<96x32xf32>
    %c2_103 = arith.constant 2 : index
    %c0_104 = arith.constant 0 : index
    %167 = vector.load %arg6[%c2_103, %c0_104] : memref<104x16xf32, #tpu.memory_space<vmem>>, vector<96x16xf32>
    %c48_105 = arith.constant 48 : index
    %c0_106 = arith.constant 0 : index
    %168 = vector.load %arg1[%c48_105, %c0_106] : memref<112x32xf32, #tpu.memory_space<vmem>>, vector<16x32xf32>
    %cst_107 = arith.constant dense<0.000000e+00> : vector<96x32xf32>
    %169 = tpu.matmul %167, %168, %cst_107 {dimension_numbers = #tpu.dot_dimension_numbers<[1], [0], [0], [1], [0, 0, 1, 1], [], []>} : vector<96x16xf32>, vector<16x32xf32>, vector<96x32xf32> -> vector<96x32xf32>
    %170 = arith.addf %166, %169 : vector<96x32xf32>
    %c3_108 = arith.constant 3 : index
    %c0_109 = arith.constant 0 : index
    %171 = vector.load %arg6[%c3_108, %c0_109] : memref<104x16xf32, #tpu.memory_space<vmem>>, vector<96x16xf32>
    %c64_110 = arith.constant 64 : index
    %c0_111 = arith.constant 0 : index
    %172 = vector.load %arg1[%c64_110, %c0_111] : memref<112x32xf32, #tpu.memory_space<vmem>>, vector<16x32xf32>
    %cst_112 = arith.constant dense<0.000000e+00> : vector<96x32xf32>
    %173 = tpu.matmul %171, %172, %cst_112 {dimension_numbers = #tpu.dot_dimension_numbers<[1], [0], [0], [1], [0, 0, 1, 1], [], []>} : vector<96x16xf32>, vector<16x32xf32>, vector<96x32xf32> -> vector<96x32xf32>
    %174 = arith.addf %170, %173 : vector<96x32xf32>
    %c4_113 = arith.constant 4 : index
    %c0_114 = arith.constant 0 : index
    %175 = vector.load %arg6[%c4_113, %c0_114] : memref<104x16xf32, #tpu.memory_space<vmem>>, vector<96x16xf32>
    %c80 = arith.constant 80 : index
    %c0_115 = arith.constant 0 : index
    %176 = vector.load %arg1[%c80, %c0_115] : memref<112x32xf32, #tpu.memory_space<vmem>>, vector<16x32xf32>
    %cst_116 = arith.constant dense<0.000000e+00> : vector<96x32xf32>
    %177 = tpu.matmul %175, %176, %cst_116 {dimension_numbers = #tpu.dot_dimension_numbers<[1], [0], [0], [1], [0, 0, 1, 1], [], []>} : vector<96x16xf32>, vector<16x32xf32>, vector<96x32xf32> -> vector<96x32xf32>
    %178 = arith.addf %174, %177 : vector<96x32xf32>
    %c5_117 = arith.constant 5 : index
    %c0_118 = arith.constant 0 : index
    %179 = vector.load %arg6[%c5_117, %c0_118] : memref<104x16xf32, #tpu.memory_space<vmem>>, vector<96x16xf32>
    %c96 = arith.constant 96 : index
    %c0_119 = arith.constant 0 : index
    %180 = vector.load %arg1[%c96, %c0_119] : memref<112x32xf32, #tpu.memory_space<vmem>>, vector<16x32xf32>
    %cst_120 = arith.constant dense<0.000000e+00> : vector<96x32xf32>
    %181 = tpu.matmul %179, %180, %cst_120 {dimension_numbers = #tpu.dot_dimension_numbers<[1], [0], [0], [1], [0, 0, 1, 1], [], []>} : vector<96x16xf32>, vector<16x32xf32>, vector<96x32xf32> -> vector<96x32xf32>
    %182 = arith.addf %178, %181 : vector<96x32xf32>
    %c13 = arith.constant 13 : index
    %c0_121 = arith.constant 0 : index
    %183 = vector.load %arg1[%c13, %c0_121] : memref<112x32xf32, #tpu.memory_space<vmem>>, vector<1x32xf32>
    %184 = vector.broadcast %183 : vector<1x32xf32> to vector<96x32xf32>
    %185 = arith.addf %182, %184 : vector<96x32xf32>
    %c0_122 = arith.constant 0 : index
    %c0_123 = arith.constant 0 : index
    %186 = vector.load %arg7[%c0_122, %c0_123] : memref<96x32xf32, #tpu.memory_space<vmem>>, vector<96x32xf32>
    tpu.vector_store %arg7[%c0_122, %c0_123], %185 {strides = array<i32>} : memref<96x32xf32, #tpu.memory_space<vmem>>, vector<96x32xf32>,
    %cst_124 = arith.constant 0.000000e+00 : f32
    %187 = vector.broadcast %cst_124 : f32 to vector<1x32xf32>
    %cst_125 = arith.constant 0.000000e+00 : f32
    %188 = vector.broadcast %cst_125 : f32 to vector<1x32xf32>
    %c0_126 = arith.constant 0 : index
    %c0_127 = arith.constant 0 : index
    %189 = vector.load %arg7[%c0_126, %c0_127] : memref<96x32xf32, #tpu.memory_space<vmem>>, vector<19x32xf32>
    %cst_128 = arith.constant dense<0.000000e+00> : vector<32xf32>
    %190 = vector.multi_reduction <add>, %189, %cst_128 [0] : vector<19x32xf32> to vector<32xf32>
    %191 = vector.shape_cast %190 : vector<32xf32> to vector<1x32xf32>
    %192 = arith.addf %187, %191 : vector<1x32xf32>
    %193 = arith.mulf %189, %189 : vector<19x32xf32>
    %cst_129 = arith.constant dense<0.000000e+00> : vector<32xf32>
    %194 = vector.multi_reduction <add>, %193, %cst_129 [0] : vector<19x32xf32> to vector<32xf32>
    %195 = vector.shape_cast %194 : vector<32xf32> to vector<1x32xf32>
    %196 = arith.addf %188, %195 : vector<1x32xf32>
    %c24_130 = arith.constant 24 : index
    %c0_131 = arith.constant 0 : index
    %197 = vector.load %arg7[%c24_130, %c0_131] : memref<96x32xf32, #tpu.memory_space<vmem>>, vector<19x32xf32>
    %cst_132 = arith.constant dense<0.000000e+00> : vector<32xf32>
    %198 = vector.multi_reduction <add>, %197, %cst_132 [0] : vector<19x32xf32> to vector<32xf32>
    %199 = vector.shape_cast %198 : vector<32xf32> to vector<1x32xf32>
    %200 = arith.addf %192, %199 : vector<1x32xf32>
    %201 = arith.mulf %197, %197 : vector<19x32xf32>
    %cst_133 = arith.constant dense<0.000000e+00> : vector<32xf32>
    %202 = vector.multi_reduction <add>, %201, %cst_133 [0] : vector<19x32xf32> to vector<32xf32>
    %203 = vector.shape_cast %202 : vector<32xf32> to vector<1x32xf32>
    %204 = arith.addf %196, %203 : vector<1x32xf32>
    %c48_134 = arith.constant 48 : index
    %c0_135 = arith.constant 0 : index
    %205 = vector.load %arg7[%c48_134, %c0_135] : memref<96x32xf32, #tpu.memory_space<vmem>>, vector<19x32xf32>
    %cst_136 = arith.constant dense<0.000000e+00> : vector<32xf32>
    %206 = vector.multi_reduction <add>, %205, %cst_136 [0] : vector<19x32xf32> to vector<32xf32>
    %207 = vector.shape_cast %206 : vector<32xf32> to vector<1x32xf32>
    %208 = arith.addf %200, %207 : vector<1x32xf32>
    %209 = arith.mulf %205, %205 : vector<19x32xf32>
    %cst_137 = arith.constant dense<0.000000e+00> : vector<32xf32>
    %210 = vector.multi_reduction <add>, %209, %cst_137 [0] : vector<19x32xf32> to vector<32xf32>
    %211 = vector.shape_cast %210 : vector<32xf32> to vector<1x32xf32>
    %212 = arith.addf %204, %211 : vector<1x32xf32>
    %c72_138 = arith.constant 72 : index
    %c0_139 = arith.constant 0 : index
    %213 = vector.load %arg7[%c72_138, %c0_139] : memref<96x32xf32, #tpu.memory_space<vmem>>, vector<19x32xf32>
    %cst_140 = arith.constant dense<0.000000e+00> : vector<32xf32>
    %214 = vector.multi_reduction <add>, %213, %cst_140 [0] : vector<19x32xf32> to vector<32xf32>
    %215 = vector.shape_cast %214 : vector<32xf32> to vector<1x32xf32>
    %216 = arith.addf %208, %215 : vector<1x32xf32>
    %217 = arith.mulf %213, %213 : vector<19x32xf32>
    %cst_141 = arith.constant dense<0.000000e+00> : vector<32xf32>
    %218 = vector.multi_reduction <add>, %217, %cst_141 [0] : vector<19x32xf32> to vector<32xf32>
    %219 = vector.shape_cast %218 : vector<32xf32> to vector<1x32xf32>
    %220 = arith.addf %212, %219 : vector<1x32xf32>
    %cst_142 = arith.constant 7.600000e+01 : f32
    %221 = vector.broadcast %cst_142 : f32 to vector<1x32xf32>
    %222 = arith.divf %216, %221 : vector<1x32xf32>
    %cst_143 = arith.constant 7.600000e+01 : f32
    %223 = vector.broadcast %cst_143 : f32 to vector<1x32xf32>
    %224 = arith.divf %220, %223 : vector<1x32xf32>
    %225 = arith.mulf %222, %222 : vector<1x32xf32>
    %226 = arith.subf %224, %225 : vector<1x32xf32>
    %cst_144 = arith.constant 0.000000e+00 : f32
    %227 = vector.broadcast %cst_144 : f32 to vector<1x32xf32>
    %228 = arith.maximumf %226, %227 : vector<1x32xf32>
    %cst_145 = arith.constant 9.99999974E-6 : f32
    %229 = vector.broadcast %cst_145 : f32 to vector<1x32xf32>
    %230 = arith.addf %228, %229 : vector<1x32xf32>
    %231 = math.rsqrt %230 : vector<1x32xf32>
    %c0_146 = arith.constant 0 : index
    %c0_147 = arith.constant 0 : index
    %232 = tpu.strided_load %arg7[%c0_146, %c0_147] {strides = array<i32: 3, 1>} : memref<96x32xf32, #tpu.memory_space<vmem>>, vector<32x32xf32>
    %c1_148 = arith.constant 1 : index
    %c0_149 = arith.constant 0 : index
    %233 = tpu.strided_load %arg7[%c1_148, %c0_149] {strides = array<i32: 3, 1>} : memref<96x32xf32, #tpu.memory_space<vmem>>, vector<32x32xf32>
    %234 = arith.maximumf %232, %233 : vector<32x32xf32>
    %c2_150 = arith.constant 2 : index
    %c0_151 = arith.constant 0 : index
    %235 = tpu.strided_load %arg7[%c2_150, %c0_151] {strides = array<i32: 3, 1>} : memref<96x32xf32, #tpu.memory_space<vmem>>, vector<32x32xf32>
    %236 = arith.maximumf %234, %235 : vector<32x32xf32>
    %237 = vector.broadcast %222 : vector<1x32xf32> to vector<32x32xf32>
    %238 = arith.subf %236, %237 : vector<32x32xf32>
    %239 = vector.broadcast %231 : vector<1x32xf32> to vector<32x32xf32>
    %240 = arith.mulf %238, %239 : vector<32x32xf32>
    %cst_152 = arith.constant 0.000000e+00 : f32
    %241 = vector.broadcast %cst_152 : f32 to vector<32x32xf32>
    %242 = arith.maximumf %240, %241 : vector<32x32xf32>
    %c0_153 = arith.constant 0 : index
    %c0_154 = arith.constant 0 : index
    %243 = vector.load %arg8[%c0_153, %c0_154] : memref<32x32xf32, #tpu.memory_space<vmem>>, vector<32x32xf32>
    tpu.vector_store %arg8[%c0_153, %c0_154], %242 {strides = array<i32>} : memref<32x32xf32, #tpu.memory_space<vmem>>, vector<32x32xf32>,
    %c0_155 = arith.constant 0 : index
    %c0_156 = arith.constant 0 : index
    %244 = tpu.strided_load %arg8[%c0_155, %c0_156] {strides = array<i32: 8, 1>} : memref<32x32xf32, #tpu.memory_space<vmem>>, vector<4x32xf32>
    %c0_157 = arith.constant 0 : index
    %c0_158 = arith.constant 0 : index
    %245 = vector.load %arg2[%c0_157, %c0_158] : memref<400x200xf32, #tpu.memory_space<vmem>>, vector<32x200xf32>
    %cst_159 = arith.constant dense<0.000000e+00> : vector<4x200xf32>
    %246 = tpu.matmul %244, %245, %cst_159 {dimension_numbers = #tpu.dot_dimension_numbers<[1], [0], [0], [1], [0, 0, 1, 1], [], []>} : vector<4x32xf32>, vector<32x200xf32>, vector<4x200xf32> -> vector<4x200xf32>
    %c1_160 = arith.constant 1 : index
    %c0_161 = arith.constant 0 : index
    %247 = tpu.strided_load %arg8[%c1_160, %c0_161] {strides = array<i32: 8, 1>} : memref<32x32xf32, #tpu.memory_space<vmem>>, vector<4x32xf32>
    %c32_162 = arith.constant 32 : index
    %c0_163 = arith.constant 0 : index
    %248 = vector.load %arg2[%c32_162, %c0_163] : memref<400x200xf32, #tpu.memory_space<vmem>>, vector<32x200xf32>
    %cst_164 = arith.constant dense<0.000000e+00> : vector<4x200xf32>
    %249 = tpu.matmul %247, %248, %cst_164 {dimension_numbers = #tpu.dot_dimension_numbers<[1], [0], [0], [1], [0, 0, 1, 1], [], []>} : vector<4x32xf32>, vector<32x200xf32>, vector<4x200xf32> -> vector<4x200xf32>
    %250 = arith.addf %246, %249 : vector<4x200xf32>
    %c2_165 = arith.constant 2 : index
    %c0_166 = arith.constant 0 : index
    %251 = tpu.strided_load %arg8[%c2_165, %c0_166] {strides = array<i32: 8, 1>} : memref<32x32xf32, #tpu.memory_space<vmem>>, vector<4x32xf32>
    %c64_167 = arith.constant 64 : index
    %c0_168 = arith.constant 0 : index
    %252 = vector.load %arg2[%c64_167, %c0_168] : memref<400x200xf32, #tpu.memory_space<vmem>>, vector<32x200xf32>
    %cst_169 = arith.constant dense<0.000000e+00> : vector<4x200xf32>
    %253 = tpu.matmul %251, %252, %cst_169 {dimension_numbers = #tpu.dot_dimension_numbers<[1], [0], [0], [1], [0, 0, 1, 1], [], []>} : vector<4x32xf32>, vector<32x200xf32>, vector<4x200xf32> -> vector<4x200xf32>
    %254 = arith.addf %250, %253 : vector<4x200xf32>
    %c3_170 = arith.constant 3 : index
    %c0_171 = arith.constant 0 : index
    %255 = tpu.strided_load %arg8[%c3_170, %c0_171] {strides = array<i32: 8, 1>} : memref<32x32xf32, #tpu.memory_space<vmem>>, vector<4x32xf32>
    %c96_172 = arith.constant 96 : index
    %c0_173 = arith.constant 0 : index
    %256 = vector.load %arg2[%c96_172, %c0_173] : memref<400x200xf32, #tpu.memory_space<vmem>>, vector<32x200xf32>
    %cst_174 = arith.constant dense<0.000000e+00> : vector<4x200xf32>
    %257 = tpu.matmul %255, %256, %cst_174 {dimension_numbers = #tpu.dot_dimension_numbers<[1], [0], [0], [1], [0, 0, 1, 1], [], []>} : vector<4x32xf32>, vector<32x200xf32>, vector<4x200xf32> -> vector<4x200xf32>
    %258 = arith.addf %254, %257 : vector<4x200xf32>
    %c4_175 = arith.constant 4 : index
    %c0_176 = arith.constant 0 : index
    %259 = tpu.strided_load %arg8[%c4_175, %c0_176] {strides = array<i32: 8, 1>} : memref<32x32xf32, #tpu.memory_space<vmem>>, vector<4x32xf32>
    %c128_177 = arith.constant 128 : index
    %c0_178 = arith.constant 0 : index
    %260 = vector.load %arg2[%c128_177, %c0_178] : memref<400x200xf32, #tpu.memory_space<vmem>>, vector<32x200xf32>
    %cst_179 = arith.constant dense<0.000000e+00> : vector<4x200xf32>
    %261 = tpu.matmul %259, %260, %cst_179 {dimension_numbers = #tpu.dot_dimension_numbers<[1], [0], [0], [1], [0, 0, 1, 1], [], []>} : vector<4x32xf32>, vector<32x200xf32>, vector<4x200xf32> -> vector<4x200xf32>
    %262 = arith.addf %258, %261 : vector<4x200xf32>
    %c5_180 = arith.constant 5 : index
    %c0_181 = arith.constant 0 : index
    %263 = tpu.strided_load %arg8[%c5_180, %c0_181] {strides = array<i32: 8, 1>} : memref<32x32xf32, #tpu.memory_space<vmem>>, vector<4x32xf32>
    %c160 = arith.constant 160 : index
    %c0_182 = arith.constant 0 : index
    %264 = vector.load %arg2[%c160, %c0_182] : memref<400x200xf32, #tpu.memory_space<vmem>>, vector<32x200xf32>
    %cst_183 = arith.constant dense<0.000000e+00> : vector<4x200xf32>
    %265 = tpu.matmul %263, %264, %cst_183 {dimension_numbers = #tpu.dot_dimension_numbers<[1], [0], [0], [1], [0, 0, 1, 1], [], []>} : vector<4x32xf32>, vector<32x200xf32>, vector<4x200xf32> -> vector<4x200xf32>
    %266 = arith.addf %262, %265 : vector<4x200xf32>
    %c192_184 = arith.constant 192 : index
    %c0_185 = arith.constant 0 : index
    %267 = vector.load %arg2[%c192_184, %c0_185] : memref<400x200xf32, #tpu.memory_space<vmem>>, vector<1x200xf32>
    %268 = vector.broadcast %267 : vector<1x200xf32> to vector<4x200xf32>
    %269 = arith.addf %266, %268 : vector<4x200xf32>
    %cst_186 = arith.constant 0.000000e+00 : f32
    %270 = vector.broadcast %cst_186 : f32 to vector<4x200xf32>
    %271 = arith.maximumf %269, %270 : vector<4x200xf32>
    %c200 = arith.constant 200 : index
    %c0_187 = arith.constant 0 : index
    %272 = vector.load %arg2[%c200, %c0_187] : memref<400x200xf32, #tpu.memory_space<vmem>>, vector<200x128xf32>
    %cst_188 = arith.constant dense<0.000000e+00> : vector<4x128xf32>
    %273 = tpu.matmul %271, %272, %cst_188 {dimension_numbers = #tpu.dot_dimension_numbers<[1], [0], [0], [1], [0, 0, 1, 1], [], []>} : vector<4x200xf32>, vector<200x128xf32>, vector<4x128xf32> -> vector<4x128xf32>
    %c193_189 = arith.constant 193 : index
    %c0_190 = arith.constant 0 : index
    %274 = vector.load %arg2[%c193_189, %c0_190] : memref<400x200xf32, #tpu.memory_space<vmem>>, vector<1x128xf32>
    %275 = vector.broadcast %274 : vector<1x128xf32> to vector<4x128xf32>
    %276 = arith.addf %273, %275 : vector<4x128xf32>
    %cst_191 = arith.constant dense<0xFF800000> : vector<4xf32>
    %277 = vector.multi_reduction <maximumf>, %276, %cst_191 [1] : vector<4x128xf32> to vector<4xf32>
    %278 = vector.shape_cast %277 : vector<4xf32> to vector<4x1xf32>
    %279 = vector.broadcast %278 : vector<4x1xf32> to vector<4x128xf32>
    %280 = arith.subf %276, %279 : vector<4x128xf32>
    %281 = math.exp %280 : vector<4x128xf32>
    %cst_192 = arith.constant dense<0.000000e+00> : vector<4xf32>
    %282 = vector.multi_reduction <add>, %281, %cst_192 [1] : vector<4x128xf32> to vector<4xf32>
    %283 = vector.shape_cast %282 : vector<4xf32> to vector<4x1xf32>
    %284 = math.log %283 : vector<4x1xf32>
    %285 = arith.addf %278, %284 : vector<4x1xf32>
    %286 = vector.broadcast %285 : vector<4x1xf32> to vector<4x128xf32>
    %287 = arith.subf %276, %286 : vector<4x128xf32>
    %c0_193 = arith.constant 0 : index
    %c0_194 = arith.constant 0 : index
    %288 = vector.load %arg3[%c0_193, %c0_194] : memref<4x128xf32, #tpu.memory_space<vmem>>, vector<4x128xf32>
    tpu.vector_store %arg3[%c0_193, %c0_194], %287 {strides = array<i32>} : memref<4x128xf32, #tpu.memory_space<vmem>>, vector<4x128xf32>,
    return
  }
}

</mosaic_0001>

<llo_original>
// kernel: cnn_forward.1
$region0: #{cnn_forward.1}
  #allocation0 [shape = 'u32[]', space=smem, size = 0x4, offset = 0x4, fixed_abs, tag = 'smem constant byte address 0x4 - core index']
  #allocation1 [shape = 'u32[144,128]{1,0:T(1,128)}', space=vmem, size = 0x12000, scoped, tag = 'internal scratch']
  #allocation2 [shape = 'f32[264,2]{1,0:T(8,128)}', space=vmem, size = 0x21000, scoped, tag = 'scratch operand']
  #allocation3 [shape = 'f32[256,16]{1,0:T(8,128)}', space=vmem, size = 0x20000, scoped, tag = 'scratch operand']
  #allocation4 [shape = 'f32[104,16]{1,0:T(8,128)}', space=vmem, size = 0xd000, scoped, tag = 'scratch operand']
  #allocation5 [shape = 'f32[96,32]{1,0:T(8,128)}', space=vmem, size = 0xc000, scoped, tag = 'scratch operand']
  #allocation6 [shape = 'f32[32,32]{1,0:T(8,128)}', space=vmem, size = 0x4000, scoped, tag = 'scratch operand']
  %s0 = inlined_call_operand.vmem [shape: f32[4,53,2], index: 0, kind: input, shape index: {}]
  %s1 = inlined_call_operand.vmem [shape: f32[112,32], index: 1, kind: input, shape index: {}]
  %s2 = inlined_call_operand.hbm [shape: f32[400,200], index: 2, kind: input, shape index: {}]
  %s3 = inlined_call_operand.vmem [shape: f32[4,128], index: 3, kind: output, shape index: {}]
  %s4 = sld [smem:[#allocation0]]
  $region26: #{cnn_forward.1} parent=0
    _
  %s6 = ssub.s32 1, %s4
  %s7 = scalar_select 0, %s6, %s4
  $region1: #{cnn_forward.1} parent=0
    #allocation7 [shape = 'u8[409600]{0}', space=vmem, size = 0x64000, scoped, tag = 'input window, operand 2, single buffered']
    #allocation8 [shape = 's32[1]{0}', space=sflag, size = 0x4, scoped, tag = 'scoped memory for cnn_forward.1']
    %8 = vsyncpa [#allocation8], 0
    // Predicated region
    $region2: #{cnn_forward.1} parent=1 // pred_check
      _
    $region3: #{cnn_forward.1} parent=1 // pred_check_branch
      %10 = sbr.rel (0) target = $region5
    $region4: #{cnn_forward.1} parent=1 // pred_region
      _
    $region5: #{cnn_forward.1} parent=1 // pred_fallthru
      _
    // Predicated region
    $region6: #{cnn_forward.1} parent=1 // pred_check
      _
    $region7: #{cnn_forward.1} parent=1 // pred_check_branch
      %12 = sbr.rel (0) target = $region9
    $region8: #{cnn_forward.1} parent=1 // pred_region
      _
    $region9: #{cnn_forward.1} parent=1 // pred_fallthru
      _
    // Predicated region
    $region10: #{cnn_forward.1} parent=1 // pred_check
      _
    $region11: #{cnn_forward.1} parent=1 // pred_check_branch
      %14 = sbr.rel (0) target = $region13
    $region12: #{cnn_forward.1} parent=1 // pred_region
      %s16 = ssub.s32 12800, 12800
      %17 = vsyncadd [#allocation8], %s16
      %s18 = sshll.u32 [#allocation7], 4
      %s19 = int_to_ptr.vmem [resolvable:$true] %s18
      %24 = dma.hbm_to_vmem [thread:$0]  %s2, 12800, %s19, [#allocation8], 256, 256, 16
    $region13: #{cnn_forward.1} parent=1 // pred_fallthru
      _
    // Predicated region
    $region14: #{cnn_forward.1} parent=1 // pred_check
      _
    $region15: #{cnn_forward.1} parent=1 // pred_check_branch
      %26 = sbr.rel (0) target = $region17
    $region16: #{cnn_forward.1} parent=1 // pred_region
      %27 = dma.done [#allocation8], 12800
    $region17: #{cnn_forward.1} parent=1 // pred_fallthru
      _
    %vm28 = vcmask 15360
    %29 = vst.msk [vmem:[#allocation2] sm:$0xff] %vm28, 0.0
    %30 = vst.msk [vmem:[#allocation2 + $0x8] sm:$0xff] %vm28, 0.0
    %31 = vst.msk [vmem:[#allocation2 + $0x10] sm:$0xff] %vm28, 0.0
    %32 = vst.msk [vmem:[#allocation2 + $0x18] sm:$0xff] %vm28, 0.0
    %33 = vst.msk [vmem:[#allocation2 + $0x20] sm:$0xff] %vm28, 0.0
    %34 = vst.msk [vmem:[#allocation2 + $0x28] sm:$0xff] %vm28, 0.0
    %35 = vst.msk [vmem:[#allocation2 + $0x30] sm:$0xff] %vm28, 0.0
    %36 = vst.msk [vmem:[#allocation2 + $0x38] sm:$0xff] %vm28, 0.0
    %37 = vst.msk [vmem:[#allocation2 + $0x40] sm:$0xff] %vm28, 0.0
    %38 = vst.msk [vmem:[#allocation2 + $0x48] sm:$0xff] %vm28, 0.0
    %39 = vst.msk [vmem:[#allocation2 + $0x50] sm:$0xff] %vm28, 0.0
    %40 = vst.msk [vmem:[#allocation2 + $0x58] sm:$0xff] %vm28, 0.0
    %41 = vst.msk [vmem:[#allocation2 + $0x60] sm:$0xff] %vm28, 0.0
    %42 = vst.msk [vmem:[#allocation2 + $0x68] sm:$0xff] %vm28, 0.0
    %43 = vst.msk [vmem:[#allocation2 + $0x70] sm:$0xff] %vm28, 0.0
    %44 = vst.msk [vmem:[#allocation2 + $0x78] sm:$0xff] %vm28, 0.0
    %45 = vst.msk [vmem:[#allocation2 + $0x80] sm:$0xff] %vm28, 0.0
    %46 = vst.msk [vmem:[#allocation2 + $0x88] sm:$0xff] %vm28, 0.0
    %47 = vst.msk [vmem:[#allocation2 + $0x90] sm:$0xff] %vm28, 0.0
    %48 = vst.msk [vmem:[#allocation2 + $0x98] sm:$0xff] %vm28, 0.0
    %49 = vst.msk [vmem:[#allocation2 + $0xa0] sm:$0xff] %vm28, 0.0
    %50 = vst.msk [vmem:[#allocation2 + $0xa8] sm:$0xff] %vm28, 0.0
    %51 = vst.msk [vmem:[#allocation2 + $0xb0] sm:$0xff] %vm28, 0.0
    %52 = vst.msk [vmem:[#allocation2 + $0xb8] sm:$0xff] %vm28, 0.0
    %53 = vst.msk [vmem:[#allocation2 + $0xc0] sm:$0xff] %vm28, 0.0
    %54 = vst.msk [vmem:[#allocation2 + $0xc8] sm:$0xff] %vm28, 0.0
    %55 = vst.msk [vmem:[#allocation2 + $0xd0] sm:$0xff] %vm28, 0.0
    %56 = vst.msk [vmem:[#allocation2 + $0xd8] sm:$0xff] %vm28, 0.0
    %57 = vst.msk [vmem:[#allocation2 + $0xe0] sm:$0xff] %vm28, 0.0
    %58 = vst.msk [vmem:[#allocation2 + $0xe8] sm:$0xff] %vm28, 0.0
    %59 = vst.msk [vmem:[#allocation2 + $0xf0] sm:$0xff] %vm28, 0.0
    %60 = vst.msk [vmem:[#allocation2 + $0xf8] sm:$0xff] %vm28, 0.0
    %61 = vst.msk [vmem:[#allocation2 + $0x100] sm:$0xff] %vm28, 0.0
    %v62 = vld [vmem:[%s0] sm:$0xff]
    %v63 = vld [vmem:[%s0 + $0x8] sm:$0xff]
    %v64 = vld [vmem:[%s0 + $0x10] sm:$0xff]
    %v65 = vld [vmem:[%s0 + $0x18] sm:$0xff]
    %v66 = vld [vmem:[%s0 + $0x20] sm:$0xff]
    %v67 = vld [vmem:[%s0 + $0x28] sm:$0xff]
    %v68 = vld [vmem:[%s0 + $0x30] sm:$0x1f]
    %v70 = vrot.slane %v62, 7
    %v72 = vrot.slane %v62, 6
    %vm80 = vcmask 1042432
    %v81 = vrot.slane %v62, 5
    %v82 = vrot.slane %v63, 5
    %v83 = vsel %vm80, %v81, %v82
    %v84 = vrot.slane %v64, 5
    %v85 = vsel %vm80, %v82, %v84
    %v86 = vrot.slane %v65, 5
    %v87 = vsel %vm80, %v84, %v86
    %v88 = vrot.slane %v66, 5
    %v89 = vsel %vm80, %v86, %v88
    %v90 = vrot.slane %v67, 5
    %v91 = vsel %vm80, %v88, %v90
    %v92 = vrot.slane %v68, 5
    %v93 = vsel %vm80, %v90, %v92
    %v101 = vrot.slane %v68, 4
    %v103 = vrot.slane %v68, 3
    %v105 = vrot.slane %v68, 2
    %vm107 = vcmask 1040384
    %v108 = vsel %vm107, %v62, %v70
    %vm109 = vcmask 1041408
    %v110 = vsel %vm109, %v108, %v72
    %v111 = vsel %vm80, %v110, %v81
    %v112 = vsel %vm107, %v101, %v103
    %v113 = vsel %vm109, %v112, %v105
    %114 = vst.msk [vmem:[#allocation2] sm:$0xff] %vm28, %v111
    %115 = vst.msk [vmem:[#allocation2 + $0x8] sm:$0xff] %vm28, %v83
    %116 = vst.msk [vmem:[#allocation2 + $0x10] sm:$0xff] %vm28, %v85
    %117 = vst.msk [vmem:[#allocation2 + $0x18] sm:$0xff] %vm28, %v87
    %118 = vst.msk [vmem:[#allocation2 + $0x20] sm:$0xff] %vm28, %v89
    %119 = vst.msk [vmem:[#allocation2 + $0x28] sm:$0xff] %vm28, %v91
    %120 = vst.msk [vmem:[#allocation2 + $0x30] sm:$0xff] %vm28, %v93
    %vm121 = vcmask 10240
    %122 = vst.msk [vmem:[#allocation2 + $0x38] sm:$0x7] %vm121, %v113
    %s123 = scalar_lea.vmem %s0, 56
    %v124 = vld [vmem:[%s123] sm:$0xff]
    %v125 = vld [vmem:[%s123 + $0x8] sm:$0xff]
    %v126 = vld [vmem:[%s123 + $0x10] sm:$0xff]
    %v127 = vld [vmem:[%s123 + $0x18] sm:$0xff]
    %v128 = vld [vmem:[%s123 + $0x20] sm:$0xff]
    %v129 = vld [vmem:[%s123 + $0x28] sm:$0xff]
    %v130 = vld [vmem:[%s123 + $0x30] sm:$0x1f]
    %v132 = vrot.slane %v124, 7
    %v134 = vrot.slane %v124, 6
    %v142 = vrot.slane %v124, 5
    %v143 = vrot.slane %v125, 5
    %v144 = vsel %vm80, %v142, %v143
    %v145 = vrot.slane %v126, 5
    %v146 = vsel %vm80, %v143, %v145
    %v147 = vrot.slane %v127, 5
    %v148 = vsel %vm80, %v145, %v147
    %v149 = vrot.slane %v128, 5
    %v150 = vsel %vm80, %v147, %v149
    %v151 = vrot.slane %v129, 5
    %v152 = vsel %vm80, %v149, %v151
    %v153 = vrot.slane %v130, 5
    %v154 = vsel %vm80, %v151, %v153
    %v162 = vrot.slane %v130, 4
    %v164 = vrot.slane %v130, 3
    %v166 = vrot.slane %v130, 2
    %v168 = vsel %vm107, %v124, %v132
    %v169 = vsel %vm109, %v168, %v134
    %v170 = vsel %vm80, %v169, %v142
    %v171 = vsel %vm107, %v162, %v164
    %v172 = vsel %vm109, %v171, %v166
    %173 = vst.msk [vmem:[#allocation2 + $0x40] sm:$0xff] %vm28, %v170
    %174 = vst.msk [vmem:[#allocation2 + $0x48] sm:$0xff] %vm28, %v144
    %175 = vst.msk [vmem:[#allocation2 + $0x50] sm:$0xff] %vm28, %v146
    %176 = vst.msk [vmem:[#allocation2 + $0x58] sm:$0xff] %vm28, %v148
    %177 = vst.msk [vmem:[#allocation2 + $0x60] sm:$0xff] %vm28, %v150
    %178 = vst.msk [vmem:[#allocation2 + $0x68] sm:$0xff] %vm28, %v152
    %179 = vst.msk [vmem:[#allocation2 + $0x70] sm:$0xff] %vm28, %v154
    %180 = vst.msk [vmem:[#allocation2 + $0x78] sm:$0x7] %vm121, %v172
    %s181 = scalar_lea.vmem %s0, 112
    %v182 = vld [vmem:[%s181] sm:$0xff]
    %v183 = vld [vmem:[%s181 + $0x8] sm:$0xff]
    %v184 = vld [vmem:[%s181 + $0x10] sm:$0xff]
    %v185 = vld [vmem:[%s181 + $0x18] sm:$0xff]
    %v186 = vld [vmem:[%s181 + $0x20] sm:$0xff]
    %v187 = vld [vmem:[%s181 + $0x28] sm:$0xff]
    %v188 = vld [vmem:[%s181 + $0x30] sm:$0x1f]
    %v190 = vrot.slane %v182, 7
    %v192 = vrot.slane %v182, 6
    %v200 = vrot.slane %v182, 5
    %v201 = vrot.slane %v183, 5
    %v202 = vsel %vm80, %v200, %v201
    %v203 = vrot.slane %v184, 5
    %v204 = vsel %vm80, %v201, %v203
    %v205 = vrot.slane %v185, 5
    %v206 = vsel %vm80, %v203, %v205
    %v207 = vrot.slane %v186, 5
    %v208 = vsel %vm80, %v205, %v207
    %v209 = vrot.slane %v187, 5
    %v210 = vsel %vm80, %v207, %v209
    %v211 = vrot.slane %v188, 5
    %v212 = vsel %vm80, %v209, %v211
    %v220 = vrot.slane %v188, 4
    %v222 = vrot.slane %v188, 3
    %v224 = vrot.slane %v188, 2
    %v226 = vsel %vm107, %v182, %v190
    %v227 = vsel %vm109, %v226, %v192
    %v228 = vsel %vm80, %v227, %v200
    %v229 = vsel %vm107, %v220, %v222
    %v230 = vsel %vm109, %v229, %v224
    %231 = vst.msk [vmem:[#allocation2 + $0x80] sm:$0xff] %vm28, %v228
    %232 = vst.msk [vmem:[#allocation2 + $0x88] sm:$0xff] %vm28, %v202
    %233 = vst.msk [vmem:[#allocation2 + $0x90] sm:$0xff] %vm28, %v204
    %234 = vst.msk [vmem:[#allocation2 + $0x98] sm:$0xff] %vm28, %v206
    %235 = vst.msk [vmem:[#allocation2 + $0xa0] sm:$0xff] %vm28, %v208
    %236 = vst.msk [vmem:[#allocation2 + $0xa8] sm:$0xff] %vm28, %v210
    %237 = vst.msk [vmem:[#allocation2 + $0xb0] sm:$0xff] %vm28, %v212
    %238 = vst.msk [vmem:[#allocation2 + $0xb8] sm:$0x7] %vm121, %v230
    %s239 = scalar_lea.vmem %s0, 168
    %v240 = vld [vmem:[%s239] sm:$0xff]
    %v241 = vld [vmem:[%s239 + $0x8] sm:$0xff]
    %v242 = vld [vmem:[%s239 + $0x10] sm:$0xff]
    %v243 = vld [vmem:[%s239 + $0x18] sm:$0xff]
    %v244 = vld [vmem:[%s239 + $0x20] sm:$0xff]
    %v245 = vld [vmem:[%s239 + $0x28] sm:$0xff]
    %v246 = vld [vmem:[%s239 + $0x30] sm:$0x1f]
    %v248 = vrot.slane %v240, 7
    %v250 = vrot.slane %v240, 6
    %v258 = vrot.slane %v240, 5
    %v259 = vrot.slane %v241, 5
    %v260 = vsel %vm80, %v258, %v259
    %v261 = vrot.slane %v242, 5
    %v262 = vsel %vm80, %v259, %v261
    %v263 = vrot.slane %v243, 5
    %v264 = vsel %vm80, %v261, %v263
    %v265 = vrot.slane %v244, 5
    %v266 = vsel %vm80, %v263, %v265
    %v267 = vrot.slane %v245, 5
    %v268 = vsel %vm80, %v265, %v267
    %v269 = vrot.slane %v246, 5
    %v270 = vsel %vm80, %v267, %v269
    %v278 = vrot.slane %v246, 4
    %v280 = vrot.slane %v246, 3
    %v282 = vrot.slane %v246, 2
    %v284 = vsel %vm107, %v240, %v248
    %v285 = vsel %vm109, %v284, %v250
    %v286 = vsel %vm80, %v285, %v258
    %v287 = vsel %vm107, %v278, %v280
    %v288 = vsel %vm109, %v287, %v282
    %289 = vst.msk [vmem:[#allocation2 + $0xc0] sm:$0xff] %vm28, %v286
    %290 = vst.msk [vmem:[#allocation2 + $0xc8] sm:$0xff] %vm28, %v260
    %291 = vst.msk [vmem:[#allocation2 + $0xd0] sm:$0xff] %vm28, %v262
    %292 = vst.msk [vmem:[#allocation2 + $0xd8] sm:$0xff] %vm28, %v264
    %293 = vst.msk [vmem:[#allocation2 + $0xe0] sm:$0xff] %vm28, %v266
    %294 = vst.msk [vmem:[#allocation2 + $0xe8] sm:$0xff] %vm28, %v268
    %295 = vst.msk [vmem:[#allocation2 + $0xf0] sm:$0xff] %vm28, %v270
    %296 = vst.msk [vmem:[#allocation2 + $0xf8] sm:$0x7] %vm121, %v288
    %v297 = vld [vmem:[#allocation2] sm:$0xff]
    %v298 = vld [vmem:[#allocation2 + $0x8] sm:$0xff]
    %v299 = vld [vmem:[#allocation2 + $0x10] sm:$0xff]
    %v300 = vld [vmem:[#allocation2 + $0x18] sm:$0xff]
    %v301 = vld [vmem:[#allocation2 + $0x20] sm:$0xff]
    %v302 = vld [vmem:[#allocation2 + $0x28] sm:$0xff]
    %v303 = vld [vmem:[#allocation2 + $0x30] sm:$0xff]
    %v304 = vld [vmem:[#allocation2 + $0x38] sm:$0xff]
    %v305 = vld [vmem:[#allocation2 + $0x40] sm:$0xff]
    %v306 = vld [vmem:[#allocation2 + $0x48] sm:$0xff]
    %v307 = vld [vmem:[#allocation2 + $0x50] sm:$0xff]
    %v308 = vld [vmem:[#allocation2 + $0x58] sm:$0xff]
    %v309 = vld [vmem:[#allocation2 + $0x60] sm:$0xff]
    %v310 = vld [vmem:[#allocation2 + $0x68] sm:$0xff]
    %v311 = vld [vmem:[#allocation2 + $0x70] sm:$0xff]
    %v312 = vld [vmem:[#allocation2 + $0x78] sm:$0xff]
    %v313 = vld [vmem:[#allocation2 + $0x80] sm:$0xff]
    %v314 = vld [vmem:[#allocation2 + $0x88] sm:$0xff]
    %v315 = vld [vmem:[#allocation2 + $0x90] sm:$0xff]
    %v316 = vld [vmem:[#allocation2 + $0x98] sm:$0xff]
    %v317 = vld [vmem:[#allocation2 + $0xa0] sm:$0xff]
    %v318 = vld [vmem:[#allocation2 + $0xa8] sm:$0xff]
    %v319 = vld [vmem:[#allocation2 + $0xb0] sm:$0xff]
    %v320 = vld [vmem:[#allocation2 + $0xb8] sm:$0xff]
    %v321 = vld [vmem:[#allocation2 + $0xc0] sm:$0xff]
    %v322 = vld [vmem:[#allocation2 + $0xc8] sm:$0xff]
    %v323 = vld [vmem:[#allocation2 + $0xd0] sm:$0xff]
    %v324 = vld [vmem:[#allocation2 + $0xd8] sm:$0xff]
    %v325 = vld [vmem:[#allocation2 + $0xe0] sm:$0xff]
    %v326 = vld [vmem:[#allocation2 + $0xe8] sm:$0xff]
    %v327 = vld [vmem:[#allocation2 + $0xf0] sm:$0xff]
    %v328 = vld [vmem:[#allocation2 + $0xf8] sm:$0xff]
    %v329 = vld [vmem:[%s1] sm:$0x3]
    %v330 = vld [vmem:[#allocation2 + $0x1] sm:$0xff]
    %v331 = vld [vmem:[#allocation2 + $0x9] sm:$0xff]
    %v332 = vld [vmem:[#allocation2 + $0x11] sm:$0xff]
    %v333 = vld [vmem:[#allocation2 + $0x19] sm:$0xff]
    %v334 = vld [vmem:[#allocation2 + $0x21] sm:$0xff]
    %v335 = vld [vmem:[#allocation2 + $0x29] sm:$0xff]
    %v336 = vld [vmem:[#allocation2 + $0x31] sm:$0xff]
    %v337 = vld [vmem:[#allocation2 + $0x39] sm:$0xff]
    %v338 = vld [vmem:[#allocation2 + $0x41] sm:$0xff]
    %v339 = vld [vmem:[#allocation2 + $0x49] sm:$0xff]
    %v340 = vld [vmem:[#allocation2 + $0x51] sm:$0xff]
    %v341 = vld [vmem:[#allocation2 + $0x59] sm:$0xff]
    %v342 = vld [vmem:[#allocation2 + $0x61] sm:$0xff]
    %v343 = vld [vmem:[#allocation2 + $0x69] sm:$0xff]
    %v344 = vld [vmem:[#allocation2 + $0x71] sm:$0xff]
    %v345 = vld [vmem:[#allocation2 + $0x79] sm:$0xff]
    %v346 = vld [vmem:[#allocation2 + $0x81] sm:$0xff]
    %v347 = vld [vmem:[#allocation2 + $0x89] sm:$0xff]
    %v348 = vld [vmem:[#allocation2 + $0x91] sm:$0xff]
    %v349 = vld [vmem:[#allocation2 + $0x99] sm:$0xff]
    %v350 = vld [vmem:[#allocation2 + $0xa1] sm:$0xff]
    %v351 = vld [vmem:[#allocation2 + $0xa9] sm:$0xff]
    %v352 = vld [vmem:[#allocation2 + $0xb1] sm:$0xff]
    %v353 = vld [vmem:[#allocation2 + $0xb9] sm:$0xff]
    %v354 = vld [vmem:[#allocation2 + $0xc1] sm:$0xff]
    %v355 = vld [vmem:[#allocation2 + $0xc9] sm:$0xff]
    %v356 = vld [vmem:[#allocation2 + $0xd1] sm:$0xff]
    %v357 = vld [vmem:[#allocation2 + $0xd9] sm:$0xff]
    %v358 = vld [vmem:[#allocation2 + $0xe1] sm:$0xff]
    %v359 = vld [vmem:[#allocation2 + $0xe9] sm:$0xff]
    %v360 = vld [vmem:[#allocation2 + $0xf1] sm:$0xff]
    %v361 = vld [vmem:[#allocation2 + $0xf9] sm:$0xff]
    %v362 = vld [vmem:[%s1 + $0x2] sm:$0x3]
    %v364 = vsel %vm28, %v330, 0
    %v367 = vsel %vm28, %v331, 0
    %v370 = vsel %vm28, %v332, 0
    %v373 = vsel %vm28, %v333, 0
    %v376 = vsel %vm28, %v334, 0
    %v379 = vsel %vm28, %v335, 0
    %v382 = vsel %vm28, %v336, 0
    %v385 = vsel %vm28, %v337, 0
    %v388 = vsel %vm28, %v338, 0
    %v391 = vsel %vm28, %v339, 0
    %v394 = vsel %vm28, %v340, 0
    %v397 = vsel %vm28, %v341, 0
    %v400 = vsel %vm28, %v342, 0
    %v403 = vsel %vm28, %v343, 0
    %v406 = vsel %vm28, %v344, 0
    %v409 = vsel %vm28, %v345, 0
    %v412 = vsel %vm28, %v346, 0
    %v415 = vsel %vm28, %v347, 0
    %v418 = vsel %vm28, %v348, 0
    %v421 = vsel %vm28, %v349, 0
    %v424 = vsel %vm28, %v350, 0
    %v427 = vsel %vm28, %v351, 0
    %v430 = vsel %vm28, %v352, 0
    %v433 = vsel %vm28, %v353, 0
    %v436 = vsel %vm28, %v354, 0
    %v439 = vsel %vm28, %v355, 0
    %v442 = vsel %vm28, %v356, 0
    %v445 = vsel %vm28, %v357, 0
    %v448 = vsel %vm28, %v358, 0
    %v451 = vsel %vm28, %v359, 0
    %v454 = vsel %vm28, %v360, 0
    %v457 = vsel %vm28, %v361, 0
    %v460 = vsel %vm109, %v362, 0
    %462 = vmatprep.subr.mxu0 0.0
    %463 = vmatpush1.msra.mxu0 %v460
    %464 = vmatprep.subr.mxu0 0.0
    %465 = vmatpush1.msra.mxu0 0.0
    %466 = vmatprep.subr.mxu0 0.0
    %467 = vmatpush1.msra.mxu0 0.0
    %468 = vmatprep.subr.mxu0 0.0
    %469 = vmatpush1.msra.mxu0 0.0
    %470 = vmatprep.subr.mxu0 0.0
    %471 = vmatpush1.msra.mxu0 0.0
    %472 = vmatprep.subr.mxu0 0.0
    %473 = vmatpush1.msra.mxu0 0.0
    %474 = vmatprep.subr.mxu0 0.0
    %475 = vmatpush1.msra.mxu0 0.0
    %476 = vmatprep.subr.mxu0 0.0
    %477 = vmatpush1.msra.mxu0 0.0
    %478 = vmatprep.subr.mxu0 0.0
    %479 = vmatpush1.msra.mxu0 0.0
    %480 = vmatprep.subr.mxu0 0.0
    %481 = vmatpush1.msra.mxu0 0.0
    %482 = vmatprep.subr.mxu0 0.0
    %483 = vmatpush1.msra.mxu0 0.0
    %484 = vmatprep.subr.mxu0 0.0
    %485 = vmatpush1.msra.mxu0 0.0
    %486 = vmatprep.subr.mxu0 0.0
    %487 = vmatpush1.msra.mxu0 0.0
    %488 = vmatprep.subr.mxu0 0.0
    %489 = vmatpush1.msra.mxu0 0.0
    %490 = vmatprep.subr.mxu0 0.0
    %491 = vmatpush1.msra.mxu0 0.0
    %492 = vmatprep.subr.mxu0 0.0
    %493 = vmatpush1.msra.mxu0 0.0
    %494 = vmatprep.subr.mxu0 0.0
    %495 = vmatpush1.msra.mxu0 0.0
    %496 = vmatprep.subr.mxu0 0.0
    %497 = vmatpush1.msra.mxu0 0.0
    %498 = vmatprep.subr.mxu0 0.0
    %499 = vmatpush1.msra.mxu0 0.0
    %500 = vmatprep.subr.mxu0 0.0
    %501 = vmatpush1.msra.mxu0 0.0
    %502 = vmatprep.subr.mxu0 0.0
    %503 = vmatpush1.msra.mxu0 0.0
    %504 = vmatprep.subr.mxu0 0.0
    %505 = vmatpush1.msra.mxu0 0.0
    %506 = vmatprep.subr.mxu0 0.0
    %507 = vmatpush1.msra.mxu0 0.0
    %508 = vmatprep.subr.mxu0 0.0
    %509 = vmatpush1.msra.mxu0 0.0
    %510 = vmatprep.subr.mxu0 0.0
    %511 = vmatpush1.msra.mxu0 0.0
    %512 = vmatprep.subr.mxu0 0.0
    %513 = vmatpush1.msra.mxu0 0.0
    %514 = vmatprep.subr.mxu0 0.0
    %515 = vmatpush1.msra.mxu0 0.0
    %516 = vmatprep.subr.mxu0 0.0
    %517 = vmatpush1.msra.mxu0 0.0
    %518 = vmatprep.subr.mxu0 0.0
    %519 = vmatpush1.msra.mxu0 0.0
    %520 = vmatprep.subr.mxu0 0.0
    %521 = vmatpush1.msra.mxu0 0.0
    %522 = vmatprep.subr.mxu0 0.0
    %523 = vmatpush1.msra.mxu0 0.0
    %524 = vmatprep.subr.mxu0 0.0
    %525 = vmatpush1.msra.mxu0 0.0
    %526 = vmatprep.mubr.f32.mxu0 0.0
    %527 = vmatmul.mubr.f32.gmra.mrb[0].mxu0 %v364
    %v528 = vpop.f32.mrb[0].mxu0
    %v529 = vadd.f32 0.0, %v528
    %v530 = vpop.f32.mrb[0].mxu0
    %531 = vmatprep.mubr.f32.mxu0 0.0
    %532 = vmatmul.mubr.f32.gmra.mrb[0].mxu0 %v367
    %v533 = vpop.f32.mrb[0].mxu0
    %v534 = vadd.f32 0.0, %v533
    %v535 = vpop.f32.mrb[0].mxu0
    %536 = vmatprep.mubr.f32.mxu0 0.0
    %537 = vmatmul.mubr.f32.gmra.mrb[0].mxu0 %v370
    %v538 = vpop.f32.mrb[0].mxu0
    %v539 = vadd.f32 0.0, %v538
    %v540 = vpop.f32.mrb[0].mxu0
    %541 = vmatprep.mubr.f32.mxu0 0.0
    %542 = vmatmul.mubr.f32.gmra.mrb[0].mxu0 %v373
    %v543 = vpop.f32.mrb[0].mxu0
    %v544 = vadd.f32 0.0, %v543
    %v545 = vpop.f32.mrb[0].mxu0
    %546 = vmatprep.mubr.f32.mxu0 0.0
    %547 = vmatmul.mubr.f32.gmra.mrb[0].mxu0 %v376
    %v548 = vpop.f32.mrb[0].mxu0
    %v549 = vadd.f32 0.0, %v548
    %v550 = vpop.f32.mrb[0].mxu0
    %551 = vmatprep.mubr.f32.mxu0 0.0
    %552 = vmatmul.mubr.f32.gmra.mrb[0].mxu0 %v379
    %v553 = vpop.f32.mrb[0].mxu0
    %v554 = vadd.f32 0.0, %v553
    %v555 = vpop.f32.mrb[0].mxu0
    %556 = vmatprep.mubr.f32.mxu0 0.0
    %557 = vmatmul.mubr.f32.gmra.mrb[0].mxu0 %v382
    %v558 = vpop.f32.mrb[0].mxu0
    %v559 = vadd.f32 0.0, %v558
    %v560 = vpop.f32.mrb[0].mxu0
    %561 = vmatprep.mubr.f32.mxu0 0.0
    %562 = vmatmul.mubr.f32.gmra.mrb[0].mxu0 %v385
    %v563 = vpop.f32.mrb[0].mxu0
    %v564 = vadd.f32 0.0, %v563
    %v565 = vpop.f32.mrb[0].mxu0
    %566 = vmatprep.mubr.f32.mxu0 0.0
    %567 = vmatmul.mubr.f32.gmra.mrb[0].mxu0 %v388
    %v568 = vpop.f32.mrb[0].mxu0
    %v569 = vadd.f32 0.0, %v568
    %v570 = vpop.f32.mrb[0].mxu0
    %571 = vmatprep.mubr.f32.mxu0 0.0
    %572 = vmatmul.mubr.f32.gmra.mrb[0].mxu0 %v391
    %v573 = vpop.f32.mrb[0].mxu0
    %v574 = vadd.f32 0.0, %v573
    %v575 = vpop.f32.mrb[0].mxu0
    %576 = vmatprep.mubr.f32.mxu0 0.0
    %577 = vmatmul.mubr.f32.gmra.mrb[0].mxu0 %v394
    %v578 = vpop.f32.mrb[0].mxu0
    %v579 = vadd.f32 0.0, %v578
    %v580 = vpop.f32.mrb[0].mxu0
    %581 = vmatprep.mubr.f32.mxu0 0.0
    %582 = vmatmul.mubr.f32.gmra.mrb[0].mxu0 %v397
    %v583 = vpop.f32.mrb[0].mxu0
    %v584 = vadd.f32 0.0, %v583
    %v585 = vpop.f32.mrb[0].mxu0
    %586 = vmatprep.mubr.f32.mxu0 0.0
    %587 = vmatmul.mubr.f32.gmra.mrb[0].mxu0 %v400
    %v588 = vpop.f32.mrb[0].mxu0
    %v589 = vadd.f32 0.0, %v588
    %v590 = vpop.f32.mrb[0].mxu0
    %591 = vmatprep.mubr.f32.mxu0 0.0
    %592 = vmatmul.mubr.f32.gmra.mrb[0].mxu0 %v403
    %v593 = vpop.f32.mrb[0].mxu0
    %v594 = vadd.f32 0.0, %v593
    %v595 = vpop.f32.mrb[0].mxu0
    %596 = vmatprep.mubr.f32.mxu0 0.0
    %597 = vmatmul.mubr.f32.gmra.mrb[0].mxu0 %v406
    %v598 = vpop.f32.mrb[0].mxu0
    %v599 = vadd.f32 0.0, %v598
    %v600 = vpop.f32.mrb[0].mxu0
    %601 = vmatprep.mubr.f32.mxu0 0.0
    %602 = vmatmul.mubr.f32.gmra.mrb[0].mxu0 %v409
    %v603 = vpop.f32.mrb[0].mxu0
    %v604 = vadd.f32 0.0, %v603
    %v605 = vpop.f32.mrb[0].mxu0
    %606 = vmatprep.mubr.f32.mxu0 0.0
    %607 = vmatmul.mubr.f32.gmra.mrb[0].mxu0 %v412
    %v608 = vpop.f32.mrb[0].mxu0
    %v609 = vadd.f32 0.0, %v608
    %v610 = vpop.f32.mrb[0].mxu0
    %611 = vmatprep.mubr.f32.mxu0 0.0
    %612 = vmatmul.mubr.f32.gmra.mrb[0].mxu0 %v415
    %v613 = vpop.f32.mrb[0].mxu0
    %v614 = vadd.f32 0.0, %v613
    %v615 = vpop.f32.mrb[0].mxu0
    %616 = vmatprep.mubr.f32.mxu0 0.0
    %617 = vmatmul.mubr.f32.gmra.mrb[0].mxu0 %v418
    %v618 = vpop.f32.mrb[0].mxu0
    %v619 = vadd.f32 0.0, %v618
    %v620 = vpop.f32.mrb[0].mxu0
    %621 = vmatprep.mubr.f32.mxu0 0.0
    %622 = vmatmul.mubr.f32.gmra.mrb[0].mxu0 %v421
    %v623 = vpop.f32.mrb[0].mxu0
    %v624 = vadd.f32 0.0, %v623
    %v625 = vpop.f32.mrb[0].mxu0
    %626 = vmatprep.mubr.f32.mxu0 0.0
    %627 = vmatmul.mubr.f32.gmra.mrb[0].mxu0 %v424
    %v628 = vpop.f32.mrb[0].mxu0
    %v629 = vadd.f32 0.0, %v628
    %v630 = vpop.f32.mrb[0].mxu0
    %631 = vmatprep.mubr.f32.mxu0 0.0
    %632 = vmatmul.mubr.f32.gmra.mrb[0].mxu0 %v427
    %v633 = vpop.f32.mrb[0].mxu0
    %v634 = vadd.f32 0.0, %v633
    %v635 = vpop.f32.mrb[0].mxu0
    %636 = vmatprep.mubr.f32.mxu0 0.0
    %637 = vmatmul.mubr.f32.gmra.mrb[0].mxu0 %v430
    %v638 = vpop.f32.mrb[0].mxu0
    %v639 = vadd.f32 0.0, %v638
    %v640 = vpop.f32.mrb[0].mxu0
    %641 = vmatprep.mubr.f32.mxu0 0.0
    %642 = vmatmul.mubr.f32.gmra.mrb[0].mxu0 %v433
    %v643 = vpop.f32.mrb[0].mxu0
    %v644 = vadd.f32 0.0, %v643
    %v645 = vpop.f32.mrb[0].mxu0
    %646 = vmatprep.mubr.f32.mxu0 0.0
    %647 = vmatmul.mubr.f32.gmra.mrb[0].mxu0 %v436
    %v648 = vpop.f32.mrb[0].mxu0
    %v649 = vadd.f32 0.0, %v648
    %v650 = vpop.f32.mrb[0].mxu0
    %651 = vmatprep.mubr.f32.mxu0 0.0
    %652 = vmatmul.mubr.f32.gmra.mrb[0].mxu0 %v439
    %v653 = vpop.f32.mrb[0].mxu0
    %v654 = vadd.f32 0.0, %v653
    %v655 = vpop.f32.mrb[0].mxu0
    %656 = vmatprep.mubr.f32.mxu0 0.0
    %657 = vmatmul.mubr.f32.gmra.mrb[0].mxu0 %v442
    %v658 = vpop.f32.mrb[0].mxu0
    %v659 = vadd.f32 0.0, %v658
    %v660 = vpop.f32.mrb[0].mxu0
    %661 = vmatprep.mubr.f32.mxu0 0.0
    %662 = vmatmul.mubr.f32.gmra.mrb[0].mxu0 %v445
    %v663 = vpop.f32.mrb[0].mxu0
    %v664 = vadd.f32 0.0, %v663
    %v665 = vpop.f32.mrb[0].mxu0
    %666 = vmatprep.mubr.f32.mxu0 0.0
    %667 = vmatmul.mubr.f32.gmra.mrb[0].mxu0 %v448
    %v668 = vpop.f32.mrb[0].mxu0
    %v669 = vadd.f32 0.0, %v668
    %v670 = vpop.f32.mrb[0].mxu0
    %671 = vmatprep.mubr.f32.mxu0 0.0
    %672 = vmatmul.mubr.f32.gmra.mrb[0].mxu0 %v451
    %v673 = vpop.f32.mrb[0].mxu0
    %v674 = vadd.f32 0.0, %v673
    %v675 = vpop.f32.mrb[0].mxu0
    %676 = vmatprep.mubr.f32.mxu0 0.0
    %677 = vmatmul.mubr.f32.gmra.mrb[0].mxu0 %v454
    %v678 = vpop.f32.mrb[0].mxu0
    %v679 = vadd.f32 0.0, %v678
    %v680 = vpop.f32.mrb[0].mxu0
    %681 = vmatprep.mubr.f32.mxu0 0.0
    %682 = vmatmul.mubr.f32.gmra.mrb[0].mxu0 %v457
    %v683 = vpop.f32.mrb[0].mxu0
    %v684 = vadd.f32 0.0, %v683
    %v685 = vpop.f32.mrb[0].mxu0
    %686 = vdwg.mxu0
    %v688 = vsel %vm28, %v297, 0
    %v691 = vsel %vm28, %v298, 0
    %v694 = vsel %vm28, %v299, 0
    %v697 = vsel %vm28, %v300, 0
    %v700 = vsel %vm28, %v301, 0
    %v703 = vsel %vm28, %v302, 0
    %v706 = vsel %vm28, %v303, 0
    %v709 = vsel %vm28, %v304, 0
    %v712 = vsel %vm28, %v305, 0
    %v715 = vsel %vm28, %v306, 0
    %v718 = vsel %vm28, %v307, 0
    %v721 = vsel %vm28, %v308, 0
    %v724 = vsel %vm28, %v309, 0
    %v727 = vsel %vm28, %v310, 0
    %v730 = vsel %vm28, %v311, 0
    %v733 = vsel %vm28, %v312, 0
    %v736 = vsel %vm28, %v313, 0
    %v739 = vsel %vm28, %v314, 0
    %v742 = vsel %vm28, %v315, 0
    %v745 = vsel %vm28, %v316, 0
    %v748 = vsel %vm28, %v317, 0
    %v751 = vsel %vm28, %v318, 0
    %v754 = vsel %vm28, %v319, 0
    %v757 = vsel %vm28, %v320, 0
    %v760 = vsel %vm28, %v321, 0
    %v763 = vsel %vm28, %v322, 0
    %v766 = vsel %vm28, %v323, 0
    %v769 = vsel %vm28, %v324, 0
    %v772 = vsel %vm28, %v325, 0
    %v775 = vsel %vm28, %v326, 0
    %v778 = vsel %vm28, %v327, 0
    %v781 = vsel %vm28, %v328, 0
    %v784 = vsel %vm109, %v329, 0
    %786 = vmatprep.subr.mxu0 0.0
    %787 = vmatpush1.msra.mxu0 %v784
    %788 = vmatprep.subr.mxu0 0.0
    %789 = vmatpush1.msra.mxu0 0.0
    %790 = vmatprep.subr.mxu0 0.0
    %791 = vmatpush1.msra.mxu0 0.0
    %792 = vmatprep.subr.mxu0 0.0
    %793 = vmatpush1.msra.mxu0 0.0
    %794 = vmatprep.subr.mxu0 0.0
    %795 = vmatpush1.msra.mxu0 0.0
    %796 = vmatprep.subr.mxu0 0.0
    %797 = vmatpush1.msra.mxu0 0.0
    %798 = vmatprep.subr.mxu0 0.0
    %799 = vmatpush1.msra.mxu0 0.0
    %800 = vmatprep.subr.mxu0 0.0
    %801 = vmatpush1.msra.mxu0 0.0
    %802 = vmatprep.subr.mxu0 0.0
    %803 = vmatpush1.msra.mxu0 0.0
    %804 = vmatprep.subr.mxu0 0.0
    %805 = vmatpush1.msra.mxu0 0.0
    %806 = vmatprep.subr.mxu0 0.0
    %807 = vmatpush1.msra.mxu0 0.0
    %808 = vmatprep.subr.mxu0 0.0
    %809 = vmatpush1.msra.mxu0 0.0
    %810 = vmatprep.subr.mxu0 0.0
    %811 = vmatpush1.msra.mxu0 0.0
    %812 = vmatprep.subr.mxu0 0.0
    %813 = vmatpush1.msra.mxu0 0.0
    %814 = vmatprep.subr.mxu0 0.0
    %815 = vmatpush1.msra.mxu0 0.0
    %816 = vmatprep.subr.mxu0 0.0
    %817 = vmatpush1.msra.mxu0 0.0
    %818 = vmatprep.subr.mxu0 0.0
    %819 = vmatpush1.msra.mxu0 0.0
    %820 = vmatprep.subr.mxu0 0.0
    %821 = vmatpush1.msra.mxu0 0.0
    %822 = vmatprep.subr.mxu0 0.0
    %823 = vmatpush1.msra.mxu0 0.0
    %824 = vmatprep.subr.mxu0 0.0
    %825 = vmatpush1.msra.mxu0 0.0
    %826 = vmatprep.subr.mxu0 0.0
    %827 = vmatpush1.msra.mxu0 0.0
    %828 = vmatprep.subr.mxu0 0.0
    %829 = vmatpush1.msra.mxu0 0.0
    %830 = vmatprep.subr.mxu0 0.0
    %831 = vmatpush1.msra.mxu0 0.0
    %832 = vmatprep.subr.mxu0 0.0
    %833 = vmatpush1.msra.mxu0 0.0
    %834 = vmatprep.subr.mxu0 0.0
    %835 = vmatpush1.msra.mxu0 0.0
    %836 = vmatprep.subr.mxu0 0.0
    %837 = vmatpush1.msra.mxu0 0.0
    %838 = vmatprep.subr.mxu0 0.0
    %839 = vmatpush1.msra.mxu0 0.0
    %840 = vmatprep.subr.mxu0 0.0
    %841 = vmatpush1.msra.mxu0 0.0
    %842 = vmatprep.subr.mxu0 0.0
    %843 = vmatpush1.msra.mxu0 0.0
    %844 = vmatprep.subr.mxu0 0.0
    %845 = vmatpush1.msra.mxu0 0.0
    %846 = vmatprep.subr.mxu0 0.0
    %847 = vmatpush1.msra.mxu0 0.0
    %848 = vmatprep.subr.mxu0 0.0
    %849 = vmatpush1.msra.mxu0 0.0
    %850 = vmatprep.mubr.f32.mxu0 0.0
    %851 = vmatmul.mubr.f32.gmra.mrb[0].mxu0 %v688
    %v852 = vpop.f32.mrb[0].mxu0
    %v853 = vadd.f32 %v529, %v852
    %v854 = vpop.f32.mrb[0].mxu0
    %855 = vmatprep.mubr.f32.mxu0 0.0
    %856 = vmatmul.mubr.f32.gmra.mrb[0].mxu0 %v691
    %v857 = vpop.f32.mrb[0].mxu0
    %v858 = vadd.f32 %v534, %v857
    %v859 = vpop.f32.mrb[0].mxu0
    %860 = vmatprep.mubr.f32.mxu0 0.0
    %861 = vmatmul.mubr.f32.gmra.mrb[0].mxu0 %v694
    %v862 = vpop.f32.mrb[0].mxu0
    %v863 = vadd.f32 %v539, %v862
    %v864 = vpop.f32.mrb[0].mxu0
    %865 = vmatprep.mubr.f32.mxu0 0.0
    %866 = vmatmul.mubr.f32.gmra.mrb[0].mxu0 %v697
    %v867 = vpop.f32.mrb[0].mxu0
    %v868 = vadd.f32 %v544, %v867
    %v869 = vpop.f32.mrb[0].mxu0
    %870 = vmatprep.mubr.f32.mxu0 0.0
    %871 = vmatmul.mubr.f32.gmra.mrb[0].mxu0 %v700
    %v872 = vpop.f32.mrb[0].mxu0
    %v873 = vadd.f32 %v549, %v872
    %v874 = vpop.f32.mrb[0].mxu0
    %875 = vmatprep.mubr.f32.mxu0 0.0
    %876 = vmatmul.mubr.f32.gmra.mrb[0].mxu0 %v703
    %v877 = vpop.f32.mrb[0].mxu0
    %v878 = vadd.f32 %v554, %v877
    %v879 = vpop.f32.mrb[0].mxu0
    %880 = vmatprep.mubr.f32.mxu0 0.0
    %881 = vmatmul.mubr.f32.gmra.mrb[0].mxu0 %v706
    %v882 = vpop.f32.mrb[0].mxu0
    %v883 = vadd.f32 %v559, %v882
    %v884 = vpop.f32.mrb[0].mxu0
    %885 = vmatprep.mubr.f32.mxu0 0.0
    %886 = vmatmul.mubr.f32.gmra.mrb[0].mxu0 %v709
    %v887 = vpop.f32.mrb[0].mxu0
    %v888 = vadd.f32 %v564, %v887
    %v889 = vpop.f32.mrb[0].mxu0
    %890 = vmatprep.mubr.f32.mxu0 0.0
    %891 = vmatmul.mubr.f32.gmra.mrb[0].mxu0 %v712
    %v892 = vpop.f32.mrb[0].mxu0
    %v893 = vadd.f32 %v569, %v892
    %v894 = vpop.f32.mrb[0].mxu0
    %895 = vmatprep.mubr.f32.mxu0 0.0
    %896 = vmatmul.mubr.f32.gmra.mrb[0].mxu0 %v715
    %v897 = vpop.f32.mrb[0].mxu0
    %v898 = vadd.f32 %v574, %v897
    %v899 = vpop.f32.mrb[0].mxu0
    %900 = vmatprep.mubr.f32.mxu0 0.0
    %901 = vmatmul.mubr.f32.gmra.mrb[0].mxu0 %v718
    %v902 = vpop.f32.mrb[0].mxu0
    %v903 = vadd.f32 %v579, %v902
    %v904 = vpop.f32.mrb[0].mxu0
    %905 = vmatprep.mubr.f32.mxu0 0.0
    %906 = vmatmul.mubr.f32.gmra.mrb[0].mxu0 %v721
    %v907 = vpop.f32.mrb[0].mxu0
    %v908 = vadd.f32 %v584, %v907
    %v909 = vpop.f32.mrb[0].mxu0
    %910 = vmatprep.mubr.f32.mxu0 0.0
    %911 = vmatmul.mubr.f32.gmra.mrb[0].mxu0 %v724
    %v912 = vpop.f32.mrb[0].mxu0
    %v913 = vadd.f32 %v589, %v912
    %v914 = vpop.f32.mrb[0].mxu0
    %915 = vmatprep.mubr.f32.mxu0 0.0
    %916 = vmatmul.mubr.f32.gmra.mrb[0].mxu0 %v727
    %v917 = vpop.f32.mrb[0].mxu0
    %v918 = vadd.f32 %v594, %v917
    %v919 = vpop.f32.mrb[0].mxu0
    %920 = vmatprep.mubr.f32.mxu0 0.0
    %921 = vmatmul.mubr.f32.gmra.mrb[0].mxu0 %v730
    %v922 = vpop.f32.mrb[0].mxu0
    %v923 = vadd.f32 %v599, %v922
    %v924 = vpop.f32.mrb[0].mxu0
    %925 = vmatprep.mubr.f32.mxu0 0.0
    %926 = vmatmul.mubr.f32.gmra.mrb[0].mxu0 %v733
    %v927 = vpop.f32.mrb[0].mxu0
    %v928 = vadd.f32 %v604, %v927
    %v929 = vpop.f32.mrb[0].mxu0
    %930 = vmatprep.mubr.f32.mxu0 0.0
    %931 = vmatmul.mubr.f32.gmra.mrb[0].mxu0 %v736
    %v932 = vpop.f32.mrb[0].mxu0
    %v933 = vadd.f32 %v609, %v932
    %v934 = vpop.f32.mrb[0].mxu0
    %935 = vmatprep.mubr.f32.mxu0 0.0
    %936 = vmatmul.mubr.f32.gmra.mrb[0].mxu0 %v739
    %v937 = vpop.f32.mrb[0].mxu0
    %v938 = vadd.f32 %v614, %v937
    %v939 = vpop.f32.mrb[0].mxu0
    %940 = vmatprep.mubr.f32.mxu0 0.0
    %941 = vmatmul.mubr.f32.gmra.mrb[0].mxu0 %v742
    %v942 = vpop.f32.mrb[0].mxu0
    %v943 = vadd.f32 %v619, %v942
    %v944 = vpop.f32.mrb[0].mxu0
    %945 = vmatprep.mubr.f32.mxu0 0.0
    %946 = vmatmul.mubr.f32.gmra.mrb[0].mxu0 %v745
    %v947 = vpop.f32.mrb[0].mxu0
    %v948 = vadd.f32 %v624, %v947
    %v949 = vpop.f32.mrb[0].mxu0
    %950 = vmatprep.mubr.f32.mxu0 0.0
    %951 = vmatmul.mubr.f32.gmra.mrb[0].mxu0 %v748
    %v952 = vpop.f32.mrb[0].mxu0
    %v953 = vadd.f32 %v629, %v952
    %v954 = vpop.f32.mrb[0].mxu0
    %955 = vmatprep.mubr.f32.mxu0 0.0
    %956 = vmatmul.mubr.f32.gmra.mrb[0].mxu0 %v751
    %v957 = vpop.f32.mrb[0].mxu0
    %v958 = vadd.f32 %v634, %v957
    %v959 = vpop.f32.mrb[0].mxu0
    %960 = vmatprep.mubr.f32.mxu0 0.0
    %961 = vmatmul.mubr.f32.gmra.mrb[0].mxu0 %v754
    %v962 = vpop.f32.mrb[0].mxu0
    %v963 = vadd.f32 %v639, %v962
    %v964 = vpop.f32.mrb[0].mxu0
    %965 = vmatprep.mubr.f32.mxu0 0.0
    %966 = vmatmul.mubr.f32.gmra.mrb[0].mxu0 %v757
    %v967 = vpop.f32.mrb[0].mxu0
    %v968 = vadd.f32 %v644, %v967
    %v969 = vpop.f32.mrb[0].mxu0
    %970 = vmatprep.mubr.f32.mxu0 0.0
    %971 = vmatmul.mubr.f32.gmra.mrb[0].mxu0 %v760
    %v972 = vpop.f32.mrb[0].mxu0
    %v973 = vadd.f32 %v649, %v972
    %v974 = vpop.f32.mrb[0].mxu0
    %975 = vmatprep.mubr.f32.mxu0 0.0
    %976 = vmatmul.mubr.f32.gmra.mrb[0].mxu0 %v763
    %v977 = vpop.f32.mrb[0].mxu0
    %v978 = vadd.f32 %v654, %v977
    %v979 = vpop.f32.mrb[0].mxu0
    %980 = vmatprep.mubr.f32.mxu0 0.0
    %981 = vmatmul.mubr.f32.gmra.mrb[0].mxu0 %v766
    %v982 = vpop.f32.mrb[0].mxu0
    %v983 = vadd.f32 %v659, %v982
    %v984 = vpop.f32.mrb[0].mxu0
    %985 = vmatprep.mubr.f32.mxu0 0.0
    %986 = vmatmul.mubr.f32.gmra.mrb[0].mxu0 %v769
    %v987 = vpop.f32.mrb[0].mxu0
    %v988 = vadd.f32 %v664, %v987
    %v989 = vpop.f32.mrb[0].mxu0
    %990 = vmatprep.mubr.f32.mxu0 0.0
    %991 = vmatmul.mubr.f32.gmra.mrb[0].mxu0 %v772
    %v992 = vpop.f32.mrb[0].mxu0
    %v993 = vadd.f32 %v669, %v992
    %v994 = vpop.f32.mrb[0].mxu0
    %995 = vmatprep.mubr.f32.mxu0 0.0
    %996 = vmatmul.mubr.f32.gmra.mrb[0].mxu0 %v775
    %v997 = vpop.f32.mrb[0].mxu0
    %v998 = vadd.f32 %v674, %v997
    %v999 = vpop.f32.mrb[0].mxu0
    %1000 = vmatprep.mubr.f32.mxu0 0.0
    %1001 = vmatmul.mubr.f32.gmra.mrb[0].mxu0 %v778
    %v1002 = vpop.f32.mrb[0].mxu0
    %v1003 = vadd.f32 %v679, %v1002
    %v1004 = vpop.f32.mrb[0].mxu0
    %1005 = vmatprep.mubr.f32.mxu0 0.0
    %1006 = vmatmul.mubr.f32.gmra.mrb[0].mxu0 %v781
    %v1007 = vpop.f32.mrb[0].mxu0
    %v1008 = vadd.f32 %v684, %v1007
    %v1009 = vpop.f32.mrb[0].mxu0
    %1010 = vdwg.mxu0
    %v1011 = vld [vmem:[#allocation2 + $0x2] sm:$0xff]
    %v1012 = vld [vmem:[#allocation2 + $0xa] sm:$0xff]
    %v1013 = vld [vmem:[#allocation2 + $0x12] sm:$0xff]
    %v1014 = vld [vmem:[#allocation2 + $0x1a] sm:$0xff]
    %v1015 = vld [vmem:[#allocation2 + $0x22] sm:$0xff]
    %v1016 = vld [vmem:[#allocation2 + $0x2a] sm:$0xff]
    %v1017 = vld [vmem:[#allocation2 + $0x32] sm:$0xff]
    %v1018 = vld [vmem:[#allocation2 + $0x3a] sm:$0xff]
    %v1019 = vld [vmem:[#allocation2 + $0x42] sm:$0xff]
    %v1020 = vld [vmem:[#allocation2 + $0x4a] sm:$0xff]
    %v1021 = vld [vmem:[#allocation2 + $0x52] sm:$0xff]
    %v1022 = vld [vmem:[#allocation2 + $0x5a] sm:$0xff]
    %v1023 = vld [vmem:[#allocation2 + $0x62] sm:$0xff]
    %v1024 = vld [vmem:[#allocation2 + $0x6a] sm:$0xff]
    %v1025 = vld [vmem:[#allocation2 + $0x72] sm:$0xff]
    %v1026 = vld [vmem:[#allocation2 + $0x7a] sm:$0xff]
    %v1027 = vld [vmem:[#allocation2 + $0x82] sm:$0xff]
    %v1028 = vld [vmem:[#allocation2 + $0x8a] sm:$0xff]
    %v1029 = vld [vmem:[#allocation2 + $0x92] sm:$0xff]
    %v1030 = vld [vmem:[#allocation2 + $0x9a] sm:$0xff]
    %v1031 = vld [vmem:[#allocation2 + $0xa2] sm:$0xff]
    %v1032 = vld [vmem:[#allocation2 + $0xaa] sm:$0xff]
    %v1033 = vld [vmem:[#allocation2 + $0xb2] sm:$0xff]
    %v1034 = vld [vmem:[#allocation2 + $0xba] sm:$0xff]
    %v1035 = vld [vmem:[#allocation2 + $0xc2] sm:$0xff]
    %v1036 = vld [vmem:[#allocation2 + $0xca] sm:$0xff]
    %v1037 = vld [vmem:[#allocation2 + $0xd2] sm:$0xff]
    %v1038 = vld [vmem:[#allocation2 + $0xda] sm:$0xff]
    %v1039 = vld [vmem:[#allocation2 + $0xe2] sm:$0xff]
    %v1040 = vld [vmem:[#allocation2 + $0xea] sm:$0xff]
    %v1041 = vld [vmem:[#allocation2 + $0xf2] sm:$0xff]
    %v1042 = vld [vmem:[#allocation2 + $0xfa] sm:$0xff]
    %v1043 = vld [vmem:[%s1 + $0x4] sm:$0x3]
    %v1045 = vsel %vm28, %v1011, 0
    %v1048 = vsel %vm28, %v1012, 0
    %v1051 = vsel %vm28, %v1013, 0
    %v1054 = vsel %vm28, %v1014, 0
    %v1057 = vsel %vm28, %v1015, 0
    %v1060 = vsel %vm28, %v1016, 0
    %v1063 = vsel %vm28, %v1017, 0
    %v1066 = vsel %vm28, %v1018, 0
    %v1069 = vsel %vm28, %v1019, 0
    %v1072 = vsel %vm28, %v1020, 0
    %v1075 = vsel %vm28, %v1021, 0
    %v1078 = vsel %vm28, %v1022, 0
    %v1081 = vsel %vm28, %v1023, 0
    %v1084 = vsel %vm28, %v1024, 0
    %v1087 = vsel %vm28, %v1025, 0
    %v1090 = vsel %vm28, %v1026, 0
    %v1093 = vsel %vm28, %v1027, 0
    %v1096 = vsel %vm28, %v1028, 0
    %v1099 = vsel %vm28, %v1029, 0
    %v1102 = vsel %vm28, %v1030, 0
    %v1105 = vsel %vm28, %v1031, 0
    %v1108 = vsel %vm28, %v1032, 0
    %v1111 = vsel %vm28, %v1033, 0
    %v1114 = vsel %vm28, %v1034, 0
    %v1117 = vsel %vm28, %v1035, 0
    %v1120 = vsel %vm28, %v1036, 0
    %v1123 = vsel %vm28, %v1037, 0
    %v1126 = vsel %vm28, %v1038, 0
    %v1129 = vsel %vm28, %v1039, 0
    %v1132 = vsel %vm28, %v1040, 0
    %v1135 = vsel %vm28, %v1041, 0
    %v1138 = vsel %vm28, %v1042, 0
    %v1141 = vsel %vm109, %v1043, 0
    %1143 = vmatprep.subr.mxu0 0.0
    %1144 = vmatpush1.msra.mxu0 %v1141
    %1145 = vmatprep.subr.mxu0 0.0
    %1146 = vmatpush1.msra.mxu0 0.0
    %1147 = vmatprep.subr.mxu0 0.0
    %1148 = vmatpush1.msra.mxu0 0.0
    %1149 = vmatprep.subr.mxu0 0.0
    %1150 = vmatpush1.msra.mxu0 0.0
    %1151 = vmatprep.subr.mxu0 0.0
    %1152 = vmatpush1.msra.mxu0 0.0
    %1153 = vmatprep.subr.mxu0 0.0
    %1154 = vmatpush1.msra.mxu0 0.0
    %1155 = vmatprep.subr.mxu0 0.0
    %1156 = vmatpush1.msra.mxu0 0.0
    %1157 = vmatprep.subr.mxu0 0.0
    %1158 = vmatpush1.msra.mxu0 0.0
    %1159 = vmatprep.subr.mxu0 0.0
    %1160 = vmatpush1.msra.mxu0 0.0
    %1161 = vmatprep.subr.mxu0 0.0
    %1162 = vmatpush1.msra.mxu0 0.0
    %1163 = vmatprep.subr.mxu0 0.0
    %1164 = vmatpush1.msra.mxu0 0.0
    %1165 = vmatprep.subr.mxu0 0.0
    %1166 = vmatpush1.msra.mxu0 0.0
    %1167 = vmatprep.subr.mxu0 0.0
    %1168 = vmatpush1.msra.mxu0 0.0
    %1169 = vmatprep.subr.mxu0 0.0
    %1170 = vmatpush1.msra.mxu0 0.0
    %1171 = vmatprep.subr.mxu0 0.0
    %1172 = vmatpush1.msra.mxu0 0.0
    %1173 = vmatprep.subr.mxu0 0.0
    %1174 = vmatpush1.msra.mxu0 0.0
    %1175 = vmatprep.subr.mxu0 0.0
    %1176 = vmatpush1.msra.mxu0 0.0
    %1177 = vmatprep.subr.mxu0 0.0
    %1178 = vmatpush1.msra.mxu0 0.0
    %1179 = vmatprep.subr.mxu0 0.0
    %1180 = vmatpush1.msra.mxu0 0.0
    %1181 = vmatprep.subr.mxu0 0.0
    %1182 = vmatpush1.msra.mxu0 0.0
    %1183 = vmatprep.subr.mxu0 0.0
    %1184 = vmatpush1.msra.mxu0 0.0
    %1185 = vmatprep.subr.mxu0 0.0
    %1186 = vmatpush1.msra.mxu0 0.0
    %1187 = vmatprep.subr.mxu0 0.0
    %1188 = vmatpush1.msra.mxu0 0.0
    %1189 = vmatprep.subr.mxu0 0.0
    %1190 = vmatpush1.msra.mxu0 0.0
    %1191 = vmatprep.subr.mxu0 0.0
    %1192 = vmatpush1.msra.mxu0 0.0
    %1193 = vmatprep.subr.mxu0 0.0
    %1194 = vmatpush1.msra.mxu0 0.0
    %1195 = vmatprep.subr.mxu0 0.0
    %1196 = vmatpush1.msra.mxu0 0.0
    %1197 = vmatprep.subr.mxu0 0.0
    %1198 = vmatpush1.msra.mxu0 0.0
    %1199 = vmatprep.subr.mxu0 0.0
    %1200 = vmatpush1.msra.mxu0 0.0
    %1201 = vmatprep.subr.mxu0 0.0
    %1202 = vmatpush1.msra.mxu0 0.0
    %1203 = vmatprep.subr.mxu0 0.0
    %1204 = vmatpush1.msra.mxu0 0.0
    %1205 = vmatprep.subr.mxu0 0.0
    %1206 = vmatpush1.msra.mxu0 0.0
    %1207 = vmatprep.mubr.f32.mxu0 0.0
    %1208 = vmatmul.mubr.f32.gmra.mrb[0].mxu0 %v1045
    %v1209 = vpop.f32.mrb[0].mxu0
    %v1210 = vadd.f32 0.0, %v1209
    %v1211 = vpop.f32.mrb[0].mxu0
    %1212 = vmatprep.mubr.f32.mxu0 0.0
    %1213 = vmatmul.mubr.f32.gmra.mrb[0].mxu0 %v1048
    %v1214 = vpop.f32.mrb[0].mxu0
    %v1215 = vadd.f32 0.0, %v1214
    %v1216 = vpop.f32.mrb[0].mxu0
    %1217 = vmatprep.mubr.f32.mxu0 0.0
    %1218 = vmatmul.mubr.f32.gmra.mrb[0].mxu0 %v1051
    %v1219 = vpop.f32.mrb[0].mxu0
    %v1220 = vadd.f32 0.0, %v1219
    %v1221 = vpop.f32.mrb[0].mxu0
    %1222 = vmatprep.mubr.f32.mxu0 0.0
    %1223 = vmatmul.mubr.f32.gmra.mrb[0].mxu0 %v1054
    %v1224 = vpop.f32.mrb[0].mxu0
    %v1225 = vadd.f32 0.0, %v1224
    %v1226 = vpop.f32.mrb[0].mxu0
    %1227 = vmatprep.mubr.f32.mxu0 0.0
    %1228 = vmatmul.mubr.f32.gmra.mrb[0].mxu0 %v1057
    %v1229 = vpop.f32.mrb[0].mxu0
    %v1230 = vadd.f32 0.0, %v1229
    %v1231 = vpop.f32.mrb[0].mxu0
    %1232 = vmatprep.mubr.f32.mxu0 0.0
    %1233 = vmatmul.mubr.f32.gmra.mrb[0].mxu0 %v1060
    %v1234 = vpop.f32.mrb[0].mxu0
    %v1235 = vadd.f32 0.0, %v1234
    %v1236 = vpop.f32.mrb[0].mxu0
    %1237 = vmatprep.mubr.f32.mxu0 0.0
    %1238 = vmatmul.mubr.f32.gmra.mrb[0].mxu0 %v1063
    %v1239 = vpop.f32.mrb[0].mxu0
    %v1240 = vadd.f32 0.0, %v1239
    %v1241 = vpop.f32.mrb[0].mxu0
    %1242 = vmatprep.mubr.f32.mxu0 0.0
    %1243 = vmatmul.mubr.f32.gmra.mrb[0].mxu0 %v1066
    %v1244 = vpop.f32.mrb[0].mxu0
    %v1245 = vadd.f32 0.0, %v1244
    %v1246 = vpop.f32.mrb[0].mxu0
    %1247 = vmatprep.mubr.f32.mxu0 0.0
    %1248 = vmatmul.mubr.f32.gmra.mrb[0].mxu0 %v1069
    %v1249 = vpop.f32.mrb[0].mxu0
    %v1250 = vadd.f32 0.0, %v1249
    %v1251 = vpop.f32.mrb[0].mxu0
    %1252 = vmatprep.mubr.f32.mxu0 0.0
    %1253 = vmatmul.mubr.f32.gmra.mrb[0].mxu0 %v1072
    %v1254 = vpop.f32.mrb[0].mxu0
    %v1255 = vadd.f32 0.0, %v1254
    %v1256 = vpop.f32.mrb[0].mxu0
    %1257 = vmatprep.mubr.f32.mxu0 0.0
    %1258 = vmatmul.mubr.f32.gmra.mrb[0].mxu0 %v1075
    %v1259 = vpop.f32.mrb[0].mxu0
    %v1260 = vadd.f32 0.0, %v1259
    %v1261 = vpop.f32.mrb[0].mxu0
    %1262 = vmatprep.mubr.f32.mxu0 0.0
    %1263 = vmatmul.mubr.f32.gmra.mrb[0].mxu0 %v1078
    %v1264 = vpop.f32.mrb[0].mxu0
    %v1265 = vadd.f32 0.0, %v1264
    %v1266 = vpop.f32.mrb[0].mxu0
    %1267 = vmatprep.mubr.f32.mxu0 0.0
    %1268 = vmatmul.mubr.f32.gmra.mrb[0].mxu0 %v1081
    %v1269 = vpop.f32.mrb[0].mxu0
    %v1270 = vadd.f32 0.0, %v1269
    %v1271 = vpop.f32.mrb[0].mxu0
    %1272 = vmatprep.mubr.f32.mxu0 0.0
    %1273 = vmatmul.mubr.f32.gmra.mrb[0].mxu0 %v1084
    %v1274 = vpop.f32.mrb[0].mxu0
    %v1275 = vadd.f32 0.0, %v1274
    %v1276 = vpop.f32.mrb[0].mxu0
    %1277 = vmatprep.mubr.f32.mxu0 0.0
    %1278 = vmatmul.mubr.f32.gmra.mrb[0].mxu0 %v1087
    %v1279 = vpop.f32.mrb[0].mxu0
    %v1280 = vadd.f32 0.0, %v1279
    %v1281 = vpop.f32.mrb[0].mxu0
    %1282 = vmatprep.mubr.f32.mxu0 0.0
    %1283 = vmatmul.mubr.f32.gmra.mrb[0].mxu0 %v1090
    %v1284 = vpop.f32.mrb[0].mxu0
    %v1285 = vadd.f32 0.0, %v1284
    %v1286 = vpop.f32.mrb[0].mxu0
    %1287 = vmatprep.mubr.f32.mxu0 0.0
    %1288 = vmatmul.mubr.f32.gmra.mrb[0].mxu0 %v1093
    %v1289 = vpop.f32.mrb[0].mxu0
    %v1290 = vadd.f32 0.0, %v1289
    %v1291 = vpop.f32.mrb[0].mxu0
    %1292 = vmatprep.mubr.f32.mxu0 0.0
    %1293 = vmatmul.mubr.f32.gmra.mrb[0].mxu0 %v1096
    %v1294 = vpop.f32.mrb[0].mxu0
    %v1295 = vadd.f32 0.0, %v1294
    %v1296 = vpop.f32.mrb[0].mxu0
    %1297 = vmatprep.mubr.f32.mxu0 0.0
    %1298 = vmatmul.mubr.f32.gmra.mrb[0].mxu0 %v1099
    %v1299 = vpop.f32.mrb[0].mxu0
    %v1300 = vadd.f32 0.0, %v1299
    %v1301 = vpop.f32.mrb[0].mxu0
    %1302 = vmatprep.mubr.f32.mxu0 0.0
    %1303 = vmatmul.mubr.f32.gmra.mrb[0].mxu0 %v1102
    %v1304 = vpop.f32.mrb[0].mxu0
    %v1305 = vadd.f32 0.0, %v1304
    %v1306 = vpop.f32.mrb[0].mxu0
    %1307 = vmatprep.mubr.f32.mxu0 0.0
    %1308 = vmatmul.mubr.f32.gmra.mrb[0].mxu0 %v1105
    %v1309 = vpop.f32.mrb[0].mxu0
    %v1310 = vadd.f32 0.0, %v1309
    %v1311 = vpop.f32.mrb[0].mxu0
    %1312 = vmatprep.mubr.f32.mxu0 0.0
    %1313 = vmatmul.mubr.f32.gmra.mrb[0].mxu0 %v1108
    %v1314 = vpop.f32.mrb[0].mxu0
    %v1315 = vadd.f32 0.0, %v1314
    %v1316 = vpop.f32.mrb[0].mxu0
    %1317 = vmatprep.mubr.f32.mxu0 0.0
    %1318 = vmatmul.mubr.f32.gmra.mrb[0].mxu0 %v1111
    %v1319 = vpop.f32.mrb[0].mxu0
    %v1320 = vadd.f32 0.0, %v1319
    %v1321 = vpop.f32.mrb[0].mxu0
    %1322 = vmatprep.mubr.f32.mxu0 0.0
    %1323 = vmatmul.mubr.f32.gmra.mrb[0].mxu0 %v1114
    %v1324 = vpop.f32.mrb[0].mxu0
    %v1325 = vadd.f32 0.0, %v1324
    %v1326 = vpop.f32.mrb[0].mxu0
    %1327 = vmatprep.mubr.f32.mxu0 0.0
    %1328 = vmatmul.mubr.f32.gmra.mrb[0].mxu0 %v1117
    %v1329 = vpop.f32.mrb[0].mxu0
    %v1330 = vadd.f32 0.0, %v1329
    %v1331 = vpop.f32.mrb[0].mxu0
    %1332 = vmatprep.mubr.f32.mxu0 0.0
    %1333 = vmatmul.mubr.f32.gmra.mrb[0].mxu0 %v1120
    %v1334 = vpop.f32.mrb[0].mxu0
    %v1335 = vadd.f32 0.0, %v1334
    %v1336 = vpop.f32.mrb[0].mxu0
    %1337 = vmatprep.mubr.f32.mxu0 0.0
    %1338 = vmatmul.mubr.f32.gmra.mrb[0].mxu0 %v1123
    %v1339 = vpop.f32.mrb[0].mxu0
    %v1340 = vadd.f32 0.0, %v1339
    %v1341 = vpop.f32.mrb[0].mxu0
    %1342 = vmatprep.mubr.f32.mxu0 0.0
    %1343 = vmatmul.mubr.f32.gmra.mrb[0].mxu0 %v1126
    %v1344 = vpop.f32.mrb[0].mxu0
    %v1345 = vadd.f32 0.0, %v1344
    %v1346 = vpop.f32.mrb[0].mxu0
    %1347 = vmatprep.mubr.f32.mxu0 0.0
    %1348 = vmatmul.mubr.f32.gmra.mrb[0].mxu0 %v1129
    %v1349 = vpop.f32.mrb[0].mxu0
    %v1350 = vadd.f32 0.0, %v1349
    %v1351 = vpop.f32.mrb[0].mxu0
    %1352 = vmatprep.mubr.f32.mxu0 0.0
    %1353 = vmatmul.mubr.f32.gmra.mrb[0].mxu0 %v1132
    %v1354 = vpop.f32.mrb[0].mxu0
    %v1355 = vadd.f32 0.0, %v1354
    %v1356 = vpop.f32.mrb[0].mxu0
    %1357 = vmatprep.mubr.f32.mxu0 0.0
    %1358 = vmatmul.mubr.f32.gmra.mrb[0].mxu0 %v1135
    %v1359 = vpop.f32.mrb[0].mxu0
    %v1360 = vadd.f32 0.0, %v1359
    %v1361 = vpop.f32.mrb[0].mxu0
    %1362 = vmatprep.mubr.f32.mxu0 0.0
    %1363 = vmatmul.mubr.f32.gmra.mrb[0].mxu0 %v1138
    %v1364 = vpop.f32.mrb[0].mxu0
    %v1365 = vadd.f32 0.0, %v1364
    %v1366 = vpop.f32.mrb[0].mxu0
    %1367 = vdwg.mxu0
    %v1368 = vadd.f32 %v853, %v1210
    %v1369 = vadd.f32 %v858, %v1215
    %v1370 = vadd.f32 %v863, %v1220
    %v1371 = vadd.f32 %v868, %v1225
    %v1372 = vadd.f32 %v873, %v1230
    %v1373 = vadd.f32 %v878, %v1235
    %v1374 = vadd.f32 %v883, %v1240
    %v1375 = vadd.f32 %v888, %v1245
    %v1376 = vadd.f32 %v893, %v1250
    %v1377 = vadd.f32 %v898, %v1255
    %v1378 = vadd.f32 %v903, %v1260
    %v1379 = vadd.f32 %v908, %v1265
    %v1380 = vadd.f32 %v913, %v1270
    %v1381 = vadd.f32 %v918, %v1275
    %v1382 = vadd.f32 %v923, %v1280
    %v1383 = vadd.f32 %v928, %v1285
    %v1384 = vadd.f32 %v933, %v1290
    %v1385 = vadd.f32 %v938, %v1295
    %v1386 = vadd.f32 %v943, %v1300
    %v1387 = vadd.f32 %v948, %v1305
    %v1388 = vadd.f32 %v953, %v1310
    %v1389 = vadd.f32 %v958, %v1315
    %v1390 = vadd.f32 %v963, %v1320
    %v1391 = vadd.f32 %v968, %v1325
    %v1392 = vadd.f32 %v973, %v1330
    %v1393 = vadd.f32 %v978, %v1335
    %v1394 = vadd.f32 %v983, %v1340
    %v1395 = vadd.f32 %v988, %v1345
    %v1396 = vadd.f32 %v993, %v1350
    %v1397 = vadd.f32 %v998, %v1355
    %v1398 = vadd.f32 %v1003, %v1360
    %v1399 = vadd.f32 %v1008, %v1365
    %v1400 = vld [vmem:[#allocation2 + $0x3] sm:$0xff]
    %v1401 = vld [vmem:[#allocation2 + $0xb] sm:$0xff]
    %v1402 = vld [vmem:[#allocation2 + $0x13] sm:$0xff]
    %v1403 = vld [vmem:[#allocation2 + $0x1b] sm:$0xff]
    %v1404 = vld [vmem:[#allocation2 + $0x23] sm:$0xff]
    %v1405 = vld [vmem:[#allocation2 + $0x2b] sm:$0xff]
    %v1406 = vld [vmem:[#allocation2 + $0x33] sm:$0xff]
    %v1407 = vld [vmem:[#allocation2 + $0x3b] sm:$0xff]
    %v1408 = vld [vmem:[#allocation2 + $0x43] sm:$0xff]
    %v1409 = vld [vmem:[#allocation2 + $0x4b] sm:$0xff]
    %v1410 = vld [vmem:[#allocation2 + $0x53] sm:$0xff]
    %v1411 = vld [vmem:[#allocation2 + $0x5b] sm:$0xff]
    %v1412 = vld [vmem:[#allocation2 + $0x63] sm:$0xff]
    %v1413 = vld [vmem:[#allocation2 + $0x6b] sm:$0xff]
    %v1414 = vld [vmem:[#allocation2 + $0x73] sm:$0xff]
    %v1415 = vld [vmem:[#allocation2 + $0x7b] sm:$0xff]
    %v1416 = vld [vmem:[#allocation2 + $0x83] sm:$0xff]
    %v1417 = vld [vmem:[#allocation2 + $0x8b] sm:$0xff]
    %v1418 = vld [vmem:[#allocation2 + $0x93] sm:$0xff]
    %v1419 = vld [vmem:[#allocation2 + $0x9b] sm:$0xff]
    %v1420 = vld [vmem:[#allocation2 + $0xa3] sm:$0xff]
    %v1421 = vld [vmem:[#allocation2 + $0xab] sm:$0xff]
    %v1422 = vld [vmem:[#allocation2 + $0xb3] sm:$0xff]
    %v1423 = vld [vmem:[#allocation2 + $0xbb] sm:$0xff]
    %v1424 = vld [vmem:[#allocation2 + $0xc3] sm:$0xff]
    %v1425 = vld [vmem:[#allocation2 + $0xcb] sm:$0xff]
    %v1426 = vld [vmem:[#allocation2 + $0xd3] sm:$0xff]
    %v1427 = vld [vmem:[#allocation2 + $0xdb] sm:$0xff]
    %v1428 = vld [vmem:[#allocation2 + $0xe3] sm:$0xff]
    %v1429 = vld [vmem:[#allocation2 + $0xeb] sm:$0xff]
    %v1430 = vld [vmem:[#allocation2 + $0xf3] sm:$0xff]
    %v1431 = vld [vmem:[#allocation2 + $0xfb] sm:$0xff]
    %v1432 = vld [vmem:[%s1 + $0x6] sm:$0x3]
    %v1434 = vsel %vm28, %v1400, 0
    %v1437 = vsel %vm28, %v1401, 0
    %v1440 = vsel %vm28, %v1402, 0
    %v1443 = vsel %vm28, %v1403, 0
    %v1446 = vsel %vm28, %v1404, 0
    %v1449 = vsel %vm28, %v1405, 0
    %v1452 = vsel %vm28, %v1406, 0
    %v1455 = vsel %vm28, %v1407, 0
    %v1458 = vsel %vm28, %v1408, 0
    %v1461 = vsel %vm28, %v1409, 0
    %v1464 = vsel %vm28, %v1410, 0
    %v1467 = vsel %vm28, %v1411, 0
    %v1470 = vsel %vm28, %v1412, 0
    %v1473 = vsel %vm28, %v1413, 0
    %v1476 = vsel %vm28, %v1414, 0
    %v1479 = vsel %vm28, %v1415, 0
    %v1482 = vsel %vm28, %v1416, 0
    %v1485 = vsel %vm28, %v1417, 0
    %v1488 = vsel %vm28, %v1418, 0
    %v1491 = vsel %vm28, %v1419, 0
    %v1494 = vsel %vm28, %v1420, 0
    %v1497 = vsel %vm28, %v1421, 0
    %v1500 = vsel %vm28, %v1422, 0
    %v1503 = vsel %vm28, %v1423, 0
    %v1506 = vsel %vm28, %v1424, 0
    %v1509 = vsel %vm28, %v1425, 0
    %v1512 = vsel %vm28, %v1426, 0
    %v1515 = vsel %vm28, %v1427, 0
    %v1518 = vsel %vm28, %v1428, 0
    %v1521 = vsel %vm28, %v1429, 0
    %v1524 = vsel %vm28, %v1430, 0
    %v1527 = vsel %vm28, %v1431, 0
    %v1530 = vsel %vm109, %v1432, 0
    %1532 = vmatprep.subr.mxu0 0.0
    %1533 = vmatpush1.msra.mxu0 %v1530
    %1534 = vmatprep.subr.mxu0 0.0
    %1535 = vmatpush1.msra.mxu0 0.0
    %1536 = vmatprep.subr.mxu0 0.0
    %1537 = vmatpush1.msra.mxu0 0.0
    %1538 = vmatprep.subr.mxu0 0.0
    %1539 = vmatpush1.msra.mxu0 0.0
    %1540 = vmatprep.subr.mxu0 0.0
    %1541 = vmatpush1.msra.mxu0 0.0
    %1542 = vmatprep.subr.mxu0 0.0
    %1543 = vmatpush1.msra.mxu0 0.0
    %1544 = vmatprep.subr.mxu0 0.0
    %1545 = vmatpush1.msra.mxu0 0.0
    %1546 = vmatprep.subr.mxu0 0.0
    %1547 = vmatpush1.msra.mxu0 0.0
    %1548 = vmatprep.subr.mxu0 0.0
    %1549 = vmatpush1.msra.mxu0 0.0
    %1550 = vmatprep.subr.mxu0 0.0
    %1551 = vmatpush1.msra.mxu0 0.0
    %1552 = vmatprep.subr.mxu0 0.0
    %1553 = vmatpush1.msra.mxu0 0.0
    %1554 = vmatprep.subr.mxu0 0.0
    %1555 = vmatpush1.msra.mxu0 0.0
    %1556 = vmatprep.subr.mxu0 0.0
    %1557 = vmatpush1.msra.mxu0 0.0
    %1558 = vmatprep.subr.mxu0 0.0
    %1559 = vmatpush1.msra.mxu0 0.0
    %1560 = vmatprep.subr.mxu0 0.0
    %1561 = vmatpush1.msra.mxu0 0.0
    %1562 = vmatprep.subr.mxu0 0.0
    %1563 = vmatpush1.msra.mxu0 0.0
    %1564 = vmatprep.subr.mxu0 0.0
    %1565 = vmatpush1.msra.mxu0 0.0
    %1566 = vmatprep.subr.mxu0 0.0
    %1567 = vmatpush1.msra.mxu0 0.0
    %1568 = vmatprep.subr.mxu0 0.0
    %1569 = vmatpush1.msra.mxu0 0.0
    %1570 = vmatprep.subr.mxu0 0.0
    %1571 = vmatpush1.msra.mxu0 0.0
    %1572 = vmatprep.subr.mxu0 0.0
    %1573 = vmatpush1.msra.mxu0 0.0
    %1574 = vmatprep.subr.mxu0 0.0
    %1575 = vmatpush1.msra.mxu0 0.0
    %1576 = vmatprep.subr.mxu0 0.0
    %1577 = vmatpush1.msra.mxu0 0.0
    %1578 = vmatprep.subr.mxu0 0.0
    %1579 = vmatpush1.msra.mxu0 0.0
    %1580 = vmatprep.subr.mxu0 0.0
    %1581 = vmatpush1.msra.mxu0 0.0
    %1582 = vmatprep.subr.mxu0 0.0
    %1583 = vmatpush1.msra.mxu0 0.0
    %1584 = vmatprep.subr.mxu0 0.0
    %1585 = vmatpush1.msra.mxu0 0.0
    %1586 = vmatprep.subr.mxu0 0.0
    %1587 = vmatpush1.msra.mxu0 0.0
    %1588 = vmatprep.subr.mxu0 0.0
    %1589 = vmatpush1.msra.mxu0 0.0
    %1590 = vmatprep.subr.mxu0 0.0
    %1591 = vmatpush1.msra.mxu0 0.0
    %1592 = vmatprep.subr.mxu0 0.0
    %1593 = vmatpush1.msra.mxu0 0.0
    %1594 = vmatprep.subr.mxu0 0.0
    %1595 = vmatpush1.msra.mxu0 0.0
    %1596 = vmatprep.mubr.f32.mxu0 0.0
    %1597 = vmatmul.mubr.f32.gmra.mrb[0].mxu0 %v1434
    %v1598 = vpop.f32.mrb[0].mxu0
    %v1599 = vadd.f32 0.0, %v1598
    %v1600 = vpop.f32.mrb[0].mxu0
    %1601 = vmatprep.mubr.f32.mxu0 0.0
    %1602 = vmatmul.mubr.f32.gmra.mrb[0].mxu0 %v1437
    %v1603 = vpop.f32.mrb[0].mxu0
    %v1604 = vadd.f32 0.0, %v1603
    %v1605 = vpop.f32.mrb[0].mxu0
    %1606 = vmatprep.mubr.f32.mxu0 0.0
    %1607 = vmatmul.mubr.f32.gmra.mrb[0].mxu0 %v1440
    %v1608 = vpop.f32.mrb[0].mxu0
    %v1609 = vadd.f32 0.0, %v1608
    %v1610 = vpop.f32.mrb[0].mxu0
    %1611 = vmatprep.mubr.f32.mxu0 0.0
    %1612 = vmatmul.mubr.f32.gmra.mrb[0].mxu0 %v1443
    %v1613 = vpop.f32.mrb[0].mxu0
    %v1614 = vadd.f32 0.0, %v1613
    %v1615 = vpop.f32.mrb[0].mxu0
    %1616 = vmatprep.mubr.f32.mxu0 0.0
    %1617 = vmatmul.mubr.f32.gmra.mrb[0].mxu0 %v1446
    %v1618 = vpop.f32.mrb[0].mxu0
    %v1619 = vadd.f32 0.0, %v1618
    %v1620 = vpop.f32.mrb[0].mxu0
    %1621 = vmatprep.mubr.f32.mxu0 0.0
    %1622 = vmatmul.mubr.f32.gmra.mrb[0].mxu0 %v1449
    %v1623 = vpop.f32.mrb[0].mxu0
    %v1624 = vadd.f32 0.0, %v1623
    %v1625 = vpop.f32.mrb[0].mxu0
    %1626 = vmatprep.mubr.f32.mxu0 0.0
    %1627 = vmatmul.mubr.f32.gmra.mrb[0].mxu0 %v1452
    %v1628 = vpop.f32.mrb[0].mxu0
    %v1629 = vadd.f32 0.0, %v1628
    %v1630 = vpop.f32.mrb[0].mxu0
    %1631 = vmatprep.mubr.f32.mxu0 0.0
    %1632 = vmatmul.mubr.f32.gmra.mrb[0].mxu0 %v1455
    %v1633 = vpop.f32.mrb[0].mxu0
    %v1634 = vadd.f32 0.0, %v1633
    %v1635 = vpop.f32.mrb[0].mxu0
    %1636 = vmatprep.mubr.f32.mxu0 0.0
    %1637 = vmatmul.mubr.f32.gmra.mrb[0].mxu0 %v1458
    %v1638 = vpop.f32.mrb[0].mxu0
    %v1639 = vadd.f32 0.0, %v1638
    %v1640 = vpop.f32.mrb[0].mxu0
    %1641 = vmatprep.mubr.f32.mxu0 0.0
    %1642 = vmatmul.mubr.f32.gmra.mrb[0].mxu0 %v1461
    %v1643 = vpop.f32.mrb[0].mxu0
    %v1644 = vadd.f32 0.0, %v1643
    %v1645 = vpop.f32.mrb[0].mxu0
    %1646 = vmatprep.mubr.f32.mxu0 0.0
    %1647 = vmatmul.mubr.f32.gmra.mrb[0].mxu0 %v1464
    %v1648 = vpop.f32.mrb[0].mxu0
    %v1649 = vadd.f32 0.0, %v1648
    %v1650 = vpop.f32.mrb[0].mxu0
    %1651 = vmatprep.mubr.f32.mxu0 0.0
    %1652 = vmatmul.mubr.f32.gmra.mrb[0].mxu0 %v1467
    %v1653 = vpop.f32.mrb[0].mxu0
    %v1654 = vadd.f32 0.0, %v1653
    %v1655 = vpop.f32.mrb[0].mxu0
    %1656 = vmatprep.mubr.f32.mxu0 0.0
    %1657 = vmatmul.mubr.f32.gmra.mrb[0].mxu0 %v1470
    %v1658 = vpop.f32.mrb[0].mxu0
    %v1659 = vadd.f32 0.0, %v1658
    %v1660 = vpop.f32.mrb[0].mxu0
    %1661 = vmatprep.mubr.f32.mxu0 0.0
    %1662 = vmatmul.mubr.f32.gmra.mrb[0].mxu0 %v1473
    %v1663 = vpop.f32.mrb[0].mxu0
    %v1664 = vadd.f32 0.0, %v1663
    %v1665 = vpop.f32.mrb[0].mxu0
    %1666 = vmatprep.mubr.f32.mxu0 0.0
    %1667 = vmatmul.mubr.f32.gmra.mrb[0].mxu0 %v1476
    %v1668 = vpop.f32.mrb[0].mxu0
    %v1669 = vadd.f32 0.0, %v1668
    %v1670 = vpop.f32.mrb[0].mxu0
    %1671 = vmatprep.mubr.f32.mxu0 0.0
    %1672 = vmatmul.mubr.f32.gmra.mrb[0].mxu0 %v1479
    %v1673 = vpop.f32.mrb[0].mxu0
    %v1674 = vadd.f32 0.0, %v1673
    %v1675 = vpop.f32.mrb[0].mxu0
    %1676 = vmatprep.mubr.f32.mxu0 0.0
    %1677 = vmatmul.mubr.f32.gmra.mrb[0].mxu0 %v1482
    %v1678 = vpop.f32.mrb[0].mxu0
    %v1679 = vadd.f32 0.0, %v1678
    %v1680 = vpop.f32.mrb[0].mxu0
    %1681 = vmatprep.mubr.f32.mxu0 0.0
    %1682 = vmatmul.mubr.f32.gmra.mrb[0].mxu0 %v1485
    %v1683 = vpop.f32.mrb[0].mxu0
    %v1684 = vadd.f32 0.0, %v1683
    %v1685 = vpop.f32.mrb[0].mxu0
    %1686 = vmatprep.mubr.f32.mxu0 0.0
    %1687 = vmatmul.mubr.f32.gmra.mrb[0].mxu0 %v1488
    %v1688 = vpop.f32.mrb[0].mxu0
    %v1689 = vadd.f32 0.0, %v1688
    %v1690 = vpop.f32.mrb[0].mxu0
    %1691 = vmatprep.mubr.f32.mxu0 0.0
    %1692 = vmatmul.mubr.f32.gmra.mrb[0].mxu0 %v1491
    %v1693 = vpop.f32.mrb[0].mxu0
    %v1694 = vadd.f32 0.0, %v1693
    %v1695 = vpop.f32.mrb[0].mxu0
    %1696 = vmatprep.mubr.f32.mxu0 0.0
    %1697 = vmatmul.mubr.f32.gmra.mrb[0].mxu0 %v1494
    %v1698 = vpop.f32.mrb[0].mxu0
    %v1699 = vadd.f32 0.0, %v1698
    %v1700 = vpop.f32.mrb[0].mxu0
    %1701 = vmatprep.mubr.f32.mxu0 0.0
    %1702 = vmatmul.mubr.f32.gmra.mrb[0].mxu0 %v1497
    %v1703 = vpop.f32.mrb[0].mxu0
    %v1704 = vadd.f32 0.0, %v1703
    %v1705 = vpop.f32.mrb[0].mxu0
    %1706 = vmatprep.mubr.f32.mxu0 0.0
    %1707 = vmatmul.mubr.f32.gmra.mrb[0].mxu0 %v1500
    %v1708 = vpop.f32.mrb[0].mxu0
    %v1709 = vadd.f32 0.0, %v1708
    %v1710 = vpop.f32.mrb[0].mxu0
    %1711 = vmatprep.mubr.f32.mxu0 0.0
    %1712 = vmatmul.mubr.f32.gmra.mrb[0].mxu0 %v1503
    %v1713 = vpop.f32.mrb[0].mxu0
    %v1714 = vadd.f32 0.0, %v1713
    %v1715 = vpop.f32.mrb[0].mxu0
    %1716 = vmatprep.mubr.f32.mxu0 0.0
    %1717 = vmatmul.mubr.f32.gmra.mrb[0].mxu0 %v1506
    %v1718 = vpop.f32.mrb[0].mxu0
    %v1719 = vadd.f32 0.0, %v1718
    %v1720 = vpop.f32.mrb[0].mxu0
    %1721 = vmatprep.mubr.f32.mxu0 0.0
    %1722 = vmatmul.mubr.f32.gmra.mrb[0].mxu0 %v1509
    %v1723 = vpop.f32.mrb[0].mxu0
    %v1724 = vadd.f32 0.0, %v1723
    %v1725 = vpop.f32.mrb[0].mxu0
    %1726 = vmatprep.mubr.f32.mxu0 0.0
    %1727 = vmatmul.mubr.f32.gmra.mrb[0].mxu0 %v1512
    %v1728 = vpop.f32.mrb[0].mxu0
    %v1729 = vadd.f32 0.0, %v1728
    %v1730 = vpop.f32.mrb[0].mxu0
    %1731 = vmatprep.mubr.f32.mxu0 0.0
    %1732 = vmatmul.mubr.f32.gmra.mrb[0].mxu0 %v1515
    %v1733 = vpop.f32.mrb[0].mxu0
    %v1734 = vadd.f32 0.0, %v1733
    %v1735 = vpop.f32.mrb[0].mxu0
    %1736 = vmatprep.mubr.f32.mxu0 0.0
    %1737 = vmatmul.mubr.f32.gmra.mrb[0].mxu0 %v1518
    %v1738 = vpop.f32.mrb[0].mxu0
    %v1739 = vadd.f32 0.0, %v1738
    %v1740 = vpop.f32.mrb[0].mxu0
    %1741 = vmatprep.mubr.f32.mxu0 0.0
    %1742 = vmatmul.mubr.f32.gmra.mrb[0].mxu0 %v1521
    %v1743 = vpop.f32.mrb[0].mxu0
    %v1744 = vadd.f32 0.0, %v1743
    %v1745 = vpop.f32.mrb[0].mxu0
    %1746 = vmatprep.mubr.f32.mxu0 0.0
    %1747 = vmatmul.mubr.f32.gmra.mrb[0].mxu0 %v1524
    %v1748 = vpop.f32.mrb[0].mxu0
    %v1749 = vadd.f32 0.0, %v1748
    %v1750 = vpop.f32.mrb[0].mxu0
    %1751 = vmatprep.mubr.f32.mxu0 0.0
    %1752 = vmatmul.mubr.f32.gmra.mrb[0].mxu0 %v1527
    %v1753 = vpop.f32.mrb[0].mxu0
    %v1754 = vadd.f32 0.0, %v1753
    %v1755 = vpop.f32.mrb[0].mxu0
    %1756 = vdwg.mxu0
    %v1757 = vadd.f32 %v1368, %v1599
    %v1758 = vadd.f32 %v1369, %v1604
    %v1759 = vadd.f32 %v1370, %v1609
    %v1760 = vadd.f32 %v1371, %v1614
    %v1761 = vadd.f32 %v1372, %v1619
    %v1762 = vadd.f32 %v1373, %v1624
    %v1763 = vadd.f32 %v1374, %v1629
    %v1764 = vadd.f32 %v1375, %v1634
    %v1765 = vadd.f32 %v1376, %v1639
    %v1766 = vadd.f32 %v1377, %v1644
    %v1767 = vadd.f32 %v1378, %v1649
    %v1768 = vadd.f32 %v1379, %v1654
    %v1769 = vadd.f32 %v1380, %v1659
    %v1770 = vadd.f32 %v1381, %v1664
    %v1771 = vadd.f32 %v1382, %v1669
    %v1772 = vadd.f32 %v1383, %v1674
    %v1773 = vadd.f32 %v1384, %v1679
    %v1774 = vadd.f32 %v1385, %v1684
    %v1775 = vadd.f32 %v1386, %v1689
    %v1776 = vadd.f32 %v1387, %v1694
    %v1777 = vadd.f32 %v1388, %v1699
    %v1778 = vadd.f32 %v1389, %v1704
    %v1779 = vadd.f32 %v1390, %v1709
    %v1780 = vadd.f32 %v1391, %v1714
    %v1781 = vadd.f32 %v1392, %v1719
    %v1782 = vadd.f32 %v1393, %v1724
    %v1783 = vadd.f32 %v1394, %v1729
    %v1784 = vadd.f32 %v1395, %v1734
    %v1785 = vadd.f32 %v1396, %v1739
    %v1786 = vadd.f32 %v1397, %v1744
    %v1787 = vadd.f32 %v1398, %v1749
    %v1788 = vadd.f32 %v1399, %v1754
    %v1789 = vld [vmem:[#allocation2 + $0x4] sm:$0xff]
    %v1790 = vld [vmem:[#allocation2 + $0xc] sm:$0xff]
    %v1791 = vld [vmem:[#allocation2 + $0x14] sm:$0xff]
    %v1792 = vld [vmem:[#allocation2 + $0x1c] sm:$0xff]
    %v1793 = vld [vmem:[#allocation2 + $0x24] sm:$0xff]
    %v1794 = vld [vmem:[#allocation2 + $0x2c] sm:$0xff]
    %v1795 = vld [vmem:[#allocation2 + $0x34] sm:$0xff]
    %v1796 = vld [vmem:[#allocation2 + $0x3c] sm:$0xff]
    %v1797 = vld [vmem:[#allocation2 + $0x44] sm:$0xff]
    %v1798 = vld [vmem:[#allocation2 + $0x4c] sm:$0xff]
    %v1799 = vld [vmem:[#allocation2 + $0x54] sm:$0xff]
    %v1800 = vld [vmem:[#allocation2 + $0x5c] sm:$0xff]
    %v1801 = vld [vmem:[#allocation2 + $0x64] sm:$0xff]
    %v1802 = vld [vmem:[#allocation2 + $0x6c] sm:$0xff]
    %v1803 = vld [vmem:[#allocation2 + $0x74] sm:$0xff]
    %v1804 = vld [vmem:[#allocation2 + $0x7c] sm:$0xff]
    %v1805 = vld [vmem:[#allocation2 + $0x84] sm:$0xff]
    %v1806 = vld [vmem:[#allocation2 + $0x8c] sm:$0xff]
    %v1807 = vld [vmem:[#allocation2 + $0x94] sm:$0xff]
    %v1808 = vld [vmem:[#allocation2 + $0x9c] sm:$0xff]
    %v1809 = vld [vmem:[#allocation2 + $0xa4] sm:$0xff]
    %v1810 = vld [vmem:[#allocation2 + $0xac] sm:$0xff]
    %v1811 = vld [vmem:[#allocation2 + $0xb4] sm:$0xff]
    %v1812 = vld [vmem:[#allocation2 + $0xbc] sm:$0xff]
    %v1813 = vld [vmem:[#allocation2 + $0xc4] sm:$0xff]
    %v1814 = vld [vmem:[#allocation2 + $0xcc] sm:$0xff]
    %v1815 = vld [vmem:[#allocation2 + $0xd4] sm:$0xff]
    %v1816 = vld [vmem:[#allocation2 + $0xdc] sm:$0xff]
    %v1817 = vld [vmem:[#allocation2 + $0xe4] sm:$0xff]
    %v1818 = vld [vmem:[#allocation2 + $0xec] sm:$0xff]
    %v1819 = vld [vmem:[#allocation2 + $0xf4] sm:$0xff]
    %v1820 = vld [vmem:[#allocation2 + $0xfc] sm:$0xff]
    %v1821 = vld [vmem:[%s1 + $0x8] sm:$0x3]
    %v1823 = vsel %vm28, %v1789, 0
    %v1826 = vsel %vm28, %v1790, 0
    %v1829 = vsel %vm28, %v1791, 0
    %v1832 = vsel %vm28, %v1792, 0
    %v1835 = vsel %vm28, %v1793, 0
    %v1838 = vsel %vm28, %v1794, 0
    %v1841 = vsel %vm28, %v1795, 0
    %v1844 = vsel %vm28, %v1796, 0
    %v1847 = vsel %vm28, %v1797, 0
    %v1850 = vsel %vm28, %v1798, 0
    %v1853 = vsel %vm28, %v1799, 0
    %v1856 = vsel %vm28, %v1800, 0
    %v1859 = vsel %vm28, %v1801, 0
    %v1862 = vsel %vm28, %v1802, 0
    %v1865 = vsel %vm28, %v1803, 0
    %v1868 = vsel %vm28, %v1804, 0
    %v1871 = vsel %vm28, %v1805, 0
    %v1874 = vsel %vm28, %v1806, 0
    %v1877 = vsel %vm28, %v1807, 0
    %v1880 = vsel %vm28, %v1808, 0
    %v1883 = vsel %vm28, %v1809, 0
    %v1886 = vsel %vm28, %v1810, 0
    %v1889 = vsel %vm28, %v1811, 0
    %v1892 = vsel %vm28, %v1812, 0
    %v1895 = vsel %vm28, %v1813, 0
    %v1898 = vsel %vm28, %v1814, 0
    %v1901 = vsel %vm28, %v1815, 0
    %v1904 = vsel %vm28, %v1816, 0
    %v1907 = vsel %vm28, %v1817, 0
    %v1910 = vsel %vm28, %v1818, 0
    %v1913 = vsel %vm28, %v1819, 0
    %v1916 = vsel %vm28, %v1820, 0
    %v1919 = vsel %vm109, %v1821, 0
    %1921 = vmatprep.subr.mxu0 0.0
    %1922 = vmatpush1.msra.mxu0 %v1919
    %1923 = vmatprep.subr.mxu0 0.0
    %1924 = vmatpush1.msra.mxu0 0.0
    %1925 = vmatprep.subr.mxu0 0.0
    %1926 = vmatpush1.msra.mxu0 0.0
    %1927 = vmatprep.subr.mxu0 0.0
    %1928 = vmatpush1.msra.mxu0 0.0
    %1929 = vmatprep.subr.mxu0 0.0
    %1930 = vmatpush1.msra.mxu0 0.0
    %1931 = vmatprep.subr.mxu0 0.0
    %1932 = vmatpush1.msra.mxu0 0.0
    %1933 = vmatprep.subr.mxu0 0.0
    %1934 = vmatpush1.msra.mxu0 0.0
    %1935 = vmatprep.subr.mxu0 0.0
    %1936 = vmatpush1.msra.mxu0 0.0
    %1937 = vmatprep.subr.mxu0 0.0
    %1938 = vmatpush1.msra.mxu0 0.0
    %1939 = vmatprep.subr.mxu0 0.0
    %1940 = vmatpush1.msra.mxu0 0.0
    %1941 = vmatprep.subr.mxu0 0.0
    %1942 = vmatpush1.msra.mxu0 0.0
    %1943 = vmatprep.subr.mxu0 0.0
    %1944 = vmatpush1.msra.mxu0 0.0
    %1945 = vmatprep.subr.mxu0 0.0
    %1946 = vmatpush1.msra.mxu0 0.0
    %1947 = vmatprep.subr.mxu0 0.0
    %1948 = vmatpush1.msra.mxu0 0.0
    %1949 = vmatprep.subr.mxu0 0.0
    %1950 = vmatpush1.msra.mxu0 0.0
    %1951 = vmatprep.subr.mxu0 0.0
    %1952 = vmatpush1.msra.mxu0 0.0
    %1953 = vmatprep.subr.mxu0 0.0
    %1954 = vmatpush1.msra.mxu0 0.0
    %1955 = vmatprep.subr.mxu0 0.0
    %1956 = vmatpush1.msra.mxu0 0.0
    %1957 = vmatprep.subr.mxu0 0.0
    %1958 = vmatpush1.msra.mxu0 0.0
    %1959 = vmatprep.subr.mxu0 0.0
    %1960 = vmatpush1.msra.mxu0 0.0
    %1961 = vmatprep.subr.mxu0 0.0
    %1962 = vmatpush1.msra.mxu0 0.0
    %1963 = vmatprep.subr.mxu0 0.0
    %1964 = vmatpush1.msra.mxu0 0.0
    %1965 = vmatprep.subr.mxu0 0.0
    %1966 = vmatpush1.msra.mxu0 0.0
    %1967 = vmatprep.subr.mxu0 0.0
    %1968 = vmatpush1.msra.mxu0 0.0
    %1969 = vmatprep.subr.mxu0 0.0
    %1970 = vmatpush1.msra.mxu0 0.0
    %1971 = vmatprep.subr.mxu0 0.0
    %1972 = vmatpush1.msra.mxu0 0.0
    %1973 = vmatprep.subr.mxu0 0.0
    %1974 = vmatpush1.msra.mxu0 0.0
    %1975 = vmatprep.subr.mxu0 0.0
    %1976 = vmatpush1.msra.mxu0 0.0
    %1977 = vmatprep.subr.mxu0 0.0
    %1978 = vmatpush1.msra.mxu0 0.0
    %1979 = vmatprep.subr.mxu0 0.0
    %1980 = vmatpush1.msra.mxu0 0.0
    %1981 = vmatprep.subr.mxu0 0.0
    %1982 = vmatpush1.msra.mxu0 0.0
    %1983 = vmatprep.subr.mxu0 0.0
    %1984 = vmatpush1.msra.mxu0 0.0
    %1985 = vmatprep.mubr.f32.mxu0 0.0
    %1986 = vmatmul.mubr.f32.gmra.mrb[0].mxu0 %v1823
    %v1987 = vpop.f32.mrb[0].mxu0
    %v1988 = vadd.f32 0.0, %v1987
    %v1989 = vpop.f32.mrb[0].mxu0
    %1990 = vmatprep.mubr.f32.mxu0 0.0
    %1991 = vmatmul.mubr.f32.gmra.mrb[0].mxu0 %v1826
    %v1992 = vpop.f32.mrb[0].mxu0
    %v1993 = vadd.f32 0.0, %v1992
    %v1994 = vpop.f32.mrb[0].mxu0
    %1995 = vmatprep.mubr.f32.mxu0 0.0
    %1996 = vmatmul.mubr.f32.gmra.mrb[0].mxu0 %v1829
    %v1997 = vpop.f32.mrb[0].mxu0
    %v1998 = vadd.f32 0.0, %v1997
    %v1999 = vpop.f32.mrb[0].mxu0
    %2000 = vmatprep.mubr.f32.mxu0 0.0
    %2001 = vmatmul.mubr.f32.gmra.mrb[0].mxu0 %v1832
    %v2002 = vpop.f32.mrb[0].mxu0
    %v2003 = vadd.f32 0.0, %v2002
    %v2004 = vpop.f32.mrb[0].mxu0
    %2005 = vmatprep.mubr.f32.mxu0 0.0
    %2006 = vmatmul.mubr.f32.gmra.mrb[0].mxu0 %v1835
    %v2007 = vpop.f32.mrb[0].mxu0
    %v2008 = vadd.f32 0.0, %v2007
    %v2009 = vpop.f32.mrb[0].mxu0
    %2010 = vmatprep.mubr.f32.mxu0 0.0
    %2011 = vmatmul.mubr.f32.gmra.mrb[0].mxu0 %v1838
    %v2012 = vpop.f32.mrb[0].mxu0
    %v2013 = vadd.f32 0.0, %v2012
    %v2014 = vpop.f32.mrb[0].mxu0
    %2015 = vmatprep.mubr.f32.mxu0 0.0
    %2016 = vmatmul.mubr.f32.gmra.mrb[0].mxu0 %v1841
    %v2017 = vpop.f32.mrb[0].mxu0
    %v2018 = vadd.f32 0.0, %v2017
    %v2019 = vpop.f32.mrb[0].mxu0
    %2020 = vmatprep.mubr.f32.mxu0 0.0
    %2021 = vmatmul.mubr.f32.gmra.mrb[0].mxu0 %v1844
    %v2022 = vpop.f32.mrb[0].mxu0
    %v2023 = vadd.f32 0.0, %v2022
    %v2024 = vpop.f32.mrb[0].mxu0
    %2025 = vmatprep.mubr.f32.mxu0 0.0
    %2026 = vmatmul.mubr.f32.gmra.mrb[0].mxu0 %v1847
    %v2027 = vpop.f32.mrb[0].mxu0
    %v2028 = vadd.f32 0.0, %v2027
    %v2029 = vpop.f32.mrb[0].mxu0
    %2030 = vmatprep.mubr.f32.mxu0 0.0
    %2031 = vmatmul.mubr.f32.gmra.mrb[0].mxu0 %v1850
    %v2032 = vpop.f32.mrb[0].mxu0
    %v2033 = vadd.f32 0.0, %v2032
    %v2034 = vpop.f32.mrb[0].mxu0
    %2035 = vmatprep.mubr.f32.mxu0 0.0
    %2036 = vmatmul.mubr.f32.gmra.mrb[0].mxu0 %v1853
    %v2037 = vpop.f32.mrb[0].mxu0
    %v2038 = vadd.f32 0.0, %v2037
    %v2039 = vpop.f32.mrb[0].mxu0
    %2040 = vmatprep.mubr.f32.mxu0 0.0
    %2041 = vmatmul.mubr.f32.gmra.mrb[0].mxu0 %v1856
    %v2042 = vpop.f32.mrb[0].mxu0
    %v2043 = vadd.f32 0.0, %v2042
    %v2044 = vpop.f32.mrb[0].mxu0
    %2045 = vmatprep.mubr.f32.mxu0 0.0
    %2046 = vmatmul.mubr.f32.gmra.mrb[0].mxu0 %v1859
    %v2047 = vpop.f32.mrb[0].mxu0
    %v2048 = vadd.f32 0.0, %v2047
    %v2049 = vpop.f32.mrb[0].mxu0
    %2050 = vmatprep.mubr.f32.mxu0 0.0
    %2051 = vmatmul.mubr.f32.gmra.mrb[0].mxu0 %v1862
    %v2052 = vpop.f32.mrb[0].mxu0
    %v2053 = vadd.f32 0.0, %v2052
    %v2054 = vpop.f32.mrb[0].mxu0
    %2055 = vmatprep.mubr.f32.mxu0 0.0
    %2056 = vmatmul.mubr.f32.gmra.mrb[0].mxu0 %v1865
    %v2057 = vpop.f32.mrb[0].mxu0
    %v2058 = vadd.f32 0.0, %v2057
    %v2059 = vpop.f32.mrb[0].mxu0
    %2060 = vmatprep.mubr.f32.mxu0 0.0
    %2061 = vmatmul.mubr.f32.gmra.mrb[0].mxu0 %v1868
    %v2062 = vpop.f32.mrb[0].mxu0
    %v2063 = vadd.f32 0.0, %v2062
    %v2064 = vpop.f32.mrb[0].mxu0
    %2065 = vmatprep.mubr.f32.mxu0 0.0
    %2066 = vmatmul.mubr.f32.gmra.mrb[0].mxu0 %v1871
    %v2067 = vpop.f32.mrb[0].mxu0
    %v2068 = vadd.f32 0.0, %v2067
    %v2069 = vpop.f32.mrb[0].mxu0
    %2070 = vmatprep.mubr.f32.mxu0 0.0
    %2071 = vmatmul.mubr.f32.gmra.mrb[0].mxu0 %v1874
    %v2072 = vpop.f32.mrb[0].mxu0
    %v2073 = vadd.f32 0.0, %v2072
    %v2074 = vpop.f32.mrb[0].mxu0
    %2075 = vmatprep.mubr.f32.mxu0 0.0
    %2076 = vmatmul.mubr.f32.gmra.mrb[0].mxu0 %v1877
    %v2077 = vpop.f32.mrb[0].mxu0
    %v2078 = vadd.f32 0.0, %v2077
    %v2079 = vpop.f32.mrb[0].mxu0
    %2080 = vmatprep.mubr.f32.mxu0 0.0
    %2081 = vmatmul.mubr.f32.gmra.mrb[0].mxu0 %v1880
    %v2082 = vpop.f32.mrb[0].mxu0
    %v2083 = vadd.f32 0.0, %v2082
    %v2084 = vpop.f32.mrb[0].mxu0
    %2085 = vmatprep.mubr.f32.mxu0 0.0
    %2086 = vmatmul.mubr.f32.gmra.mrb[0].mxu0 %v1883
    %v2087 = vpop.f32.mrb[0].mxu0
    %v2088 = vadd.f32 0.0, %v2087
    %v2089 = vpop.f32.mrb[0].mxu0
    %2090 = vmatprep.mubr.f32.mxu0 0.0
    %2091 = vmatmul.mubr.f32.gmra.mrb[0].mxu0 %v1886
    %v2092 = vpop.f32.mrb[0].mxu0
    %v2093 = vadd.f32 0.0, %v2092
    %v2094 = vpop.f32.mrb[0].mxu0
    %2095 = vmatprep.mubr.f32.mxu0 0.0
    %2096 = vmatmul.mubr.f32.gmra.mrb[0].mxu0 %v1889
    %v2097 = vpop.f32.mrb[0].mxu0
    %v2098 = vadd.f32 0.0, %v2097
    %v2099 = vpop.f32.mrb[0].mxu0
    %2100 = vmatprep.mubr.f32.mxu0 0.0
    %2101 = vmatmul.mubr.f32.gmra.mrb[0].mxu0 %v1892
    %v2102 = vpop.f32.mrb[0].mxu0
    %v2103 = vadd.f32 0.0, %v2102
    %v2104 = vpop.f32.mrb[0].mxu0
    %2105 = vmatprep.mubr.f32.mxu0 0.0
    %2106 = vmatmul.mubr.f32.gmra.mrb[0].mxu0 %v1895
    %v2107 = vpop.f32.mrb[0].mxu0
    %v2108 = vadd.f32 0.0, %v2107
    %v2109 = vpop.f32.mrb[0].mxu0
    %2110 = vmatprep.mubr.f32.mxu0 0.0
    %2111 = vmatmul.mubr.f32.gmra.mrb[0].mxu0 %v1898
    %v2112 = vpop.f32.mrb[0].mxu0
    %v2113 = vadd.f32 0.0, %v2112
    %v2114 = vpop.f32.mrb[0].mxu0
    %2115 = vmatprep.mubr.f32.mxu0 0.0
    %2116 = vmatmul.mubr.f32.gmra.mrb[0].mxu0 %v1901
    %v2117 = vpop.f32.mrb[0].mxu0
    %v2118 = vadd.f32 0.0, %v2117
    %v2119 = vpop.f32.mrb[0].mxu0
    %2120 = vmatprep.mubr.f32.mxu0 0.0
    %2121 = vmatmul.mubr.f32.gmra.mrb[0].mxu0 %v1904
    %v2122 = vpop.f32.mrb[0].mxu0
    %v2123 = vadd.f32 0.0, %v2122
    %v2124 = vpop.f32.mrb[0].mxu0
    %2125 = vmatprep.mubr.f32.mxu0 0.0
    %2126 = vmatmul.mubr.f32.gmra.mrb[0].mxu0 %v1907
    %v2127 = vpop.f32.mrb[0].mxu0
    %v2128 = vadd.f32 0.0, %v2127
    %v2129 = vpop.f32.mrb[0].mxu0
    %2130 = vmatprep.mubr.f32.mxu0 0.0
    %2131 = vmatmul.mubr.f32.gmra.mrb[0].mxu0 %v1910
    %v2132 = vpop.f32.mrb[0].mxu0
    %v2133 = vadd.f32 0.0, %v2132
    %v2134 = vpop.f32.mrb[0].mxu0
    %2135 = vmatprep.mubr.f32.mxu0 0.0
    %2136 = vmatmul.mubr.f32.gmra.mrb[0].mxu0 %v1913
    %v2137 = vpop.f32.mrb[0].mxu0
    %v2138 = vadd.f32 0.0, %v2137
    %v2139 = vpop.f32.mrb[0].mxu0
    %2140 = vmatprep.mubr.f32.mxu0 0.0
    %2141 = vmatmul.mubr.f32.gmra.mrb[0].mxu0 %v1916
    %v2142 = vpop.f32.mrb[0].mxu0
    %v2143 = vadd.f32 0.0, %v2142
    %v2144 = vpop.f32.mrb[0].mxu0
    %2145 = vdwg.mxu0
    %v2146 = vadd.f32 %v1757, %v1988
    %v2147 = vadd.f32 %v1758, %v1993
    %v2148 = vadd.f32 %v1759, %v1998
    %v2149 = vadd.f32 %v1760, %v2003
    %v2150 = vadd.f32 %v1761, %v2008
    %v2151 = vadd.f32 %v1762, %v2013
    %v2152 = vadd.f32 %v1763, %v2018
    %v2153 = vadd.f32 %v1764, %v2023
    %v2154 = vadd.f32 %v1765, %v2028
    %v2155 = vadd.f32 %v1766, %v2033
    %v2156 = vadd.f32 %v1767, %v2038
    %v2157 = vadd.f32 %v1768, %v2043
    %v2158 = vadd.f32 %v1769, %v2048
    %v2159 = vadd.f32 %v1770, %v2053
    %v2160 = vadd.f32 %v1771, %v2058
    %v2161 = vadd.f32 %v1772, %v2063
    %v2162 = vadd.f32 %v1773, %v2068
    %v2163 = vadd.f32 %v1774, %v2073
    %v2164 = vadd.f32 %v1775, %v2078
    %v2165 = vadd.f32 %v1776, %v2083
    %v2166 = vadd.f32 %v1777, %v2088
    %v2167 = vadd.f32 %v1778, %v2093
    %v2168 = vadd.f32 %v1779, %v2098
    %v2169 = vadd.f32 %v1780, %v2103
    %v2170 = vadd.f32 %v1781, %v2108
    %v2171 = vadd.f32 %v1782, %v2113
    %v2172 = vadd.f32 %v1783, %v2118
    %v2173 = vadd.f32 %v1784, %v2123
    %v2174 = vadd.f32 %v1785, %v2128
    %v2175 = vadd.f32 %v1786, %v2133
    %v2176 = vadd.f32 %v1787, %v2138
    %v2177 = vadd.f32 %v1788, %v2143
    %v2178 = vld [vmem:[#allocation2 + $0x5] sm:$0xff]
    %v2179 = vld [vmem:[#allocation2 + $0xd] sm:$0xff]
    %v2180 = vld [vmem:[#allocation2 + $0x15] sm:$0xff]
    %v2181 = vld [vmem:[#allocation2 + $0x1d] sm:$0xff]
    %v2182 = vld [vmem:[#allocation2 + $0x25] sm:$0xff]
    %v2183 = vld [vmem:[#allocation2 + $0x2d] sm:$0xff]
    %v2184 = vld [vmem:[#allocation2 + $0x35] sm:$0xff]
    %v2185 = vld [vmem:[#allocation2 + $0x3d] sm:$0xff]
    %v2186 = vld [vmem:[#allocation2 + $0x45] sm:$0xff]
    %v2187 = vld [vmem:[#allocation2 + $0x4d] sm:$0xff]
    %v2188 = vld [vmem:[#allocation2 + $0x55] sm:$0xff]
    %v2189 = vld [vmem:[#allocation2 + $0x5d] sm:$0xff]
    %v2190 = vld [vmem:[#allocation2 + $0x65] sm:$0xff]
    %v2191 = vld [vmem:[#allocation2 + $0x6d] sm:$0xff]
    %v2192 = vld [vmem:[#allocation2 + $0x75] sm:$0xff]
    %v2193 = vld [vmem:[#allocation2 + $0x7d] sm:$0xff]
    %v2194 = vld [vmem:[#allocation2 + $0x85] sm:$0xff]
    %v2195 = vld [vmem:[#allocation2 + $0x8d] sm:$0xff]
    %v2196 = vld [vmem:[#allocation2 + $0x95] sm:$0xff]
    %v2197 = vld [vmem:[#allocation2 + $0x9d] sm:$0xff]
    %v2198 = vld [vmem:[#allocation2 + $0xa5] sm:$0xff]
    %v2199 = vld [vmem:[#allocation2 + $0xad] sm:$0xff]
    %v2200 = vld [vmem:[#allocation2 + $0xb5] sm:$0xff]
    %v2201 = vld [vmem:[#allocation2 + $0xbd] sm:$0xff]
    %v2202 = vld [vmem:[#allocation2 + $0xc5] sm:$0xff]
    %v2203 = vld [vmem:[#allocation2 + $0xcd] sm:$0xff]
    %v2204 = vld [vmem:[#allocation2 + $0xd5] sm:$0xff]
    %v2205 = vld [vmem:[#allocation2 + $0xdd] sm:$0xff]
    %v2206 = vld [vmem:[#allocation2 + $0xe5] sm:$0xff]
    %v2207 = vld [vmem:[#allocation2 + $0xed] sm:$0xff]
    %v2208 = vld [vmem:[#allocation2 + $0xf5] sm:$0xff]
    %v2209 = vld [vmem:[#allocation2 + $0xfd] sm:$0xff]
    %v2210 = vld [vmem:[%s1 + $0xa] sm:$0x3]
    %v2212 = vsel %vm28, %v2178, 0
    %v2215 = vsel %vm28, %v2179, 0
    %v2218 = vsel %vm28, %v2180, 0
    %v2221 = vsel %vm28, %v2181, 0
    %v2224 = vsel %vm28, %v2182, 0
    %v2227 = vsel %vm28, %v2183, 0
    %v2230 = vsel %vm28, %v2184, 0
    %v2233 = vsel %vm28, %v2185, 0
    %v2236 = vsel %vm28, %v2186, 0
    %v2239 = vsel %vm28, %v2187, 0
    %v2242 = vsel %vm28, %v2188, 0
    %v2245 = vsel %vm28, %v2189, 0
    %v2248 = vsel %vm28, %v2190, 0
    %v2251 = vsel %vm28, %v2191, 0
    %v2254 = vsel %vm28, %v2192, 0
    %v2257 = vsel %vm28, %v2193, 0
    %v2260 = vsel %vm28, %v2194, 0
    %v2263 = vsel %vm28, %v2195, 0
    %v2266 = vsel %vm28, %v2196, 0
    %v2269 = vsel %vm28, %v2197, 0
    %v2272 = vsel %vm28, %v2198, 0
    %v2275 = vsel %vm28, %v2199, 0
    %v2278 = vsel %vm28, %v2200, 0
    %v2281 = vsel %vm28, %v2201, 0
    %v2284 = vsel %vm28, %v2202, 0
    %v2287 = vsel %vm28, %v2203, 0
    %v2290 = vsel %vm28, %v2204, 0
    %v2293 = vsel %vm28, %v2205, 0
    %v2296 = vsel %vm28, %v2206, 0
    %v2299 = vsel %vm28, %v2207, 0
    %v2302 = vsel %vm28, %v2208, 0
    %v2305 = vsel %vm28, %v2209, 0
    %v2308 = vsel %vm109, %v2210, 0
    %2310 = vmatprep.subr.mxu0 0.0
    %2311 = vmatpush1.msra.mxu0 %v2308
    %2312 = vmatprep.subr.mxu0 0.0
    %2313 = vmatpush1.msra.mxu0 0.0
    %2314 = vmatprep.subr.mxu0 0.0
    %2315 = vmatpush1.msra.mxu0 0.0
    %2316 = vmatprep.subr.mxu0 0.0
    %2317 = vmatpush1.msra.mxu0 0.0
    %2318 = vmatprep.subr.mxu0 0.0
    %2319 = vmatpush1.msra.mxu0 0.0
    %2320 = vmatprep.subr.mxu0 0.0
    %2321 = vmatpush1.msra.mxu0 0.0
    %2322 = vmatprep.subr.mxu0 0.0
    %2323 = vmatpush1.msra.mxu0 0.0
    %2324 = vmatprep.subr.mxu0 0.0
    %2325 = vmatpush1.msra.mxu0 0.0
    %2326 = vmatprep.subr.mxu0 0.0
    %2327 = vmatpush1.msra.mxu0 0.0
    %2328 = vmatprep.subr.mxu0 0.0
    %2329 = vmatpush1.msra.mxu0 0.0
    %2330 = vmatprep.subr.mxu0 0.0
    %2331 = vmatpush1.msra.mxu0 0.0
    %2332 = vmatprep.subr.mxu0 0.0
    %2333 = vmatpush1.msra.mxu0 0.0
    %2334 = vmatprep.subr.mxu0 0.0
    %2335 = vmatpush1.msra.mxu0 0.0
    %2336 = vmatprep.subr.mxu0 0.0
    %2337 = vmatpush1.msra.mxu0 0.0
    %2338 = vmatprep.subr.mxu0 0.0
    %2339 = vmatpush1.msra.mxu0 0.0
    %2340 = vmatprep.subr.mxu0 0.0
    %2341 = vmatpush1.msra.mxu0 0.0
    %2342 = vmatprep.subr.mxu0 0.0
    %2343 = vmatpush1.msra.mxu0 0.0
    %2344 = vmatprep.subr.mxu0 0.0
    %2345 = vmatpush1.msra.mxu0 0.0
    %2346 = vmatprep.subr.mxu0 0.0
    %2347 = vmatpush1.msra.mxu0 0.0
    %2348 = vmatprep.subr.mxu0 0.0
    %2349 = vmatpush1.msra.mxu0 0.0
    %2350 = vmatprep.subr.mxu0 0.0
    %2351 = vmatpush1.msra.mxu0 0.0
    %2352 = vmatprep.subr.mxu0 0.0
    %2353 = vmatpush1.msra.mxu0 0.0
    %2354 = vmatprep.subr.mxu0 0.0
    %2355 = vmatpush1.msra.mxu0 0.0
    %2356 = vmatprep.subr.mxu0 0.0
    %2357 = vmatpush1.msra.mxu0 0.0
    %2358 = vmatprep.subr.mxu0 0.0
    %2359 = vmatpush1.msra.mxu0 0.0
    %2360 = vmatprep.subr.mxu0 0.0
    %2361 = vmatpush1.msra.mxu0 0.0
    %2362 = vmatprep.subr.mxu0 0.0
    %2363 = vmatpush1.msra.mxu0 0.0
    %2364 = vmatprep.subr.mxu0 0.0
    %2365 = vmatpush1.msra.mxu0 0.0
    %2366 = vmatprep.subr.mxu0 0.0
    %2367 = vmatpush1.msra.mxu0 0.0
    %2368 = vmatprep.subr.mxu0 0.0
    %2369 = vmatpush1.msra.mxu0 0.0
    %2370 = vmatprep.subr.mxu0 0.0
    %2371 = vmatpush1.msra.mxu0 0.0
    %2372 = vmatprep.subr.mxu0 0.0
    %2373 = vmatpush1.msra.mxu0 0.0
    %2374 = vmatprep.mubr.f32.mxu0 0.0
    %2375 = vmatmul.mubr.f32.gmra.mrb[0].mxu0 %v2212
    %v2376 = vpop.f32.mrb[0].mxu0
    %v2377 = vadd.f32 0.0, %v2376
    %v2378 = vpop.f32.mrb[0].mxu0
    %2379 = vmatprep.mubr.f32.mxu0 0.0
    %2380 = vmatmul.mubr.f32.gmra.mrb[0].mxu0 %v2215
    %v2381 = vpop.f32.mrb[0].mxu0
    %v2382 = vadd.f32 0.0, %v2381
    %v2383 = vpop.f32.mrb[0].mxu0
    %2384 = vmatprep.mubr.f32.mxu0 0.0
    %2385 = vmatmul.mubr.f32.gmra.mrb[0].mxu0 %v2218
    %v2386 = vpop.f32.mrb[0].mxu0
    %v2387 = vadd.f32 0.0, %v2386
    %v2388 = vpop.f32.mrb[0].mxu0
    %2389 = vmatprep.mubr.f32.mxu0 0.0
    %2390 = vmatmul.mubr.f32.gmra.mrb[0].mxu0 %v2221
    %v2391 = vpop.f32.mrb[0].mxu0
    %v2392 = vadd.f32 0.0, %v2391
    %v2393 = vpop.f32.mrb[0].mxu0
    %2394 = vmatprep.mubr.f32.mxu0 0.0
    %2395 = vmatmul.mubr.f32.gmra.mrb[0].mxu0 %v2224
    %v2396 = vpop.f32.mrb[0].mxu0
    %v2397 = vadd.f32 0.0, %v2396
    %v2398 = vpop.f32.mrb[0].mxu0
    %2399 = vmatprep.mubr.f32.mxu0 0.0
    %2400 = vmatmul.mubr.f32.gmra.mrb[0].mxu0 %v2227
    %v2401 = vpop.f32.mrb[0].mxu0
    %v2402 = vadd.f32 0.0, %v2401
    %v2403 = vpop.f32.mrb[0].mxu0
    %2404 = vmatprep.mubr.f32.mxu0 0.0
    %2405 = vmatmul.mubr.f32.gmra.mrb[0].mxu0 %v2230
    %v2406 = vpop.f32.mrb[0].mxu0
    %v2407 = vadd.f32 0.0, %v2406
    %v2408 = vpop.f32.mrb[0].mxu0
    %2409 = vmatprep.mubr.f32.mxu0 0.0
    %2410 = vmatmul.mubr.f32.gmra.mrb[0].mxu0 %v2233
    %v2411 = vpop.f32.mrb[0].mxu0
    %v2412 = vadd.f32 0.0, %v2411
    %v2413 = vpop.f32.mrb[0].mxu0
    %2414 = vmatprep.mubr.f32.mxu0 0.0
    %2415 = vmatmul.mubr.f32.gmra.mrb[0].mxu0 %v2236
    %v2416 = vpop.f32.mrb[0].mxu0
    %v2417 = vadd.f32 0.0, %v2416
    %v2418 = vpop.f32.mrb[0].mxu0
    %2419 = vmatprep.mubr.f32.mxu0 0.0
    %2420 = vmatmul.mubr.f32.gmra.mrb[0].mxu0 %v2239
    %v2421 = vpop.f32.mrb[0].mxu0
    %v2422 = vadd.f32 0.0, %v2421
    %v2423 = vpop.f32.mrb[0].mxu0
    %2424 = vmatprep.mubr.f32.mxu0 0.0
    %2425 = vmatmul.mubr.f32.gmra.mrb[0].mxu0 %v2242
    %v2426 = vpop.f32.mrb[0].mxu0
    %v2427 = vadd.f32 0.0, %v2426
    %v2428 = vpop.f32.mrb[0].mxu0
    %2429 = vmatprep.mubr.f32.mxu0 0.0
    %2430 = vmatmul.mubr.f32.gmra.mrb[0].mxu0 %v2245
    %v2431 = vpop.f32.mrb[0].mxu0
    %v2432 = vadd.f32 0.0, %v2431
    %v2433 = vpop.f32.mrb[0].mxu0
    %2434 = vmatprep.mubr.f32.mxu0 0.0
    %2435 = vmatmul.mubr.f32.gmra.mrb[0].mxu0 %v2248
    %v2436 = vpop.f32.mrb[0].mxu0
    %v2437 = vadd.f32 0.0, %v2436
    %v2438 = vpop.f32.mrb[0].mxu0
    %2439 = vmatprep.mubr.f32.mxu0 0.0
    %2440 = vmatmul.mubr.f32.gmra.mrb[0].mxu0 %v2251
    %v2441 = vpop.f32.mrb[0].mxu0
    %v2442 = vadd.f32 0.0, %v2441
    %v2443 = vpop.f32.mrb[0].mxu0
    %2444 = vmatprep.mubr.f32.mxu0 0.0
    %2445 = vmatmul.mubr.f32.gmra.mrb[0].mxu0 %v2254
    %v2446 = vpop.f32.mrb[0].mxu0
    %v2447 = vadd.f32 0.0, %v2446
    %v2448 = vpop.f32.mrb[0].mxu0
    %2449 = vmatprep.mubr.f32.mxu0 0.0
    %2450 = vmatmul.mubr.f32.gmra.mrb[0].mxu0 %v2257
    %v2451 = vpop.f32.mrb[0].mxu0
    %v2452 = vadd.f32 0.0, %v2451
    %v2453 = vpop.f32.mrb[0].mxu0
    %2454 = vmatprep.mubr.f32.mxu0 0.0
    %2455 = vmatmul.mubr.f32.gmra.mrb[0].mxu0 %v2260
    %v2456 = vpop.f32.mrb[0].mxu0
    %v2457 = vadd.f32 0.0, %v2456
    %v2458 = vpop.f32.mrb[0].mxu0
    %2459 = vmatprep.mubr.f32.mxu0 0.0
    %2460 = vmatmul.mubr.f32.gmra.mrb[0].mxu0 %v2263
    %v2461 = vpop.f32.mrb[0].mxu0
    %v2462 = vadd.f32 0.0, %v2461
    %v2463 = vpop.f32.mrb[0].mxu0
    %2464 = vmatprep.mubr.f32.mxu0 0.0
    %2465 = vmatmul.mubr.f32.gmra.mrb[0].mxu0 %v2266
    %v2466 = vpop.f32.mrb[0].mxu0
    %v2467 = vadd.f32 0.0, %v2466
    %v2468 = vpop.f32.mrb[0].mxu0
    %2469 = vmatprep.mubr.f32.mxu0 0.0
    %2470 = vmatmul.mubr.f32.gmra.mrb[0].mxu0 %v2269
    %v2471 = vpop.f32.mrb[0].mxu0
    %v2472 = vadd.f32 0.0, %v2471
    %v2473 = vpop.f32.mrb[0].mxu0
    %2474 = vmatprep.mubr.f32.mxu0 0.0
    %2475 = vmatmul.mubr.f32.gmra.mrb[0].mxu0 %v2272
    %v2476 = vpop.f32.mrb[0].mxu0
    %v2477 = vadd.f32 0.0, %v2476
    %v2478 = vpop.f32.mrb[0].mxu0
    %2479 = vmatprep.mubr.f32.mxu0 0.0
    %2480 = vmatmul.mubr.f32.gmra.mrb[0].mxu0 %v2275
    %v2481 = vpop.f32.mrb[0].mxu0
    %v2482 = vadd.f32 0.0, %v2481
    %v2483 = vpop.f32.mrb[0].mxu0
    %2484 = vmatprep.mubr.f32.mxu0 0.0
    %2485 = vmatmul.mubr.f32.gmra.mrb[0].mxu0 %v2278
    %v2486 = vpop.f32.mrb[0].mxu0
    %v2487 = vadd.f32 0.0, %v2486
    %v2488 = vpop.f32.mrb[0].mxu0
    %2489 = vmatprep.mubr.f32.mxu0 0.0
    %2490 = vmatmul.mubr.f32.gmra.mrb[0].mxu0 %v2281
    %v2491 = vpop.f32.mrb[0].mxu0
    %v2492 = vadd.f32 0.0, %v2491
    %v2493 = vpop.f32.mrb[0].mxu0
    %2494 = vmatprep.mubr.f32.mxu0 0.0
    %2495 = vmatmul.mubr.f32.gmra.mrb[0].mxu0 %v2284
    %v2496 = vpop.f32.mrb[0].mxu0
    %v2497 = vadd.f32 0.0, %v2496
    %v2498 = vpop.f32.mrb[0].mxu0
    %2499 = vmatprep.mubr.f32.mxu0 0.0
    %2500 = vmatmul.mubr.f32.gmra.mrb[0].mxu0 %v2287
    %v2501 = vpop.f32.mrb[0].mxu0
    %v2502 = vadd.f32 0.0, %v2501
    %v2503 = vpop.f32.mrb[0].mxu0
    %2504 = vmatprep.mubr.f32.mxu0 0.0
    %2505 = vmatmul.mubr.f32.gmra.mrb[0].mxu0 %v2290
    %v2506 = vpop.f32.mrb[0].mxu0
    %v2507 = vadd.f32 0.0, %v2506
    %v2508 = vpop.f32.mrb[0].mxu0
    %2509 = vmatprep.mubr.f32.mxu0 0.0
    %2510 = vmatmul.mubr.f32.gmra.mrb[0].mxu0 %v2293
    %v2511 = vpop.f32.mrb[0].mxu0
    %v2512 = vadd.f32 0.0, %v2511
    %v2513 = vpop.f32.mrb[0].mxu0
    %2514 = vmatprep.mubr.f32.mxu0 0.0
    %2515 = vmatmul.mubr.f32.gmra.mrb[0].mxu0 %v2296
    %v2516 = vpop.f32.mrb[0].mxu0
    %v2517 = vadd.f32 0.0, %v2516
    %v2518 = vpop.f32.mrb[0].mxu0
    %2519 = vmatprep.mubr.f32.mxu0 0.0
    %2520 = vmatmul.mubr.f32.gmra.mrb[0].mxu0 %v2299
    %v2521 = vpop.f32.mrb[0].mxu0
    %v2522 = vadd.f32 0.0, %v2521
    %v2523 = vpop.f32.mrb[0].mxu0
    %2524 = vmatprep.mubr.f32.mxu0 0.0
    %2525 = vmatmul.mubr.f32.gmra.mrb[0].mxu0 %v2302
    %v2526 = vpop.f32.mrb[0].mxu0
    %v2527 = vadd.f32 0.0, %v2526
    %v2528 = vpop.f32.mrb[0].mxu0
    %2529 = vmatprep.mubr.f32.mxu0 0.0
    %2530 = vmatmul.mubr.f32.gmra.mrb[0].mxu0 %v2305
    %v2531 = vpop.f32.mrb[0].mxu0
    %v2532 = vadd.f32 0.0, %v2531
    %v2533 = vpop.f32.mrb[0].mxu0
    %2534 = vdwg.mxu0
    %v2535 = vadd.f32 %v2146, %v2377
    %v2536 = vadd.f32 %v2147, %v2382
    %v2537 = vadd.f32 %v2148, %v2387
    %v2538 = vadd.f32 %v2149, %v2392
    %v2539 = vadd.f32 %v2150, %v2397
    %v2540 = vadd.f32 %v2151, %v2402
    %v2541 = vadd.f32 %v2152, %v2407
    %v2542 = vadd.f32 %v2153, %v2412
    %v2543 = vadd.f32 %v2154, %v2417
    %v2544 = vadd.f32 %v2155, %v2422
    %v2545 = vadd.f32 %v2156, %v2427
    %v2546 = vadd.f32 %v2157, %v2432
    %v2547 = vadd.f32 %v2158, %v2437
    %v2548 = vadd.f32 %v2159, %v2442
    %v2549 = vadd.f32 %v2160, %v2447
    %v2550 = vadd.f32 %v2161, %v2452
    %v2551 = vadd.f32 %v2162, %v2457
    %v2552 = vadd.f32 %v2163, %v2462
    %v2553 = vadd.f32 %v2164, %v2467
    %v2554 = vadd.f32 %v2165, %v2472
    %v2555 = vadd.f32 %v2166, %v2477
    %v2556 = vadd.f32 %v2167, %v2482
    %v2557 = vadd.f32 %v2168, %v2487
    %v2558 = vadd.f32 %v2169, %v2492
    %v2559 = vadd.f32 %v2170, %v2497
    %v2560 = vadd.f32 %v2171, %v2502
    %v2561 = vadd.f32 %v2172, %v2507
    %v2562 = vadd.f32 %v2173, %v2512
    %v2563 = vadd.f32 %v2174, %v2517
    %v2564 = vadd.f32 %v2175, %v2522
    %v2565 = vadd.f32 %v2176, %v2527
    %v2566 = vadd.f32 %v2177, %v2532
    %v2567 = vld [vmem:[%s1 + $0xc] sm:$0x1]
    %v2568 = vlaneseq
    %v2569 = vshrl.u32 %v2568, 7
    %v2570 = vsub.s32 0, %v2569
    %v2571 = vrot.slane %v2567, %v2570
    %v2572 = vadd.f32 %v2535, %v2571
    %v2573 = vadd.f32 %v2536, %v2571
    %v2574 = vadd.f32 %v2537, %v2571
    %v2575 = vadd.f32 %v2538, %v2571
    %v2576 = vadd.f32 %v2539, %v2571
    %v2577 = vadd.f32 %v2540, %v2571
    %v2578 = vadd.f32 %v2541, %v2571
    %v2579 = vadd.f32 %v2542, %v2571
    %v2580 = vadd.f32 %v2543, %v2571
    %v2581 = vadd.f32 %v2544, %v2571
    %v2582 = vadd.f32 %v2545, %v2571
    %v2583 = vadd.f32 %v2546, %v2571
    %v2584 = vadd.f32 %v2547, %v2571
    %v2585 = vadd.f32 %v2548, %v2571
    %v2586 = vadd.f32 %v2549, %v2571
    %v2587 = vadd.f32 %v2550, %v2571
    %v2588 = vadd.f32 %v2551, %v2571
    %v2589 = vadd.f32 %v2552, %v2571
    %v2590 = vadd.f32 %v2553, %v2571
    %v2591 = vadd.f32 %v2554, %v2571
    %v2592 = vadd.f32 %v2555, %v2571
    %v2593 = vadd.f32 %v2556, %v2571
    %v2594 = vadd.f32 %v2557, %v2571
    %v2595 = vadd.f32 %v2558, %v2571
    %v2596 = vadd.f32 %v2559, %v2571
    %v2597 = vadd.f32 %v2560, %v2571
    %v2598 = vadd.f32 %v2561, %v2571
    %v2599 = vadd.f32 %v2562, %v2571
    %v2600 = vadd.f32 %v2563, %v2571
    %v2601 = vadd.f32 %v2564, %v2571
    %v2602 = vadd.f32 %v2565, %v2571
    %v2603 = vadd.f32 %v2566, %v2571
    %vm2604 = vcmask 130048
    %2605 = vst.msk [vmem:[#allocation3] sm:$0xff] %vm2604, %v2572
    %2606 = vst.msk [vmem:[#allocation3 + $0x8] sm:$0xff] %vm2604, %v2573
    %2607 = vst.msk [vmem:[#allocation3 + $0x10] sm:$0xff] %vm2604, %v2574
    %2608 = vst.msk [vmem:[#allocation3 + $0x18] sm:$0xff] %vm2604, %v2575
    %2609 = vst.msk [vmem:[#allocation3 + $0x20] sm:$0xff] %vm2604, %v2576
    %2610 = vst.msk [vmem:[#allocation3 + $0x28] sm:$0xff] %vm2604, %v2577
    %2611 = vst.msk [vmem:[#allocation3 + $0x30] sm:$0xff] %vm2604, %v2578
    %2612 = vst.msk [vmem:[#allocation3 + $0x38] sm:$0xff] %vm2604, %v2579
    %2613 = vst.msk [vmem:[#allocation3 + $0x40] sm:$0xff] %vm2604, %v2580
    %2614 = vst.msk [vmem:[#allocation3 + $0x48] sm:$0xff] %vm2604, %v2581
    %2615 = vst.msk [vmem:[#allocation3 + $0x50] sm:$0xff] %vm2604, %v2582
    %2616 = vst.msk [vmem:[#allocation3 + $0x58] sm:$0xff] %vm2604, %v2583
    %2617 = vst.msk [vmem:[#allocation3 + $0x60] sm:$0xff] %vm2604, %v2584
    %2618 = vst.msk [vmem:[#allocation3 + $0x68] sm:$0xff] %vm2604, %v2585
    %2619 = vst.msk [vmem:[#allocation3 + $0x70] sm:$0xff] %vm2604, %v2586
    %2620 = vst.msk [vmem:[#allocation3 + $0x78] sm:$0xff] %vm2604, %v2587
    %2621 = vst.msk [vmem:[#allocation3 + $0x80] sm:$0xff] %vm2604, %v2588
    %2622 = vst.msk [vmem:[#allocation3 + $0x88] sm:$0xff] %vm2604, %v2589
    %2623 = vst.msk [vmem:[#allocation3 + $0x90] sm:$0xff] %vm2604, %v2590
    %2624 = vst.msk [vmem:[#allocation3 + $0x98] sm:$0xff] %vm2604, %v2591
    %2625 = vst.msk [vmem:[#allocation3 + $0xa0] sm:$0xff] %vm2604, %v2592
    %2626 = vst.msk [vmem:[#allocation3 + $0xa8] sm:$0xff] %vm2604, %v2593
    %2627 = vst.msk [vmem:[#allocation3 + $0xb0] sm:$0xff] %vm2604, %v2594
    %2628 = vst.msk [vmem:[#allocation3 + $0xb8] sm:$0xff] %vm2604, %v2595
    %2629 = vst.msk [vmem:[#allocation3 + $0xc0] sm:$0xff] %vm2604, %v2596
    %2630 = vst.msk [vmem:[#allocation3 + $0xc8] sm:$0xff] %vm2604, %v2597
    %2631 = vst.msk [vmem:[#allocation3 + $0xd0] sm:$0xff] %vm2604, %v2598
    %2632 = vst.msk [vmem:[#allocation3 + $0xd8] sm:$0xff] %vm2604, %v2599
    %2633 = vst.msk [vmem:[#allocation3 + $0xe0] sm:$0xff] %vm2604, %v2600
    %2634 = vst.msk [vmem:[#allocation3 + $0xe8] sm:$0xff] %vm2604, %v2601
    %2635 = vst.msk [vmem:[#allocation3 + $0xf0] sm:$0xff] %vm2604, %v2602
    %2636 = vst.msk [vmem:[#allocation3 + $0xf8] sm:$0xff] %vm2604, %v2603
    %v2637 = vld [vmem:[#allocation3] sm:$0xff]
    %v2638 = vld [vmem:[#allocation3 + $0x8] sm:$0xff]
    %v2639 = vld [vmem:[#allocation3 + $0x10] sm:$0xff]
    %v2640 = vld [vmem:[#allocation3 + $0x18] sm:$0xff]
    %v2641 = vld [vmem:[#allocation3 + $0x20] sm:$0xff]
    %v2642 = vld [vmem:[#allocation3 + $0x28] sm:$0xff]
    %v2643 = vld [vmem:[#allocation3 + $0x30] sm:$0x3f]
    %v2644 = vsel %vm2604, %v2637, 0.0
    %v2645 = vsel %vm2604, %v2638, 0.0
    %v2646 = vadd.f32 %v2644, %v2645
    %v2647 = vsel %vm2604, %v2639, 0.0
    %v2648 = vadd.f32 %v2646, %v2647
    %v2649 = vsel %vm2604, %v2640, 0.0
    %v2650 = vadd.f32 %v2648, %v2649
    %v2651 = vsel %vm2604, %v2641, 0.0
    %v2652 = vadd.f32 %v2650, %v2651
    %v2653 = vsel %vm2604, %v2642, 0.0
    %v2654 = vadd.f32 %v2652, %v2653
    %vm2655 = vcmask 128000
    %v2656 = vsel %vm2655, %v2643, 0.0
    %v2657 = vadd.f32 %v2654, %v2656
    %v2658 = vrot.slane %v2657, 4
    %v2659 = vadd.f32 %v2657, %v2658
    %v2660 = vrot.slane %v2659, 2
    %v2661 = vadd.f32 %v2659, %v2660
    %v2662 = vrot.slane %v2661, 1
    %v2663 = vadd.f32 %v2661, %v2662
    %v2664 = vadd.f32 %v2663, 0.0
    %v2665 = vmul.f32 %v2637, %v2637
    %v2666 = vmul.f32 %v2638, %v2638
    %v2667 = vmul.f32 %v2639, %v2639
    %v2668 = vmul.f32 %v2640, %v2640
    %v2669 = vmul.f32 %v2641, %v2641
    %v2670 = vmul.f32 %v2642, %v2642
    %v2671 = vmul.f32 %v2643, %v2643
    %v2672 = vsel %vm2604, %v2665, 0.0
    %v2673 = vsel %vm2604, %v2666, 0.0
    %v2674 = vadd.f32 %v2672, %v2673
    %v2675 = vsel %vm2604, %v2667, 0.0
    %v2676 = vadd.f32 %v2674, %v2675
    %v2677 = vsel %vm2604, %v2668, 0.0
    %v2678 = vadd.f32 %v2676, %v2677
    %v2679 = vsel %vm2604, %v2669, 0.0
    %v2680 = vadd.f32 %v2678, %v2679
    %v2681 = vsel %vm2604, %v2670, 0.0
    %v2682 = vadd.f32 %v2680, %v2681
    %v2683 = vsel %vm2655, %v2671, 0.0
    %v2684 = vadd.f32 %v2682, %v2683
    %v2685 = vrot.slane %v2684, 4
    %v2686 = vadd.f32 %v2684, %v2685
    %v2687 = vrot.slane %v2686, 2
    %v2688 = vadd.f32 %v2686, %v2687
    %v2689 = vrot.slane %v2688, 1
    %v2690 = vadd.f32 %v2688, %v2689
    %v2691 = vadd.f32 %v2690, 0.0
    %v2692 = vld [vmem:[#allocation3 + $0x40] sm:$0xff]
    %v2693 = vld [vmem:[#allocation3 + $0x48] sm:$0xff]
    %v2694 = vld [vmem:[#allocation3 + $0x50] sm:$0xff]
    %v2695 = vld [vmem:[#allocation3 + $0x58] sm:$0xff]
    %v2696 = vld [vmem:[#allocation3 + $0x60] sm:$0xff]
    %v2697 = vld [vmem:[#allocation3 + $0x68] sm:$0xff]
    %v2698 = vld [vmem:[#allocation3 + $0x70] sm:$0x3f]
    %v2699 = vsel %vm2604, %v2692, 0.0
    %v2700 = vsel %vm2604, %v2693, 0.0
    %v2701 = vadd.f32 %v2699, %v2700
    %v2702 = vsel %vm2604, %v2694, 0.0
    %v2703 = vadd.f32 %v2701, %v2702
    %v2704 = vsel %vm2604, %v2695, 0.0
    %v2705 = vadd.f32 %v2703, %v2704
    %v2706 = vsel %vm2604, %v2696, 0.0
    %v2707 = vadd.f32 %v2705, %v2706
    %v2708 = vsel %vm2604, %v2697, 0.0
    %v2709 = vadd.f32 %v2707, %v2708
    %v2710 = vsel %vm2655, %v2698, 0.0
    %v2711 = vadd.f32 %v2709, %v2710
    %v2712 = vrot.slane %v2711, 4
    %v2713 = vadd.f32 %v2711, %v2712
    %v2714 = vrot.slane %v2713, 2
    %v2715 = vadd.f32 %v2713, %v2714
    %v2716 = vrot.slane %v2715, 1
    %v2717 = vadd.f32 %v2715, %v2716
    %v2718 = vadd.f32 %v2664, %v2717
    %v2719 = vmul.f32 %v2692, %v2692
    %v2720 = vmul.f32 %v2693, %v2693
    %v2721 = vmul.f32 %v2694, %v2694
    %v2722 = vmul.f32 %v2695, %v2695
    %v2723 = vmul.f32 %v2696, %v2696
    %v2724 = vmul.f32 %v2697, %v2697
    %v2725 = vmul.f32 %v2698, %v2698
    %v2726 = vsel %vm2604, %v2719, 0.0
    %v2727 = vsel %vm2604, %v2720, 0.0
    %v2728 = vadd.f32 %v2726, %v2727
    %v2729 = vsel %vm2604, %v2721, 0.0
    %v2730 = vadd.f32 %v2728, %v2729
    %v2731 = vsel %vm2604, %v2722, 0.0
    %v2732 = vadd.f32 %v2730, %v2731
    %v2733 = vsel %vm2604, %v2723, 0.0
    %v2734 = vadd.f32 %v2732, %v2733
    %v2735 = vsel %vm2604, %v2724, 0.0
    %v2736 = vadd.f32 %v2734, %v2735
    %v2737 = vsel %vm2655, %v2725, 0.0
    %v2738 = vadd.f32 %v2736, %v2737
    %v2739 = vrot.slane %v2738, 4
    %v2740 = vadd.f32 %v2738, %v2739
    %v2741 = vrot.slane %v2740, 2
    %v2742 = vadd.f32 %v2740, %v2741
    %v2743 = vrot.slane %v2742, 1
    %v2744 = vadd.f32 %v2742, %v2743
    %v2745 = vadd.f32 %v2691, %v2744
    %v2746 = vld [vmem:[#allocation3 + $0x80] sm:$0xff]
    %v2747 = vld [vmem:[#allocation3 + $0x88] sm:$0xff]
    %v2748 = vld [vmem:[#allocation3 + $0x90] sm:$0xff]
    %v2749 = vld [vmem:[#allocation3 + $0x98] sm:$0xff]
    %v2750 = vld [vmem:[#allocation3 + $0xa0] sm:$0xff]
    %v2751 = vld [vmem:[#allocation3 + $0xa8] sm:$0xff]
    %v2752 = vld [vmem:[#allocation3 + $0xb0] sm:$0x3f]
    %v2753 = vsel %vm2604, %v2746, 0.0
    %v2754 = vsel %vm2604, %v2747, 0.0
    %v2755 = vadd.f32 %v2753, %v2754
    %v2756 = vsel %vm2604, %v2748, 0.0
    %v2757 = vadd.f32 %v2755, %v2756
    %v2758 = vsel %vm2604, %v2749, 0.0
    %v2759 = vadd.f32 %v2757, %v2758
    %v2760 = vsel %vm2604, %v2750, 0.0
    %v2761 = vadd.f32 %v2759, %v2760
    %v2762 = vsel %vm2604, %v2751, 0.0
    %v2763 = vadd.f32 %v2761, %v2762
    %v2764 = vsel %vm2655, %v2752, 0.0
    %v2765 = vadd.f32 %v2763, %v2764
    %v2766 = vrot.slane %v2765, 4
    %v2767 = vadd.f32 %v2765, %v2766
    %v2768 = vrot.slane %v2767, 2
    %v2769 = vadd.f32 %v2767, %v2768
    %v2770 = vrot.slane %v2769, 1
    %v2771 = vadd.f32 %v2769, %v2770
    %v2772 = vadd.f32 %v2718, %v2771
    %v2773 = vmul.f32 %v2746, %v2746
    %v2774 = vmul.f32 %v2747, %v2747
    %v2775 = vmul.f32 %v2748, %v2748
    %v2776 = vmul.f32 %v2749, %v2749
    %v2777 = vmul.f32 %v2750, %v2750
    %v2778 = vmul.f32 %v2751, %v2751
    %v2779 = vmul.f32 %v2752, %v2752
    %v2780 = vsel %vm2604, %v2773, 0.0
    %v2781 = vsel %vm2604, %v2774, 0.0
    %v2782 = vadd.f32 %v2780, %v2781
    %v2783 = vsel %vm2604, %v2775, 0.0
    %v2784 = vadd.f32 %v2782, %v2783
    %v2785 = vsel %vm2604, %v2776, 0.0
    %v2786 = vadd.f32 %v2784, %v2785
    %v2787 = vsel %vm2604, %v2777, 0.0
    %v2788 = vadd.f32 %v2786, %v2787
    %v2789 = vsel %vm2604, %v2778, 0.0
    %v2790 = vadd.f32 %v2788, %v2789
    %v2791 = vsel %vm2655, %v2779, 0.0
    %v2792 = vadd.f32 %v2790, %v2791
    %v2793 = vrot.slane %v2792, 4
    %v2794 = vadd.f32 %v2792, %v2793
    %v2795 = vrot.slane %v2794, 2
    %v2796 = vadd.f32 %v2794, %v2795
    %v2797 = vrot.slane %v2796, 1
    %v2798 = vadd.f32 %v2796, %v2797
    %v2799 = vadd.f32 %v2745, %v2798
    %v2800 = vld [vmem:[#allocation3 + $0xc0] sm:$0xff]
    %v2801 = vld [vmem:[#allocation3 + $0xc8] sm:$0xff]
    %v2802 = vld [vmem:[#allocation3 + $0xd0] sm:$0xff]
    %v2803 = vld [vmem:[#allocation3 + $0xd8] sm:$0xff]
    %v2804 = vld [vmem:[#allocation3 + $0xe0] sm:$0xff]
    %v2805 = vld [vmem:[#allocation3 + $0xe8] sm:$0xff]
    %v2806 = vld [vmem:[#allocation3 + $0xf0] sm:$0x3f]
    %v2807 = vsel %vm2604, %v2800, 0.0
    %v2808 = vsel %vm2604, %v2801, 0.0
    %v2809 = vadd.f32 %v2807, %v2808
    %v2810 = vsel %vm2604, %v2802, 0.0
    %v2811 = vadd.f32 %v2809, %v2810
    %v2812 = vsel %vm2604, %v2803, 0.0
    %v2813 = vadd.f32 %v2811, %v2812
    %v2814 = vsel %vm2604, %v2804, 0.0
    %v2815 = vadd.f32 %v2813, %v2814
    %v2816 = vsel %vm2604, %v2805, 0.0
    %v2817 = vadd.f32 %v2815, %v2816
    %v2818 = vsel %vm2655, %v2806, 0.0
    %v2819 = vadd.f32 %v2817, %v2818
    %v2820 = vrot.slane %v2819, 4
    %v2821 = vadd.f32 %v2819, %v2820
    %v2822 = vrot.slane %v2821, 2
    %v2823 = vadd.f32 %v2821, %v2822
    %v2824 = vrot.slane %v2823, 1
    %v2825 = vadd.f32 %v2823, %v2824
    %v2826 = vadd.f32 %v2772, %v2825
    %v2827 = vmul.f32 %v2800, %v2800
    %v2828 = vmul.f32 %v2801, %v2801
    %v2829 = vmul.f32 %v2802, %v2802
    %v2830 = vmul.f32 %v2803, %v2803
    %v2831 = vmul.f32 %v2804, %v2804
    %v2832 = vmul.f32 %v2805, %v2805
    %v2833 = vmul.f32 %v2806, %v2806
    %v2834 = vsel %vm2604, %v2827, 0.0
    %v2835 = vsel %vm2604, %v2828, 0.0
    %v2836 = vadd.f32 %v2834, %v2835
    %v2837 = vsel %vm2604, %v2829, 0.0
    %v2838 = vadd.f32 %v2836, %v2837
    %v2839 = vsel %vm2604, %v2830, 0.0
    %v2840 = vadd.f32 %v2838, %v2839
    %v2841 = vsel %vm2604, %v2831, 0.0
    %v2842 = vadd.f32 %v2840, %v2841
    %v2843 = vsel %vm2604, %v2832, 0.0
    %v2844 = vadd.f32 %v2842, %v2843
    %v2845 = vsel %vm2655, %v2833, 0.0
    %v2846 = vadd.f32 %v2844, %v2845
    %v2847 = vrot.slane %v2846, 4
    %v2848 = vadd.f32 %v2846, %v2847
    %v2849 = vrot.slane %v2848, 2
    %v2850 = vadd.f32 %v2848, %v2849
    %v2851 = vrot.slane %v2850, 1
    %v2852 = vadd.f32 %v2850, %v2851
    %v2853 = vadd.f32 %v2799, %v2852
    %v2854 = vrcp.pop 216.0
    %v2855 = vmul.f32 %v2826, %v2854
    %v2856 = vmul.f32 %v2853, %v2854
    %v2857 = vmul.f32 %v2855, %v2855
    %v2858 = vsub.f32 %v2856, %v2857
    %v2859 = vmax.f32 %v2858, 0.0
    %v2860 = vadd.f32 %v2859, 1e-05
    %v2861 = vrsqrt.pop %v2860
    %2862 = vst.msk [vmem:[#allocation4] sm:$0xff] %vm2604, 0.0
    %2863 = vst.msk [vmem:[#allocation4 + $0x8] sm:$0xff] %vm2604, 0.0
    %2864 = vst.msk [vmem:[#allocation4 + $0x10] sm:$0xff] %vm2604, 0.0
    %2865 = vst.msk [vmem:[#allocation4 + $0x18] sm:$0xff] %vm2604, 0.0
    %2866 = vst.msk [vmem:[#allocation4 + $0x20] sm:$0xff] %vm2604, 0.0
    %2867 = vst.msk [vmem:[#allocation4 + $0x28] sm:$0xff] %vm2604, 0.0
    %2868 = vst.msk [vmem:[#allocation4 + $0x30] sm:$0xff] %vm2604, 0.0
    %2869 = vst.msk [vmem:[#allocation4 + $0x38] sm:$0xff] %vm2604, 0.0
    %2870 = vst.msk [vmem:[#allocation4 + $0x40] sm:$0xff] %vm2604, 0.0
    %2871 = vst.msk [vmem:[#allocation4 + $0x48] sm:$0xff] %vm2604, 0.0
    %2872 = vst.msk [vmem:[#allocation4 + $0x50] sm:$0xff] %vm2604, 0.0
    %2873 = vst.msk [vmem:[#allocation4 + $0x58] sm:$0xff] %vm2604, 0.0
    %2874 = vst.msk [vmem:[#allocation4 + $0x60] sm:$0xff] %vm2604, 0.0
    %v2875 = vld [vmem:[#allocation3] ss:$3 sm:$0xff]
    %s2876 = scalar_lea.vmem [#allocation3], 24
    %v2877 = vld [vmem:[%s2876] ss:$3 sm:$0xff]
    %s2878 = scalar_lea.vmem [#allocation3], 48
    %v2879 = vld [vmem:[%s2878] ss:$3 sm:$0x3]
    %s2880 = scalar_lea.vmem [#allocation3], 1
    %v2881 = vld [vmem:[%s2880] ss:$3 sm:$0xff]
    %s2882 = scalar_lea.vmem [#allocation3], 25
    %v2883 = vld [vmem:[%s2882] ss:$3 sm:$0xff]
    %s2884 = scalar_lea.vmem [#allocation3], 49
    %v2885 = vld [vmem:[%s2884] ss:$3 sm:$0x3]
    %v2886 = vmax.f32 %v2875, %v2881
    %v2887 = vmax.f32 %v2877, %v2883
    %v2888 = vmax.f32 %v2879, %v2885
    %s2889 = scalar_lea.vmem [#allocation3], 2
    %v2890 = vld [vmem:[%s2889] ss:$3 sm:$0xff]
    %s2891 = scalar_lea.vmem [#allocation3], 26
    %v2892 = vld [vmem:[%s2891] ss:$3 sm:$0xff]
    %s2893 = scalar_lea.vmem [#allocation3], 50
    %v2894 = vld [vmem:[%s2893] ss:$3 sm:$0x3]
    %v2895 = vmax.f32 %v2886, %v2890
    %v2896 = vmax.f32 %v2887, %v2892
    %v2897 = vmax.f32 %v2888, %v2894
    %v2898 = vsub.f32 %v2895, %v2855
    %v2899 = vsub.f32 %v2896, %v2855
    %v2900 = vsub.f32 %v2897, %v2855
    %v2901 = vmul.f32 %v2898, %v2861
    %v2902 = vmul.f32 %v2899, %v2861
    %v2903 = vmul.f32 %v2900, %v2861
    %v2904 = vmax.f32 %v2901, 0.0
    %v2905 = vmax.f32 %v2902, 0.0
    %v2906 = vmax.f32 %v2903, 0.0
    %v2908 = vrot.slane %v2904, 7
    %v2910 = vrot.slane %v2904, 6
    %v2914 = vrot.slane %v2904, 5
    %v2915 = vrot.slane %v2905, 5
    %v2916 = vsel %vm80, %v2914, %v2915
    %v2917 = vrot.slane %v2906, 5
    %v2918 = vsel %vm80, %v2915, %v2917
    %v2922 = vrot.slane %v2906, 4
    %v2924 = vrot.slane %v2906, 3
    %v2926 = vrot.slane %v2906, 2
    %v2928 = vsel %vm107, %v2904, %v2908
    %v2929 = vsel %vm109, %v2928, %v2910
    %v2930 = vsel %vm80, %v2929, %v2914
    %vm2931 = vcmask 1044480
    %v2932 = vsel %vm2931, %v2918, %v2922
    %vm2933 = vcmask 1045504
    %v2934 = vsel %vm2933, %v2932, %v2924
    %vm2935 = vcmask 1046528
    %v2936 = vsel %vm2935, %v2934, %v2926
    %2937 = vst.msk [vmem:[#allocation4] sm:$0xff] %vm2604, %v2930
    %2938 = vst.msk [vmem:[#allocation4 + $0x8] sm:$0xff] %vm2604, %v2916
    %2939 = vst.msk [vmem:[#allocation4 + $0x10] sm:$0xff] %vm2604, %v2936
    %s2940 = scalar_lea.vmem [#allocation3], 64
    %v2941 = vld [vmem:[%s2940] ss:$3 sm:$0xff]
    %s2942 = scalar_lea.vmem [#allocation3], 88
    %v2943 = vld [vmem:[%s2942] ss:$3 sm:$0xff]
    %s2944 = scalar_lea.vmem [#allocation3], 112
    %v2945 = vld [vmem:[%s2944] ss:$3 sm:$0x3]
    %s2946 = scalar_lea.vmem [#allocation3], 65
    %v2947 = vld [vmem:[%s2946] ss:$3 sm:$0xff]
    %s2948 = scalar_lea.vmem [#allocation3], 89
    %v2949 = vld [vmem:[%s2948] ss:$3 sm:$0xff]
    %s2950 = scalar_lea.vmem [#allocation3], 113
    %v2951 = vld [vmem:[%s2950] ss:$3 sm:$0x3]
    %v2952 = vmax.f32 %v2941, %v2947
    %v2953 = vmax.f32 %v2943, %v2949
    %v2954 = vmax.f32 %v2945, %v2951
    %s2955 = scalar_lea.vmem [#allocation3], 66
    %v2956 = vld [vmem:[%s2955] ss:$3 sm:$0xff]
    %s2957 = scalar_lea.vmem [#allocation3], 90
    %v2958 = vld [vmem:[%s2957] ss:$3 sm:$0xff]
    %s2959 = scalar_lea.vmem [#allocation3], 114
    %v2960 = vld [vmem:[%s2959] ss:$3 sm:$0x3]
    %v2961 = vmax.f32 %v2952, %v2956
    %v2962 = vmax.f32 %v2953, %v2958
    %v2963 = vmax.f32 %v2954, %v2960
    %v2964 = vsub.f32 %v2961, %v2855
    %v2965 = vsub.f32 %v2962, %v2855
    %v2966 = vsub.f32 %v2963, %v2855
    %v2967 = vmul.f32 %v2964, %v2861
    %v2968 = vmul.f32 %v2965, %v2861
    %v2969 = vmul.f32 %v2966, %v2861
    %v2970 = vmax.f32 %v2967, 0.0
    %v2971 = vmax.f32 %v2968, 0.0
    %v2972 = vmax.f32 %v2969, 0.0
    %v2974 = vrot.slane %v2970, 7
    %v2976 = vrot.slane %v2970, 6
    %v2980 = vrot.slane %v2970, 5
    %v2981 = vrot.slane %v2971, 5
    %v2982 = vsel %vm80, %v2980, %v2981
    %v2983 = vrot.slane %v2972, 5
    %v2984 = vsel %vm80, %v2981, %v2983
    %v2988 = vrot.slane %v2972, 4
    %v2990 = vrot.slane %v2972, 3
    %v2992 = vrot.slane %v2972, 2
    %v2994 = vsel %vm107, %v2970, %v2974
    %v2995 = vsel %vm109, %v2994, %v2976
    %v2996 = vsel %vm80, %v2995, %v2980
    %v2997 = vsel %vm2931, %v2984, %v2988
    %v2998 = vsel %vm2933, %v2997, %v2990
    %v2999 = vsel %vm2935, %v2998, %v2992
    %3000 = vst.msk [vmem:[#allocation4 + $0x18] sm:$0xff] %vm2604, %v2996
    %3001 = vst.msk [vmem:[#allocation4 + $0x20] sm:$0xff] %vm2604, %v2982
    %3002 = vst.msk [vmem:[#allocation4 + $0x28] sm:$0xff] %vm2604, %v2999
    %s3003 = scalar_lea.vmem [#allocation3], 128
    %v3004 = vld [vmem:[%s3003] ss:$3 sm:$0xff]
    %s3005 = scalar_lea.vmem [#allocation3], 152
    %v3006 = vld [vmem:[%s3005] ss:$3 sm:$0xff]
    %s3007 = scalar_lea.vmem [#allocation3], 176
    %v3008 = vld [vmem:[%s3007] ss:$3 sm:$0x3]
    %s3009 = scalar_lea.vmem [#allocation3], 129
    %v3010 = vld [vmem:[%s3009] ss:$3 sm:$0xff]
    %s3011 = scalar_lea.vmem [#allocation3], 153
    %v3012 = vld [vmem:[%s3011] ss:$3 sm:$0xff]
    %s3013 = scalar_lea.vmem [#allocation3], 177
    %v3014 = vld [vmem:[%s3013] ss:$3 sm:$0x3]
    %v3015 = vmax.f32 %v3004, %v3010
    %v3016 = vmax.f32 %v3006, %v3012
    %v3017 = vmax.f32 %v3008, %v3014
    %s3018 = scalar_lea.vmem [#allocation3], 130
    %v3019 = vld [vmem:[%s3018] ss:$3 sm:$0xff]
    %s3020 = scalar_lea.vmem [#allocation3], 154
    %v3021 = vld [vmem:[%s3020] ss:$3 sm:$0xff]
    %s3022 = scalar_lea.vmem [#allocation3], 178
    %v3023 = vld [vmem:[%s3022] ss:$3 sm:$0x3]
    %v3024 = vmax.f32 %v3015, %v3019
    %v3025 = vmax.f32 %v3016, %v3021
    %v3026 = vmax.f32 %v3017, %v3023
    %v3027 = vsub.f32 %v3024, %v2855
    %v3028 = vsub.f32 %v3025, %v2855
    %v3029 = vsub.f32 %v3026, %v2855
    %v3030 = vmul.f32 %v3027, %v2861
    %v3031 = vmul.f32 %v3028, %v2861
    %v3032 = vmul.f32 %v3029, %v2861
    %v3033 = vmax.f32 %v3030, 0.0
    %v3034 = vmax.f32 %v3031, 0.0
    %v3035 = vmax.f32 %v3032, 0.0
    %v3037 = vrot.slane %v3033, 7
    %v3039 = vrot.slane %v3033, 6
    %v3043 = vrot.slane %v3033, 5
    %v3044 = vrot.slane %v3034, 5
    %v3045 = vsel %vm80, %v3043, %v3044
    %v3046 = vrot.slane %v3035, 5
    %v3047 = vsel %vm80, %v3044, %v3046
    %v3051 = vrot.slane %v3035, 4
    %v3053 = vrot.slane %v3035, 3
    %v3055 = vrot.slane %v3035, 2
    %v3057 = vsel %vm107, %v3033, %v3037
    %v3058 = vsel %vm109, %v3057, %v3039
    %v3059 = vsel %vm80, %v3058, %v3043
    %v3060 = vsel %vm2931, %v3047, %v3051
    %v3061 = vsel %vm2933, %v3060, %v3053
    %v3062 = vsel %vm2935, %v3061, %v3055
    %3063 = vst.msk [vmem:[#allocation4 + $0x30] sm:$0xff] %vm2604, %v3059
    %3064 = vst.msk [vmem:[#allocation4 + $0x38] sm:$0xff] %vm2604, %v3045
    %3065 = vst.msk [vmem:[#allocation4 + $0x40] sm:$0xff] %vm2604, %v3062
    %s3066 = scalar_lea.vmem [#allocation3], 192
    %v3067 = vld [vmem:[%s3066] ss:$3 sm:$0xff]
    %s3068 = scalar_lea.vmem [#allocation3], 216
    %v3069 = vld [vmem:[%s3068] ss:$3 sm:$0xff]
    %s3070 = scalar_lea.vmem [#allocation3], 240
    %v3071 = vld [vmem:[%s3070] ss:$3 sm:$0x3]
    %s3072 = scalar_lea.vmem [#allocation3], 193
    %v3073 = vld [vmem:[%s3072] ss:$3 sm:$0xff]
    %s3074 = scalar_lea.vmem [#allocation3], 217
    %v3075 = vld [vmem:[%s3074] ss:$3 sm:$0xff]
    %s3076 = scalar_lea.vmem [#allocation3], 241
    %v3077 = vld [vmem:[%s3076] ss:$3 sm:$0x3]
    %v3078 = vmax.f32 %v3067, %v3073
    %v3079 = vmax.f32 %v3069, %v3075
    %v3080 = vmax.f32 %v3071, %v3077
    %s3081 = scalar_lea.vmem [#allocation3], 194
    %v3082 = vld [vmem:[%s3081] ss:$3 sm:$0xff]
    %s3083 = scalar_lea.vmem [#allocation3], 218
    %v3084 = vld [vmem:[%s3083] ss:$3 sm:$0xff]
    %s3085 = scalar_lea.vmem [#allocation3], 242
    %v3086 = vld [vmem:[%s3085] ss:$3 sm:$0x3]
    %v3087 = vmax.f32 %v3078, %v3082
    %v3088 = vmax.f32 %v3079, %v3084
    %v3089 = vmax.f32 %v3080, %v3086
    %v3090 = vsub.f32 %v3087, %v2855
    %v3091 = vsub.f32 %v3088, %v2855
    %v3092 = vsub.f32 %v3089, %v2855
    %v3093 = vmul.f32 %v3090, %v2861
    %v3094 = vmul.f32 %v3091, %v2861
    %v3095 = vmul.f32 %v3092, %v2861
    %v3096 = vmax.f32 %v3093, 0.0
    %v3097 = vmax.f32 %v3094, 0.0
    %v3098 = vmax.f32 %v3095, 0.0
    %v3100 = vrot.slane %v3096, 7
    %v3102 = vrot.slane %v3096, 6
    %v3106 = vrot.slane %v3096, 5
    %v3107 = vrot.slane %v3097, 5
    %v3108 = vsel %vm80, %v3106, %v3107
    %v3109 = vrot.slane %v3098, 5
    %v3110 = vsel %vm80, %v3107, %v3109
    %v3114 = vrot.slane %v3098, 4
    %v3116 = vrot.slane %v3098, 3
    %v3118 = vrot.slane %v3098, 2
    %v3120 = vsel %vm107, %v3096, %v3100
    %v3121 = vsel %vm109, %v3120, %v3102
    %v3122 = vsel %vm80, %v3121, %v3106
    %v3123 = vsel %vm2931, %v3110, %v3114
    %v3124 = vsel %vm2933, %v3123, %v3116
    %v3125 = vsel %vm2935, %v3124, %v3118
    %3126 = vst.msk [vmem:[#allocation4 + $0x48] sm:$0xff] %vm2604, %v3122
    %3127 = vst.msk [vmem:[#allocation4 + $0x50] sm:$0xff] %vm2604, %v3108
    %3128 = vst.msk [vmem:[#allocation4 + $0x58] sm:$0xff] %vm2604, %v3125
    %v3129 = vld [vmem:[#allocation4] sm:$0xff]
    %v3130 = vld [vmem:[#allocation4 + $0x8] sm:$0xff]
    %v3131 = vld [vmem:[#allocation4 + $0x10] sm:$0xff]
    %v3132 = vld [vmem:[#allocation4 + $0x18] sm:$0xff]
    %v3133 = vld [vmem:[#allocation4 + $0x20] sm:$0xff]
    %v3134 = vld [vmem:[#allocation4 + $0x28] sm:$0xff]
    %v3135 = vld [vmem:[#allocation4 + $0x30] sm:$0xff]
    %v3136 = vld [vmem:[#allocation4 + $0x38] sm:$0xff]
    %v3137 = vld [vmem:[#allocation4 + $0x40] sm:$0xff]
    %v3138 = vld [vmem:[#allocation4 + $0x48] sm:$0xff]
    %v3139 = vld [vmem:[#allocation4 + $0x50] sm:$0xff]
    %v3140 = vld [vmem:[#allocation4 + $0x58] sm:$0xff]
    %v3141 = vld [vmem:[%s1 + $0x10] sm:$0xff]
    %v3142 = vld [vmem:[%s1 + $0x18] sm:$0xff]
    %v3143 = vld [vmem:[#allocation4 + $0x1] sm:$0xff]
    %v3144 = vld [vmem:[#allocation4 + $0x9] sm:$0xff]
    %v3145 = vld [vmem:[#allocation4 + $0x11] sm:$0xff]
    %v3146 = vld [vmem:[#allocation4 + $0x19] sm:$0xff]
    %v3147 = vld [vmem:[#allocation4 + $0x21] sm:$0xff]
    %v3148 = vld [vmem:[#allocation4 + $0x29] sm:$0xff]
    %v3149 = vld [vmem:[#allocation4 + $0x31] sm:$0xff]
    %v3150 = vld [vmem:[#allocation4 + $0x39] sm:$0xff]
    %v3151 = vld [vmem:[#allocation4 + $0x41] sm:$0xff]
    %v3152 = vld [vmem:[#allocation4 + $0x49] sm:$0xff]
    %v3153 = vld [vmem:[#allocation4 + $0x51] sm:$0xff]
    %v3154 = vld [vmem:[#allocation4 + $0x59] sm:$0xff]
    %v3155 = vld [vmem:[%s1 + $0x20] sm:$0xff]
    %v3156 = vld [vmem:[%s1 + $0x28] sm:$0xff]
    %v3158 = vsel %vm2604, %v3143, 0
    %v3161 = vsel %vm2604, %v3144, 0
    %v3164 = vsel %vm2604, %v3145, 0
    %v3167 = vsel %vm2604, %v3146, 0
    %v3170 = vsel %vm2604, %v3147, 0
    %v3173 = vsel %vm2604, %v3148, 0
    %v3176 = vsel %vm2604, %v3149, 0
    %v3179 = vsel %vm2604, %v3150, 0
    %v3182 = vsel %vm2604, %v3151, 0
    %v3185 = vsel %vm2604, %v3152, 0
    %v3188 = vsel %vm2604, %v3153, 0
    %v3191 = vsel %vm2604, %v3154, 0
    %3193 = vmatprep.subr.mxu0 0.0
    %3194 = vmatpush1.msra.mxu0 %v3155
    %3195 = vmatprep.subr.mxu0 0.0
    %3196 = vmatpush1.msra.mxu0 %v3156
    %3197 = vmatprep.subr.mxu0 0.0
    %3198 = vmatpush1.msra.mxu0 0.0
    %3199 = vmatprep.subr.mxu0 0.0
    %3200 = vmatpush1.msra.mxu0 0.0
    %3201 = vmatprep.subr.mxu0 0.0
    %3202 = vmatpush1.msra.mxu0 0.0
    %3203 = vmatprep.subr.mxu0 0.0
    %3204 = vmatpush1.msra.mxu0 0.0
    %3205 = vmatprep.subr.mxu0 0.0
    %3206 = vmatpush1.msra.mxu0 0.0
    %3207 = vmatprep.subr.mxu0 0.0
    %3208 = vmatpush1.msra.mxu0 0.0
    %3209 = vmatprep.subr.mxu0 0.0
    %3210 = vmatpush1.msra.mxu0 0.0
    %3211 = vmatprep.subr.mxu0 0.0
    %3212 = vmatpush1.msra.mxu0 0.0
    %3213 = vmatprep.subr.mxu0 0.0
    %3214 = vmatpush1.msra.mxu0 0.0
    %3215 = vmatprep.subr.mxu0 0.0
    %3216 = vmatpush1.msra.mxu0 0.0
    %3217 = vmatprep.subr.mxu0 0.0
    %3218 = vmatpush1.msra.mxu0 0.0
    %3219 = vmatprep.subr.mxu0 0.0
    %3220 = vmatpush1.msra.mxu0 0.0
    %3221 = vmatprep.subr.mxu0 0.0
    %3222 = vmatpush1.msra.mxu0 0.0
    %3223 = vmatprep.subr.mxu0 0.0
    %3224 = vmatpush1.msra.mxu0 0.0
    %3225 = vmatprep.subr.mxu0 0.0
    %3226 = vmatpush1.msra.mxu0 0.0
    %3227 = vmatprep.subr.mxu0 0.0
    %3228 = vmatpush1.msra.mxu0 0.0
    %3229 = vmatprep.subr.mxu0 0.0
    %3230 = vmatpush1.msra.mxu0 0.0
    %3231 = vmatprep.subr.mxu0 0.0
    %3232 = vmatpush1.msra.mxu0 0.0
    %3233 = vmatprep.subr.mxu0 0.0
    %3234 = vmatpush1.msra.mxu0 0.0
    %3235 = vmatprep.subr.mxu0 0.0
    %3236 = vmatpush1.msra.mxu0 0.0
    %3237 = vmatprep.subr.mxu0 0.0
    %3238 = vmatpush1.msra.mxu0 0.0
    %3239 = vmatprep.subr.mxu0 0.0
    %3240 = vmatpush1.msra.mxu0 0.0
    %3241 = vmatprep.subr.mxu0 0.0
    %3242 = vmatpush1.msra.mxu0 0.0
    %3243 = vmatprep.subr.mxu0 0.0
    %3244 = vmatpush1.msra.mxu0 0.0
    %3245 = vmatprep.subr.mxu0 0.0
    %3246 = vmatpush1.msra.mxu0 0.0
    %3247 = vmatprep.subr.mxu0 0.0
    %3248 = vmatpush1.msra.mxu0 0.0
    %3249 = vmatprep.subr.mxu0 0.0
    %3250 = vmatpush1.msra.mxu0 0.0
    %3251 = vmatprep.subr.mxu0 0.0
    %3252 = vmatpush1.msra.mxu0 0.0
    %3253 = vmatprep.subr.mxu0 0.0
    %3254 = vmatpush1.msra.mxu0 0.0
    %3255 = vmatprep.subr.mxu0 0.0
    %3256 = vmatpush1.msra.mxu0 0.0
    %3257 = vmatprep.mubr.f32.mxu0 0.0
    %3258 = vmatmul.mubr.f32.gmra.mrb[0].mxu0 %v3158
    %v3259 = vpop.f32.mrb[0].mxu0
    %v3260 = vadd.f32 0.0, %v3259
    %v3261 = vpop.f32.mrb[0].mxu0
    %3262 = vmatprep.mubr.f32.mxu0 0.0
    %3263 = vmatmul.mubr.f32.gmra.mrb[0].mxu0 %v3161
    %v3264 = vpop.f32.mrb[0].mxu0
    %v3265 = vadd.f32 0.0, %v3264
    %v3266 = vpop.f32.mrb[0].mxu0
    %3267 = vmatprep.mubr.f32.mxu0 0.0
    %3268 = vmatmul.mubr.f32.gmra.mrb[0].mxu0 %v3164
    %v3269 = vpop.f32.mrb[0].mxu0
    %v3270 = vadd.f32 0.0, %v3269
    %v3271 = vpop.f32.mrb[0].mxu0
    %3272 = vmatprep.mubr.f32.mxu0 0.0
    %3273 = vmatmul.mubr.f32.gmra.mrb[0].mxu0 %v3167
    %v3274 = vpop.f32.mrb[0].mxu0
    %v3275 = vadd.f32 0.0, %v3274
    %v3276 = vpop.f32.mrb[0].mxu0
    %3277 = vmatprep.mubr.f32.mxu0 0.0
    %3278 = vmatmul.mubr.f32.gmra.mrb[0].mxu0 %v3170
    %v3279 = vpop.f32.mrb[0].mxu0
    %v3280 = vadd.f32 0.0, %v3279
    %v3281 = vpop.f32.mrb[0].mxu0
    %3282 = vmatprep.mubr.f32.mxu0 0.0
    %3283 = vmatmul.mubr.f32.gmra.mrb[0].mxu0 %v3173
    %v3284 = vpop.f32.mrb[0].mxu0
    %v3285 = vadd.f32 0.0, %v3284
    %v3286 = vpop.f32.mrb[0].mxu0
    %3287 = vmatprep.mubr.f32.mxu0 0.0
    %3288 = vmatmul.mubr.f32.gmra.mrb[0].mxu0 %v3176
    %v3289 = vpop.f32.mrb[0].mxu0
    %v3290 = vadd.f32 0.0, %v3289
    %v3291 = vpop.f32.mrb[0].mxu0
    %3292 = vmatprep.mubr.f32.mxu0 0.0
    %3293 = vmatmul.mubr.f32.gmra.mrb[0].mxu0 %v3179
    %v3294 = vpop.f32.mrb[0].mxu0
    %v3295 = vadd.f32 0.0, %v3294
    %v3296 = vpop.f32.mrb[0].mxu0
    %3297 = vmatprep.mubr.f32.mxu0 0.0
    %3298 = vmatmul.mubr.f32.gmra.mrb[0].mxu0 %v3182
    %v3299 = vpop.f32.mrb[0].mxu0
    %v3300 = vadd.f32 0.0, %v3299
    %v3301 = vpop.f32.mrb[0].mxu0
    %3302 = vmatprep.mubr.f32.mxu0 0.0
    %3303 = vmatmul.mubr.f32.gmra.mrb[0].mxu0 %v3185
    %v3304 = vpop.f32.mrb[0].mxu0
    %v3305 = vadd.f32 0.0, %v3304
    %v3306 = vpop.f32.mrb[0].mxu0
    %3307 = vmatprep.mubr.f32.mxu0 0.0
    %3308 = vmatmul.mubr.f32.gmra.mrb[0].mxu0 %v3188
    %v3309 = vpop.f32.mrb[0].mxu0
    %v3310 = vadd.f32 0.0, %v3309
    %v3311 = vpop.f32.mrb[0].mxu0
    %3312 = vmatprep.mubr.f32.mxu0 0.0
    %3313 = vmatmul.mubr.f32.gmra.mrb[0].mxu0 %v3191
    %v3314 = vpop.f32.mrb[0].mxu0
    %v3315 = vadd.f32 0.0, %v3314
    %v3316 = vpop.f32.mrb[0].mxu0
    %3317 = vdwg.mxu0
    %v3319 = vsel %vm2604, %v3129, 0
    %v3322 = vsel %vm2604, %v3130, 0
    %v3325 = vsel %vm2604, %v3131, 0
    %v3328 = vsel %vm2604, %v3132, 0
    %v3331 = vsel %vm2604, %v3133, 0
    %v3334 = vsel %vm2604, %v3134, 0
    %v3337 = vsel %vm2604, %v3135, 0
    %v3340 = vsel %vm2604, %v3136, 0
    %v3343 = vsel %vm2604, %v3137, 0
    %v3346 = vsel %vm2604, %v3138, 0
    %v3349 = vsel %vm2604, %v3139, 0
    %v3352 = vsel %vm2604, %v3140, 0
    %3354 = vmatprep.subr.mxu0 0.0
    %3355 = vmatpush1.msra.mxu0 %v3141
    %3356 = vmatprep.subr.mxu0 0.0
    %3357 = vmatpush1.msra.mxu0 %v3142
    %3358 = vmatprep.subr.mxu0 0.0
    %3359 = vmatpush1.msra.mxu0 0.0
    %3360 = vmatprep.subr.mxu0 0.0
    %3361 = vmatpush1.msra.mxu0 0.0
    %3362 = vmatprep.subr.mxu0 0.0
    %3363 = vmatpush1.msra.mxu0 0.0
    %3364 = vmatprep.subr.mxu0 0.0
    %3365 = vmatpush1.msra.mxu0 0.0
    %3366 = vmatprep.subr.mxu0 0.0
    %3367 = vmatpush1.msra.mxu0 0.0
    %3368 = vmatprep.subr.mxu0 0.0
    %3369 = vmatpush1.msra.mxu0 0.0
    %3370 = vmatprep.subr.mxu0 0.0
    %3371 = vmatpush1.msra.mxu0 0.0
    %3372 = vmatprep.subr.mxu0 0.0
    %3373 = vmatpush1.msra.mxu0 0.0
    %3374 = vmatprep.subr.mxu0 0.0
    %3375 = vmatpush1.msra.mxu0 0.0
    %3376 = vmatprep.subr.mxu0 0.0
    %3377 = vmatpush1.msra.mxu0 0.0
    %3378 = vmatprep.subr.mxu0 0.0
    %3379 = vmatpush1.msra.mxu0 0.0
    %3380 = vmatprep.subr.mxu0 0.0
    %3381 = vmatpush1.msra.mxu0 0.0
    %3382 = vmatprep.subr.mxu0 0.0
    %3383 = vmatpush1.msra.mxu0 0.0
    %3384 = vmatprep.subr.mxu0 0.0
    %3385 = vmatpush1.msra.mxu0 0.0
    %3386 = vmatprep.subr.mxu0 0.0
    %3387 = vmatpush1.msra.mxu0 0.0
    %3388 = vmatprep.subr.mxu0 0.0
    %3389 = vmatpush1.msra.mxu0 0.0
    %3390 = vmatprep.subr.mxu0 0.0
    %3391 = vmatpush1.msra.mxu0 0.0
    %3392 = vmatprep.subr.mxu0 0.0
    %3393 = vmatpush1.msra.mxu0 0.0
    %3394 = vmatprep.subr.mxu0 0.0
    %3395 = vmatpush1.msra.mxu0 0.0
    %3396 = vmatprep.subr.mxu0 0.0
    %3397 = vmatpush1.msra.mxu0 0.0
    %3398 = vmatprep.subr.mxu0 0.0
    %3399 = vmatpush1.msra.mxu0 0.0
    %3400 = vmatprep.subr.mxu0 0.0
    %3401 = vmatpush1.msra.mxu0 0.0
    %3402 = vmatprep.subr.mxu0 0.0
    %3403 = vmatpush1.msra.mxu0 0.0
    %3404 = vmatprep.subr.mxu0 0.0
    %3405 = vmatpush1.msra.mxu0 0.0
    %3406 = vmatprep.subr.mxu0 0.0
    %3407 = vmatpush1.msra.mxu0 0.0
    %3408 = vmatprep.subr.mxu0 0.0
    %3409 = vmatpush1.msra.mxu0 0.0
    %3410 = vmatprep.subr.mxu0 0.0
    %3411 = vmatpush1.msra.mxu0 0.0
    %3412 = vmatprep.subr.mxu0 0.0
    %3413 = vmatpush1.msra.mxu0 0.0
    %3414 = vmatprep.subr.mxu0 0.0
    %3415 = vmatpush1.msra.mxu0 0.0
    %3416 = vmatprep.subr.mxu0 0.0
    %3417 = vmatpush1.msra.mxu0 0.0
    %3418 = vmatprep.mubr.f32.mxu0 0.0
    %3419 = vmatmul.mubr.f32.gmra.mrb[0].mxu0 %v3319
    %v3420 = vpop.f32.mrb[0].mxu0
    %v3421 = vadd.f32 %v3260, %v3420
    %v3422 = vpop.f32.mrb[0].mxu0
    %3423 = vmatprep.mubr.f32.mxu0 0.0
    %3424 = vmatmul.mubr.f32.gmra.mrb[0].mxu0 %v3322
    %v3425 = vpop.f32.mrb[0].mxu0
    %v3426 = vadd.f32 %v3265, %v3425
    %v3427 = vpop.f32.mrb[0].mxu0
    %3428 = vmatprep.mubr.f32.mxu0 0.0
    %3429 = vmatmul.mubr.f32.gmra.mrb[0].mxu0 %v3325
    %v3430 = vpop.f32.mrb[0].mxu0
    %v3431 = vadd.f32 %v3270, %v3430
    %v3432 = vpop.f32.mrb[0].mxu0
    %3433 = vmatprep.mubr.f32.mxu0 0.0
    %3434 = vmatmul.mubr.f32.gmra.mrb[0].mxu0 %v3328
    %v3435 = vpop.f32.mrb[0].mxu0
    %v3436 = vadd.f32 %v3275, %v3435
    %v3437 = vpop.f32.mrb[0].mxu0
    %3438 = vmatprep.mubr.f32.mxu0 0.0
    %3439 = vmatmul.mubr.f32.gmra.mrb[0].mxu0 %v3331
    %v3440 = vpop.f32.mrb[0].mxu0
    %v3441 = vadd.f32 %v3280, %v3440
    %v3442 = vpop.f32.mrb[0].mxu0
    %3443 = vmatprep.mubr.f32.mxu0 0.0
    %3444 = vmatmul.mubr.f32.gmra.mrb[0].mxu0 %v3334
    %v3445 = vpop.f32.mrb[0].mxu0
    %v3446 = vadd.f32 %v3285, %v3445
    %v3447 = vpop.f32.mrb[0].mxu0
    %3448 = vmatprep.mubr.f32.mxu0 0.0
    %3449 = vmatmul.mubr.f32.gmra.mrb[0].mxu0 %v3337
    %v3450 = vpop.f32.mrb[0].mxu0
    %v3451 = vadd.f32 %v3290, %v3450
    %v3452 = vpop.f32.mrb[0].mxu0
    %3453 = vmatprep.mubr.f32.mxu0 0.0
    %3454 = vmatmul.mubr.f32.gmra.mrb[0].mxu0 %v3340
    %v3455 = vpop.f32.mrb[0].mxu0
    %v3456 = vadd.f32 %v3295, %v3455
    %v3457 = vpop.f32.mrb[0].mxu0
    %3458 = vmatprep.mubr.f32.mxu0 0.0
    %3459 = vmatmul.mubr.f32.gmra.mrb[0].mxu0 %v3343
    %v3460 = vpop.f32.mrb[0].mxu0
    %v3461 = vadd.f32 %v3300, %v3460
    %v3462 = vpop.f32.mrb[0].mxu0
    %3463 = vmatprep.mubr.f32.mxu0 0.0
    %3464 = vmatmul.mubr.f32.gmra.mrb[0].mxu0 %v3346
    %v3465 = vpop.f32.mrb[0].mxu0
    %v3466 = vadd.f32 %v3305, %v3465
    %v3467 = vpop.f32.mrb[0].mxu0
    %3468 = vmatprep.mubr.f32.mxu0 0.0
    %3469 = vmatmul.mubr.f32.gmra.mrb[0].mxu0 %v3349
    %v3470 = vpop.f32.mrb[0].mxu0
    %v3471 = vadd.f32 %v3310, %v3470
    %v3472 = vpop.f32.mrb[0].mxu0
    %3473 = vmatprep.mubr.f32.mxu0 0.0
    %3474 = vmatmul.mubr.f32.gmra.mrb[0].mxu0 %v3352
    %v3475 = vpop.f32.mrb[0].mxu0
    %v3476 = vadd.f32 %v3315, %v3475
    %v3477 = vpop.f32.mrb[0].mxu0
    %3478 = vdwg.mxu0
    %v3479 = vld [vmem:[#allocation4 + $0x2] sm:$0xff]
    %v3480 = vld [vmem:[#allocation4 + $0xa] sm:$0xff]
    %v3481 = vld [vmem:[#allocation4 + $0x12] sm:$0xff]
    %v3482 = vld [vmem:[#allocation4 + $0x1a] sm:$0xff]
    %v3483 = vld [vmem:[#allocation4 + $0x22] sm:$0xff]
    %v3484 = vld [vmem:[#allocation4 + $0x2a] sm:$0xff]
    %v3485 = vld [vmem:[#allocation4 + $0x32] sm:$0xff]
    %v3486 = vld [vmem:[#allocation4 + $0x3a] sm:$0xff]
    %v3487 = vld [vmem:[#allocation4 + $0x42] sm:$0xff]
    %v3488 = vld [vmem:[#allocation4 + $0x4a] sm:$0xff]
    %v3489 = vld [vmem:[#allocation4 + $0x52] sm:$0xff]
    %v3490 = vld [vmem:[#allocation4 + $0x5a] sm:$0xff]
    %v3491 = vld [vmem:[%s1 + $0x30] sm:$0xff]
    %v3492 = vld [vmem:[%s1 + $0x38] sm:$0xff]
    %v3494 = vsel %vm2604, %v3479, 0
    %v3497 = vsel %vm2604, %v3480, 0
    %v3500 = vsel %vm2604, %v3481, 0
    %v3503 = vsel %vm2604, %v3482, 0
    %v3506 = vsel %vm2604, %v3483, 0
    %v3509 = vsel %vm2604, %v3484, 0
    %v3512 = vsel %vm2604, %v3485, 0
    %v3515 = vsel %vm2604, %v3486, 0
    %v3518 = vsel %vm2604, %v3487, 0
    %v3521 = vsel %vm2604, %v3488, 0
    %v3524 = vsel %vm2604, %v3489, 0
    %v3527 = vsel %vm2604, %v3490, 0
    %3529 = vmatprep.subr.mxu0 0.0
    %3530 = vmatpush1.msra.mxu0 %v3491
    %3531 = vmatprep.subr.mxu0 0.0
    %3532 = vmatpush1.msra.mxu0 %v3492
    %3533 = vmatprep.subr.mxu0 0.0
    %3534 = vmatpush1.msra.mxu0 0.0
    %3535 = vmatprep.subr.mxu0 0.0
    %3536 = vmatpush1.msra.mxu0 0.0
    %3537 = vmatprep.subr.mxu0 0.0
    %3538 = vmatpush1.msra.mxu0 0.0
    %3539 = vmatprep.subr.mxu0 0.0
    %3540 = vmatpush1.msra.mxu0 0.0
    %3541 = vmatprep.subr.mxu0 0.0
    %3542 = vmatpush1.msra.mxu0 0.0
    %3543 = vmatprep.subr.mxu0 0.0
    %3544 = vmatpush1.msra.mxu0 0.0
    %3545 = vmatprep.subr.mxu0 0.0
    %3546 = vmatpush1.msra.mxu0 0.0
    %3547 = vmatprep.subr.mxu0 0.0
    %3548 = vmatpush1.msra.mxu0 0.0
    %3549 = vmatprep.subr.mxu0 0.0
    %3550 = vmatpush1.msra.mxu0 0.0
    %3551 = vmatprep.subr.mxu0 0.0
    %3552 = vmatpush1.msra.mxu0 0.0
    %3553 = vmatprep.subr.mxu0 0.0
    %3554 = vmatpush1.msra.mxu0 0.0
    %3555 = vmatprep.subr.mxu0 0.0
    %3556 = vmatpush1.msra.mxu0 0.0
    %3557 = vmatprep.subr.mxu0 0.0
    %3558 = vmatpush1.msra.mxu0 0.0
    %3559 = vmatprep.subr.mxu0 0.0
    %3560 = vmatpush1.msra.mxu0 0.0
    %3561 = vmatprep.subr.mxu0 0.0
    %3562 = vmatpush1.msra.mxu0 0.0
    %3563 = vmatprep.subr.mxu0 0.0
    %3564 = vmatpush1.msra.mxu0 0.0
    %3565 = vmatprep.subr.mxu0 0.0
    %3566 = vmatpush1.msra.mxu0 0.0
    %3567 = vmatprep.subr.mxu0 0.0
    %3568 = vmatpush1.msra.mxu0 0.0
    %3569 = vmatprep.subr.mxu0 0.0
    %3570 = vmatpush1.msra.mxu0 0.0
    %3571 = vmatprep.subr.mxu0 0.0
    %3572 = vmatpush1.msra.mxu0 0.0
    %3573 = vmatprep.subr.mxu0 0.0
    %3574 = vmatpush1.msra.mxu0 0.0
    %3575 = vmatprep.subr.mxu0 0.0
    %3576 = vmatpush1.msra.mxu0 0.0
    %3577 = vmatprep.subr.mxu0 0.0
    %3578 = vmatpush1.msra.mxu0 0.0
    %3579 = vmatprep.subr.mxu0 0.0
    %3580 = vmatpush1.msra.mxu0 0.0
    %3581 = vmatprep.subr.mxu0 0.0
    %3582 = vmatpush1.msra.mxu0 0.0
    %3583 = vmatprep.subr.mxu0 0.0
    %3584 = vmatpush1.msra.mxu0 0.0
    %3585 = vmatprep.subr.mxu0 0.0
    %3586 = vmatpush1.msra.mxu0 0.0
    %3587 = vmatprep.subr.mxu0 0.0
    %3588 = vmatpush1.msra.mxu0 0.0
    %3589 = vmatprep.subr.mxu0 0.0
    %3590 = vmatpush1.msra.mxu0 0.0
    %3591 = vmatprep.subr.mxu0 0.0
    %3592 = vmatpush1.msra.mxu0 0.0
    %3593 = vmatprep.mubr.f32.mxu0 0.0
    %3594 = vmatmul.mubr.f32.gmra.mrb[0].mxu0 %v3494
    %v3595 = vpop.f32.mrb[0].mxu0
    %v3596 = vadd.f32 0.0, %v3595
    %v3597 = vpop.f32.mrb[0].mxu0
    %3598 = vmatprep.mubr.f32.mxu0 0.0
    %3599 = vmatmul.mubr.f32.gmra.mrb[0].mxu0 %v3497
    %v3600 = vpop.f32.mrb[0].mxu0
    %v3601 = vadd.f32 0.0, %v3600
    %v3602 = vpop.f32.mrb[0].mxu0
    %3603 = vmatprep.mubr.f32.mxu0 0.0
    %3604 = vmatmul.mubr.f32.gmra.mrb[0].mxu0 %v3500
    %v3605 = vpop.f32.mrb[0].mxu0
    %v3606 = vadd.f32 0.0, %v3605
    %v3607 = vpop.f32.mrb[0].mxu0
    %3608 = vmatprep.mubr.f32.mxu0 0.0
    %3609 = vmatmul.mubr.f32.gmra.mrb[0].mxu0 %v3503
    %v3610 = vpop.f32.mrb[0].mxu0
    %v3611 = vadd.f32 0.0, %v3610
    %v3612 = vpop.f32.mrb[0].mxu0
    %3613 = vmatprep.mubr.f32.mxu0 0.0
    %3614 = vmatmul.mubr.f32.gmra.mrb[0].mxu0 %v3506
    %v3615 = vpop.f32.mrb[0].mxu0
    %v3616 = vadd.f32 0.0, %v3615
    %v3617 = vpop.f32.mrb[0].mxu0
    %3618 = vmatprep.mubr.f32.mxu0 0.0
    %3619 = vmatmul.mubr.f32.gmra.mrb[0].mxu0 %v3509
    %v3620 = vpop.f32.mrb[0].mxu0
    %v3621 = vadd.f32 0.0, %v3620
    %v3622 = vpop.f32.mrb[0].mxu0
    %3623 = vmatprep.mubr.f32.mxu0 0.0
    %3624 = vmatmul.mubr.f32.gmra.mrb[0].mxu0 %v3512
    %v3625 = vpop.f32.mrb[0].mxu0
    %v3626 = vadd.f32 0.0, %v3625
    %v3627 = vpop.f32.mrb[0].mxu0
    %3628 = vmatprep.mubr.f32.mxu0 0.0
    %3629 = vmatmul.mubr.f32.gmra.mrb[0].mxu0 %v3515
    %v3630 = vpop.f32.mrb[0].mxu0
    %v3631 = vadd.f32 0.0, %v3630
    %v3632 = vpop.f32.mrb[0].mxu0
    %3633 = vmatprep.mubr.f32.mxu0 0.0
    %3634 = vmatmul.mubr.f32.gmra.mrb[0].mxu0 %v3518
    %v3635 = vpop.f32.mrb[0].mxu0
    %v3636 = vadd.f32 0.0, %v3635
    %v3637 = vpop.f32.mrb[0].mxu0
    %3638 = vmatprep.mubr.f32.mxu0 0.0
    %3639 = vmatmul.mubr.f32.gmra.mrb[0].mxu0 %v3521
    %v3640 = vpop.f32.mrb[0].mxu0
    %v3641 = vadd.f32 0.0, %v3640
    %v3642 = vpop.f32.mrb[0].mxu0
    %3643 = vmatprep.mubr.f32.mxu0 0.0
    %3644 = vmatmul.mubr.f32.gmra.mrb[0].mxu0 %v3524
    %v3645 = vpop.f32.mrb[0].mxu0
    %v3646 = vadd.f32 0.0, %v3645
    %v3647 = vpop.f32.mrb[0].mxu0
    %3648 = vmatprep.mubr.f32.mxu0 0.0
    %3649 = vmatmul.mubr.f32.gmra.mrb[0].mxu0 %v3527
    %v3650 = vpop.f32.mrb[0].mxu0
    %v3651 = vadd.f32 0.0, %v3650
    %v3652 = vpop.f32.mrb[0].mxu0
    %3653 = vdwg.mxu0
    %v3654 = vadd.f32 %v3421, %v3596
    %v3655 = vadd.f32 %v3426, %v3601
    %v3656 = vadd.f32 %v3431, %v3606
    %v3657 = vadd.f32 %v3436, %v3611
    %v3658 = vadd.f32 %v3441, %v3616
    %v3659 = vadd.f32 %v3446, %v3621
    %v3660 = vadd.f32 %v3451, %v3626
    %v3661 = vadd.f32 %v3456, %v3631
    %v3662 = vadd.f32 %v3461, %v3636
    %v3663 = vadd.f32 %v3466, %v3641
    %v3664 = vadd.f32 %v3471, %v3646
    %v3665 = vadd.f32 %v3476, %v3651
    %v3666 = vld [vmem:[#allocation4 + $0x3] sm:$0xff]
    %v3667 = vld [vmem:[#allocation4 + $0xb] sm:$0xff]
    %v3668 = vld [vmem:[#allocation4 + $0x13] sm:$0xff]
    %v3669 = vld [vmem:[#allocation4 + $0x1b] sm:$0xff]
    %v3670 = vld [vmem:[#allocation4 + $0x23] sm:$0xff]
    %v3671 = vld [vmem:[#allocation4 + $0x2b] sm:$0xff]
    %v3672 = vld [vmem:[#allocation4 + $0x33] sm:$0xff]
    %v3673 = vld [vmem:[#allocation4 + $0x3b] sm:$0xff]
    %v3674 = vld [vmem:[#allocation4 + $0x43] sm:$0xff]
    %v3675 = vld [vmem:[#allocation4 + $0x4b] sm:$0xff]
    %v3676 = vld [vmem:[#allocation4 + $0x53] sm:$0xff]
    %v3677 = vld [vmem:[#allocation4 + $0x5b] sm:$0xff]
    %v3678 = vld [vmem:[%s1 + $0x40] sm:$0xff]
    %v3679 = vld [vmem:[%s1 + $0x48] sm:$0xff]
    %v3681 = vsel %vm2604, %v3666, 0
    %v3684 = vsel %vm2604, %v3667, 0
    %v3687 = vsel %vm2604, %v3668, 0
    %v3690 = vsel %vm2604, %v3669, 0
    %v3693 = vsel %vm2604, %v3670, 0
    %v3696 = vsel %vm2604, %v3671, 0
    %v3699 = vsel %vm2604, %v3672, 0
    %v3702 = vsel %vm2604, %v3673, 0
    %v3705 = vsel %vm2604, %v3674, 0
    %v3708 = vsel %vm2604, %v3675, 0
    %v3711 = vsel %vm2604, %v3676, 0
    %v3714 = vsel %vm2604, %v3677, 0
    %3716 = vmatprep.subr.mxu0 0.0
    %3717 = vmatpush1.msra.mxu0 %v3678
    %3718 = vmatprep.subr.mxu0 0.0
    %3719 = vmatpush1.msra.mxu0 %v3679
    %3720 = vmatprep.subr.mxu0 0.0
    %3721 = vmatpush1.msra.mxu0 0.0
    %3722 = vmatprep.subr.mxu0 0.0
    %3723 = vmatpush1.msra.mxu0 0.0
    %3724 = vmatprep.subr.mxu0 0.0
    %3725 = vmatpush1.msra.mxu0 0.0
    %3726 = vmatprep.subr.mxu0 0.0
    %3727 = vmatpush1.msra.mxu0 0.0
    %3728 = vmatprep.subr.mxu0 0.0
    %3729 = vmatpush1.msra.mxu0 0.0
    %3730 = vmatprep.subr.mxu0 0.0
    %3731 = vmatpush1.msra.mxu0 0.0
    %3732 = vmatprep.subr.mxu0 0.0
    %3733 = vmatpush1.msra.mxu0 0.0
    %3734 = vmatprep.subr.mxu0 0.0
    %3735 = vmatpush1.msra.mxu0 0.0
    %3736 = vmatprep.subr.mxu0 0.0
    %3737 = vmatpush1.msra.mxu0 0.0
    %3738 = vmatprep.subr.mxu0 0.0
    %3739 = vmatpush1.msra.mxu0 0.0
    %3740 = vmatprep.subr.mxu0 0.0
    %3741 = vmatpush1.msra.mxu0 0.0
    %3742 = vmatprep.subr.mxu0 0.0
    %3743 = vmatpush1.msra.mxu0 0.0
    %3744 = vmatprep.subr.mxu0 0.0
    %3745 = vmatpush1.msra.mxu0 0.0
    %3746 = vmatprep.subr.mxu0 0.0
    %3747 = vmatpush1.msra.mxu0 0.0
    %3748 = vmatprep.subr.mxu0 0.0
    %3749 = vmatpush1.msra.mxu0 0.0
    %3750 = vmatprep.subr.mxu0 0.0
    %3751 = vmatpush1.msra.mxu0 0.0
    %3752 = vmatprep.subr.mxu0 0.0
    %3753 = vmatpush1.msra.mxu0 0.0
    %3754 = vmatprep.subr.mxu0 0.0
    %3755 = vmatpush1.msra.mxu0 0.0
    %3756 = vmatprep.subr.mxu0 0.0
    %3757 = vmatpush1.msra.mxu0 0.0
    %3758 = vmatprep.subr.mxu0 0.0
    %3759 = vmatpush1.msra.mxu0 0.0
    %3760 = vmatprep.subr.mxu0 0.0
    %3761 = vmatpush1.msra.mxu0 0.0
    %3762 = vmatprep.subr.mxu0 0.0
    %3763 = vmatpush1.msra.mxu0 0.0
    %3764 = vmatprep.subr.mxu0 0.0
    %3765 = vmatpush1.msra.mxu0 0.0
    %3766 = vmatprep.subr.mxu0 0.0
    %3767 = vmatpush1.msra.mxu0 0.0
    %3768 = vmatprep.subr.mxu0 0.0
    %3769 = vmatpush1.msra.mxu0 0.0
    %3770 = vmatprep.subr.mxu0 0.0
    %3771 = vmatpush1.msra.mxu0 0.0
    %3772 = vmatprep.subr.mxu0 0.0
    %3773 = vmatpush1.msra.mxu0 0.0
    %3774 = vmatprep.subr.mxu0 0.0
    %3775 = vmatpush1.msra.mxu0 0.0
    %3776 = vmatprep.subr.mxu0 0.0
    %3777 = vmatpush1.msra.mxu0 0.0
    %3778 = vmatprep.subr.mxu0 0.0
    %3779 = vmatpush1.msra.mxu0 0.0
    %3780 = vmatprep.mubr.f32.mxu0 0.0
    %3781 = vmatmul.mubr.f32.gmra.mrb[0].mxu0 %v3681
    %v3782 = vpop.f32.mrb[0].mxu0
    %v3783 = vadd.f32 0.0, %v3782
    %v3784 = vpop.f32.mrb[0].mxu0
    %3785 = vmatprep.mubr.f32.mxu0 0.0
    %3786 = vmatmul.mubr.f32.gmra.mrb[0].mxu0 %v3684
    %v3787 = vpop.f32.mrb[0].mxu0
    %v3788 = vadd.f32 0.0, %v3787
    %v3789 = vpop.f32.mrb[0].mxu0
    %3790 = vmatprep.mubr.f32.mxu0 0.0
    %3791 = vmatmul.mubr.f32.gmra.mrb[0].mxu0 %v3687
    %v3792 = vpop.f32.mrb[0].mxu0
    %v3793 = vadd.f32 0.0, %v3792
    %v3794 = vpop.f32.mrb[0].mxu0
    %3795 = vmatprep.mubr.f32.mxu0 0.0
    %3796 = vmatmul.mubr.f32.gmra.mrb[0].mxu0 %v3690
    %v3797 = vpop.f32.mrb[0].mxu0
    %v3798 = vadd.f32 0.0, %v3797
    %v3799 = vpop.f32.mrb[0].mxu0
    %3800 = vmatprep.mubr.f32.mxu0 0.0
    %3801 = vmatmul.mubr.f32.gmra.mrb[0].mxu0 %v3693
    %v3802 = vpop.f32.mrb[0].mxu0
    %v3803 = vadd.f32 0.0, %v3802
    %v3804 = vpop.f32.mrb[0].mxu0
    %3805 = vmatprep.mubr.f32.mxu0 0.0
    %3806 = vmatmul.mubr.f32.gmra.mrb[0].mxu0 %v3696
    %v3807 = vpop.f32.mrb[0].mxu0
    %v3808 = vadd.f32 0.0, %v3807
    %v3809 = vpop.f32.mrb[0].mxu0
    %3810 = vmatprep.mubr.f32.mxu0 0.0
    %3811 = vmatmul.mubr.f32.gmra.mrb[0].mxu0 %v3699
    %v3812 = vpop.f32.mrb[0].mxu0
    %v3813 = vadd.f32 0.0, %v3812
    %v3814 = vpop.f32.mrb[0].mxu0
    %3815 = vmatprep.mubr.f32.mxu0 0.0
    %3816 = vmatmul.mubr.f32.gmra.mrb[0].mxu0 %v3702
    %v3817 = vpop.f32.mrb[0].mxu0
    %v3818 = vadd.f32 0.0, %v3817
    %v3819 = vpop.f32.mrb[0].mxu0
    %3820 = vmatprep.mubr.f32.mxu0 0.0
    %3821 = vmatmul.mubr.f32.gmra.mrb[0].mxu0 %v3705
    %v3822 = vpop.f32.mrb[0].mxu0
    %v3823 = vadd.f32 0.0, %v3822
    %v3824 = vpop.f32.mrb[0].mxu0
    %3825 = vmatprep.mubr.f32.mxu0 0.0
    %3826 = vmatmul.mubr.f32.gmra.mrb[0].mxu0 %v3708
    %v3827 = vpop.f32.mrb[0].mxu0
    %v3828 = vadd.f32 0.0, %v3827
    %v3829 = vpop.f32.mrb[0].mxu0
    %3830 = vmatprep.mubr.f32.mxu0 0.0
    %3831 = vmatmul.mubr.f32.gmra.mrb[0].mxu0 %v3711
    %v3832 = vpop.f32.mrb[0].mxu0
    %v3833 = vadd.f32 0.0, %v3832
    %v3834 = vpop.f32.mrb[0].mxu0
    %3835 = vmatprep.mubr.f32.mxu0 0.0
    %3836 = vmatmul.mubr.f32.gmra.mrb[0].mxu0 %v3714
    %v3837 = vpop.f32.mrb[0].mxu0
    %v3838 = vadd.f32 0.0, %v3837
    %v3839 = vpop.f32.mrb[0].mxu0
    %3840 = vdwg.mxu0
    %v3841 = vadd.f32 %v3654, %v3783
    %v3842 = vadd.f32 %v3655, %v3788
    %v3843 = vadd.f32 %v3656, %v3793
    %v3844 = vadd.f32 %v3657, %v3798
    %v3845 = vadd.f32 %v3658, %v3803
    %v3846 = vadd.f32 %v3659, %v3808
    %v3847 = vadd.f32 %v3660, %v3813
    %v3848 = vadd.f32 %v3661, %v3818
    %v3849 = vadd.f32 %v3662, %v3823
    %v3850 = vadd.f32 %v3663, %v3828
    %v3851 = vadd.f32 %v3664, %v3833
    %v3852 = vadd.f32 %v3665, %v3838
    %v3853 = vld [vmem:[#allocation4 + $0x4] sm:$0xff]
    %v3854 = vld [vmem:[#allocation4 + $0xc] sm:$0xff]
    %v3855 = vld [vmem:[#allocation4 + $0x14] sm:$0xff]
    %v3856 = vld [vmem:[#allocation4 + $0x1c] sm:$0xff]
    %v3857 = vld [vmem:[#allocation4 + $0x24] sm:$0xff]
    %v3858 = vld [vmem:[#allocation4 + $0x2c] sm:$0xff]
    %v3859 = vld [vmem:[#allocation4 + $0x34] sm:$0xff]
    %v3860 = vld [vmem:[#allocation4 + $0x3c] sm:$0xff]
    %v3861 = vld [vmem:[#allocation4 + $0x44] sm:$0xff]
    %v3862 = vld [vmem:[#allocation4 + $0x4c] sm:$0xff]
    %v3863 = vld [vmem:[#allocation4 + $0x54] sm:$0xff]
    %v3864 = vld [vmem:[#allocation4 + $0x5c] sm:$0xff]
    %v3865 = vld [vmem:[%s1 + $0x50] sm:$0xff]
    %v3866 = vld [vmem:[%s1 + $0x58] sm:$0xff]
    %v3868 = vsel %vm2604, %v3853, 0
    %v3871 = vsel %vm2604, %v3854, 0
    %v3874 = vsel %vm2604, %v3855, 0
    %v3877 = vsel %vm2604, %v3856, 0
    %v3880 = vsel %vm2604, %v3857, 0
    %v3883 = vsel %vm2604, %v3858, 0
    %v3886 = vsel %vm2604, %v3859, 0
    %v3889 = vsel %vm2604, %v3860, 0
    %v3892 = vsel %vm2604, %v3861, 0
    %v3895 = vsel %vm2604, %v3862, 0
    %v3898 = vsel %vm2604, %v3863, 0
    %v3901 = vsel %vm2604, %v3864, 0
    %3903 = vmatprep.subr.mxu0 0.0
    %3904 = vmatpush1.msra.mxu0 %v3865
    %3905 = vmatprep.subr.mxu0 0.0
    %3906 = vmatpush1.msra.mxu0 %v3866
    %3907 = vmatprep.subr.mxu0 0.0
    %3908 = vmatpush1.msra.mxu0 0.0
    %3909 = vmatprep.subr.mxu0 0.0
    %3910 = vmatpush1.msra.mxu0 0.0
    %3911 = vmatprep.subr.mxu0 0.0
    %3912 = vmatpush1.msra.mxu0 0.0
    %3913 = vmatprep.subr.mxu0 0.0
    %3914 = vmatpush1.msra.mxu0 0.0
    %3915 = vmatprep.subr.mxu0 0.0
    %3916 = vmatpush1.msra.mxu0 0.0
    %3917 = vmatprep.subr.mxu0 0.0
    %3918 = vmatpush1.msra.mxu0 0.0
    %3919 = vmatprep.subr.mxu0 0.0
    %3920 = vmatpush1.msra.mxu0 0.0
    %3921 = vmatprep.subr.mxu0 0.0
    %3922 = vmatpush1.msra.mxu0 0.0
    %3923 = vmatprep.subr.mxu0 0.0
    %3924 = vmatpush1.msra.mxu0 0.0
    %3925 = vmatprep.subr.mxu0 0.0
    %3926 = vmatpush1.msra.mxu0 0.0
    %3927 = vmatprep.subr.mxu0 0.0
    %3928 = vmatpush1.msra.mxu0 0.0
    %3929 = vmatprep.subr.mxu0 0.0
    %3930 = vmatpush1.msra.mxu0 0.0
    %3931 = vmatprep.subr.mxu0 0.0
    %3932 = vmatpush1.msra.mxu0 0.0
    %3933 = vmatprep.subr.mxu0 0.0
    %3934 = vmatpush1.msra.mxu0 0.0
    %3935 = vmatprep.subr.mxu0 0.0
    %3936 = vmatpush1.msra.mxu0 0.0
    %3937 = vmatprep.subr.mxu0 0.0
    %3938 = vmatpush1.msra.mxu0 0.0
    %3939 = vmatprep.subr.mxu0 0.0
    %3940 = vmatpush1.msra.mxu0 0.0
    %3941 = vmatprep.subr.mxu0 0.0
    %3942 = vmatpush1.msra.mxu0 0.0
    %3943 = vmatprep.subr.mxu0 0.0
    %3944 = vmatpush1.msra.mxu0 0.0
    %3945 = vmatprep.subr.mxu0 0.0
    %3946 = vmatpush1.msra.mxu0 0.0
    %3947 = vmatprep.subr.mxu0 0.0
    %3948 = vmatpush1.msra.mxu0 0.0
    %3949 = vmatprep.subr.mxu0 0.0
    %3950 = vmatpush1.msra.mxu0 0.0
    %3951 = vmatprep.subr.mxu0 0.0
    %3952 = vmatpush1.msra.mxu0 0.0
    %3953 = vmatprep.subr.mxu0 0.0
    %3954 = vmatpush1.msra.mxu0 0.0
    %3955 = vmatprep.subr.mxu0 0.0
    %3956 = vmatpush1.msra.mxu0 0.0
    %3957 = vmatprep.subr.mxu0 0.0
    %3958 = vmatpush1.msra.mxu0 0.0
    %3959 = vmatprep.subr.mxu0 0.0
    %3960 = vmatpush1.msra.mxu0 0.0
    %3961 = vmatprep.subr.mxu0 0.0
    %3962 = vmatpush1.msra.mxu0 0.0
    %3963 = vmatprep.subr.mxu0 0.0
    %3964 = vmatpush1.msra.mxu0 0.0
    %3965 = vmatprep.subr.mxu0 0.0
    %3966 = vmatpush1.msra.mxu0 0.0
    %3967 = vmatprep.mubr.f32.mxu0 0.0
    %3968 = vmatmul.mubr.f32.gmra.mrb[0].mxu0 %v3868
    %v3969 = vpop.f32.mrb[0].mxu0
    %v3970 = vadd.f32 0.0, %v3969
    %v3971 = vpop.f32.mrb[0].mxu0
    %3972 = vmatprep.mubr.f32.mxu0 0.0
    %3973 = vmatmul.mubr.f32.gmra.mrb[0].mxu0 %v3871
    %v3974 = vpop.f32.mrb[0].mxu0
    %v3975 = vadd.f32 0.0, %v3974
    %v3976 = vpop.f32.mrb[0].mxu0
    %3977 = vmatprep.mubr.f32.mxu0 0.0
    %3978 = vmatmul.mubr.f32.gmra.mrb[0].mxu0 %v3874
    %v3979 = vpop.f32.mrb[0].mxu0
    %v3980 = vadd.f32 0.0, %v3979
    %v3981 = vpop.f32.mrb[0].mxu0
    %3982 = vmatprep.mubr.f32.mxu0 0.0
    %3983 = vmatmul.mubr.f32.gmra.mrb[0].mxu0 %v3877
    %v3984 = vpop.f32.mrb[0].mxu0
    %v3985 = vadd.f32 0.0, %v3984
    %v3986 = vpop.f32.mrb[0].mxu0
    %3987 = vmatprep.mubr.f32.mxu0 0.0
    %3988 = vmatmul.mubr.f32.gmra.mrb[0].mxu0 %v3880
    %v3989 = vpop.f32.mrb[0].mxu0
    %v3990 = vadd.f32 0.0, %v3989
    %v3991 = vpop.f32.mrb[0].mxu0
    %3992 = vmatprep.mubr.f32.mxu0 0.0
    %3993 = vmatmul.mubr.f32.gmra.mrb[0].mxu0 %v3883
    %v3994 = vpop.f32.mrb[0].mxu0
    %v3995 = vadd.f32 0.0, %v3994
    %v3996 = vpop.f32.mrb[0].mxu0
    %3997 = vmatprep.mubr.f32.mxu0 0.0
    %3998 = vmatmul.mubr.f32.gmra.mrb[0].mxu0 %v3886
    %v3999 = vpop.f32.mrb[0].mxu0
    %v4000 = vadd.f32 0.0, %v3999
    %v4001 = vpop.f32.mrb[0].mxu0
    %4002 = vmatprep.mubr.f32.mxu0 0.0
    %4003 = vmatmul.mubr.f32.gmra.mrb[0].mxu0 %v3889
    %v4004 = vpop.f32.mrb[0].mxu0
    %v4005 = vadd.f32 0.0, %v4004
    %v4006 = vpop.f32.mrb[0].mxu0
    %4007 = vmatprep.mubr.f32.mxu0 0.0
    %4008 = vmatmul.mubr.f32.gmra.mrb[0].mxu0 %v3892
    %v4009 = vpop.f32.mrb[0].mxu0
    %v4010 = vadd.f32 0.0, %v4009
    %v4011 = vpop.f32.mrb[0].mxu0
    %4012 = vmatprep.mubr.f32.mxu0 0.0
    %4013 = vmatmul.mubr.f32.gmra.mrb[0].mxu0 %v3895
    %v4014 = vpop.f32.mrb[0].mxu0
    %v4015 = vadd.f32 0.0, %v4014
    %v4016 = vpop.f32.mrb[0].mxu0
    %4017 = vmatprep.mubr.f32.mxu0 0.0
    %4018 = vmatmul.mubr.f32.gmra.mrb[0].mxu0 %v3898
    %v4019 = vpop.f32.mrb[0].mxu0
    %v4020 = vadd.f32 0.0, %v4019
    %v4021 = vpop.f32.mrb[0].mxu0
    %4022 = vmatprep.mubr.f32.mxu0 0.0
    %4023 = vmatmul.mubr.f32.gmra.mrb[0].mxu0 %v3901
    %v4024 = vpop.f32.mrb[0].mxu0
    %v4025 = vadd.f32 0.0, %v4024
    %v4026 = vpop.f32.mrb[0].mxu0
    %4027 = vdwg.mxu0
    %v4028 = vadd.f32 %v3841, %v3970
    %v4029 = vadd.f32 %v3842, %v3975
    %v4030 = vadd.f32 %v3843, %v3980
    %v4031 = vadd.f32 %v3844, %v3985
    %v4032 = vadd.f32 %v3845, %v3990
    %v4033 = vadd.f32 %v3846, %v3995
    %v4034 = vadd.f32 %v3847, %v4000
    %v4035 = vadd.f32 %v3848, %v4005
    %v4036 = vadd.f32 %v3849, %v4010
    %v4037 = vadd.f32 %v3850, %v4015
    %v4038 = vadd.f32 %v3851, %v4020
    %v4039 = vadd.f32 %v3852, %v4025
    %v4040 = vld [vmem:[#allocation4 + $0x5] sm:$0xff]
    %v4041 = vld [vmem:[#allocation4 + $0xd] sm:$0xff]
    %v4042 = vld [vmem:[#allocation4 + $0x15] sm:$0xff]
    %v4043 = vld [vmem:[#allocation4 + $0x1d] sm:$0xff]
    %v4044 = vld [vmem:[#allocation4 + $0x25] sm:$0xff]
    %v4045 = vld [vmem:[#allocation4 + $0x2d] sm:$0xff]
    %v4046 = vld [vmem:[#allocation4 + $0x35] sm:$0xff]
    %v4047 = vld [vmem:[#allocation4 + $0x3d] sm:$0xff]
    %v4048 = vld [vmem:[#allocation4 + $0x45] sm:$0xff]
    %v4049 = vld [vmem:[#allocation4 + $0x4d] sm:$0xff]
    %v4050 = vld [vmem:[#allocation4 + $0x55] sm:$0xff]
    %v4051 = vld [vmem:[#allocation4 + $0x5d] sm:$0xff]
    %v4052 = vld [vmem:[%s1 + $0x60] sm:$0xff]
    %v4053 = vld [vmem:[%s1 + $0x68] sm:$0xff]
    %v4055 = vsel %vm2604, %v4040, 0
    %v4058 = vsel %vm2604, %v4041, 0
    %v4061 = vsel %vm2604, %v4042, 0
    %v4064 = vsel %vm2604, %v4043, 0
    %v4067 = vsel %vm2604, %v4044, 0
    %v4070 = vsel %vm2604, %v4045, 0
    %v4073 = vsel %vm2604, %v4046, 0
    %v4076 = vsel %vm2604, %v4047, 0
    %v4079 = vsel %vm2604, %v4048, 0
    %v4082 = vsel %vm2604, %v4049, 0
    %v4085 = vsel %vm2604, %v4050, 0
    %v4088 = vsel %vm2604, %v4051, 0
    %4090 = vmatprep.subr.mxu0 0.0
    %4091 = vmatpush1.msra.mxu0 %v4052
    %4092 = vmatprep.subr.mxu0 0.0
    %4093 = vmatpush1.msra.mxu0 %v4053
    %4094 = vmatprep.subr.mxu0 0.0
    %4095 = vmatpush1.msra.mxu0 0.0
    %4096 = vmatprep.subr.mxu0 0.0
    %4097 = vmatpush1.msra.mxu0 0.0
    %4098 = vmatprep.subr.mxu0 0.0
    %4099 = vmatpush1.msra.mxu0 0.0
    %4100 = vmatprep.subr.mxu0 0.0
    %4101 = vmatpush1.msra.mxu0 0.0
    %4102 = vmatprep.subr.mxu0 0.0
    %4103 = vmatpush1.msra.mxu0 0.0
    %4104 = vmatprep.subr.mxu0 0.0
    %4105 = vmatpush1.msra.mxu0 0.0
    %4106 = vmatprep.subr.mxu0 0.0
    %4107 = vmatpush1.msra.mxu0 0.0
    %4108 = vmatprep.subr.mxu0 0.0
    %4109 = vmatpush1.msra.mxu0 0.0
    %4110 = vmatprep.subr.mxu0 0.0
    %4111 = vmatpush1.msra.mxu0 0.0
    %4112 = vmatprep.subr.mxu0 0.0
    %4113 = vmatpush1.msra.mxu0 0.0
    %4114 = vmatprep.subr.mxu0 0.0
    %4115 = vmatpush1.msra.mxu0 0.0
    %4116 = vmatprep.subr.mxu0 0.0
    %4117 = vmatpush1.msra.mxu0 0.0
    %4118 = vmatprep.subr.mxu0 0.0
    %4119 = vmatpush1.msra.mxu0 0.0
    %4120 = vmatprep.subr.mxu0 0.0
    %4121 = vmatpush1.msra.mxu0 0.0
    %4122 = vmatprep.subr.mxu0 0.0
    %4123 = vmatpush1.msra.mxu0 0.0
    %4124 = vmatprep.subr.mxu0 0.0
    %4125 = vmatpush1.msra.mxu0 0.0
    %4126 = vmatprep.subr.mxu0 0.0
    %4127 = vmatpush1.msra.mxu0 0.0
    %4128 = vmatprep.subr.mxu0 0.0
    %4129 = vmatpush1.msra.mxu0 0.0
    %4130 = vmatprep.subr.mxu0 0.0
    %4131 = vmatpush1.msra.mxu0 0.0
    %4132 = vmatprep.subr.mxu0 0.0
    %4133 = vmatpush1.msra.mxu0 0.0
    %4134 = vmatprep.subr.mxu0 0.0
    %4135 = vmatpush1.msra.mxu0 0.0
    %4136 = vmatprep.subr.mxu0 0.0
    %4137 = vmatpush1.msra.mxu0 0.0
    %4138 = vmatprep.subr.mxu0 0.0
    %4139 = vmatpush1.msra.mxu0 0.0
    %4140 = vmatprep.subr.mxu0 0.0
    %4141 = vmatpush1.msra.mxu0 0.0
    %4142 = vmatprep.subr.mxu0 0.0
    %4143 = vmatpush1.msra.mxu0 0.0
    %4144 = vmatprep.subr.mxu0 0.0
    %4145 = vmatpush1.msra.mxu0 0.0
    %4146 = vmatprep.subr.mxu0 0.0
    %4147 = vmatpush1.msra.mxu0 0.0
    %4148 = vmatprep.subr.mxu0 0.0
    %4149 = vmatpush1.msra.mxu0 0.0
    %4150 = vmatprep.subr.mxu0 0.0
    %4151 = vmatpush1.msra.mxu0 0.0
    %4152 = vmatprep.subr.mxu0 0.0
    %4153 = vmatpush1.msra.mxu0 0.0
    %4154 = vmatprep.mubr.f32.mxu0 0.0
    %4155 = vmatmul.mubr.f32.gmra.mrb[0].mxu0 %v4055
    %v4156 = vpop.f32.mrb[0].mxu0
    %v4157 = vadd.f32 0.0, %v4156
    %v4158 = vpop.f32.mrb[0].mxu0
    %4159 = vmatprep.mubr.f32.mxu0 0.0
    %4160 = vmatmul.mubr.f32.gmra.mrb[0].mxu0 %v4058
    %v4161 = vpop.f32.mrb[0].mxu0
    %v4162 = vadd.f32 0.0, %v4161
    %v4163 = vpop.f32.mrb[0].mxu0
    %4164 = vmatprep.mubr.f32.mxu0 0.0
    %4165 = vmatmul.mubr.f32.gmra.mrb[0].mxu0 %v4061
    %v4166 = vpop.f32.mrb[0].mxu0
    %v4167 = vadd.f32 0.0, %v4166
    %v4168 = vpop.f32.mrb[0].mxu0
    %4169 = vmatprep.mubr.f32.mxu0 0.0
    %4170 = vmatmul.mubr.f32.gmra.mrb[0].mxu0 %v4064
    %v4171 = vpop.f32.mrb[0].mxu0
    %v4172 = vadd.f32 0.0, %v4171
    %v4173 = vpop.f32.mrb[0].mxu0
    %4174 = vmatprep.mubr.f32.mxu0 0.0
    %4175 = vmatmul.mubr.f32.gmra.mrb[0].mxu0 %v4067
    %v4176 = vpop.f32.mrb[0].mxu0
    %v4177 = vadd.f32 0.0, %v4176
    %v4178 = vpop.f32.mrb[0].mxu0
    %4179 = vmatprep.mubr.f32.mxu0 0.0
    %4180 = vmatmul.mubr.f32.gmra.mrb[0].mxu0 %v4070
    %v4181 = vpop.f32.mrb[0].mxu0
    %v4182 = vadd.f32 0.0, %v4181
    %v4183 = vpop.f32.mrb[0].mxu0
    %4184 = vmatprep.mubr.f32.mxu0 0.0
    %4185 = vmatmul.mubr.f32.gmra.mrb[0].mxu0 %v4073
    %v4186 = vpop.f32.mrb[0].mxu0
    %v4187 = vadd.f32 0.0, %v4186
    %v4188 = vpop.f32.mrb[0].mxu0
    %4189 = vmatprep.mubr.f32.mxu0 0.0
    %4190 = vmatmul.mubr.f32.gmra.mrb[0].mxu0 %v4076
    %v4191 = vpop.f32.mrb[0].mxu0
    %v4192 = vadd.f32 0.0, %v4191
    %v4193 = vpop.f32.mrb[0].mxu0
    %4194 = vmatprep.mubr.f32.mxu0 0.0
    %4195 = vmatmul.mubr.f32.gmra.mrb[0].mxu0 %v4079
    %v4196 = vpop.f32.mrb[0].mxu0
    %v4197 = vadd.f32 0.0, %v4196
    %v4198 = vpop.f32.mrb[0].mxu0
    %4199 = vmatprep.mubr.f32.mxu0 0.0
    %4200 = vmatmul.mubr.f32.gmra.mrb[0].mxu0 %v4082
    %v4201 = vpop.f32.mrb[0].mxu0
    %v4202 = vadd.f32 0.0, %v4201
    %v4203 = vpop.f32.mrb[0].mxu0
    %4204 = vmatprep.mubr.f32.mxu0 0.0
    %4205 = vmatmul.mubr.f32.gmra.mrb[0].mxu0 %v4085
    %v4206 = vpop.f32.mrb[0].mxu0
    %v4207 = vadd.f32 0.0, %v4206
    %v4208 = vpop.f32.mrb[0].mxu0
    %4209 = vmatprep.mubr.f32.mxu0 0.0
    %4210 = vmatmul.mubr.f32.gmra.mrb[0].mxu0 %v4088
    %v4211 = vpop.f32.mrb[0].mxu0
    %v4212 = vadd.f32 0.0, %v4211
    %v4213 = vpop.f32.mrb[0].mxu0
    %4214 = vdwg.mxu0
    %v4215 = vadd.f32 %v4028, %v4157
    %v4216 = vadd.f32 %v4029, %v4162
    %v4217 = vadd.f32 %v4030, %v4167
    %v4218 = vadd.f32 %v4031, %v4172
    %v4219 = vadd.f32 %v4032, %v4177
    %v4220 = vadd.f32 %v4033, %v4182
    %v4221 = vadd.f32 %v4034, %v4187
    %v4222 = vadd.f32 %v4035, %v4192
    %v4223 = vadd.f32 %v4036, %v4197
    %v4224 = vadd.f32 %v4037, %v4202
    %v4225 = vadd.f32 %v4038, %v4207
    %v4226 = vadd.f32 %v4039, %v4212
    %v4227 = vld [vmem:[%s1 + $0xd] sm:$0x1]
    %v4228 = vlaneseq
    %v4229 = vshrl.u32 %v4228, 7
    %v4230 = vsub.s32 0, %v4229
    %v4231 = vrot.slane %v4227, %v4230
    %v4232 = vadd.f32 %v4215, %v4231
    %v4233 = vadd.f32 %v4216, %v4231
    %v4234 = vadd.f32 %v4217, %v4231
    %v4235 = vadd.f32 %v4218, %v4231
    %v4236 = vadd.f32 %v4219, %v4231
    %v4237 = vadd.f32 %v4220, %v4231
    %v4238 = vadd.f32 %v4221, %v4231
    %v4239 = vadd.f32 %v4222, %v4231
    %v4240 = vadd.f32 %v4223, %v4231
    %v4241 = vadd.f32 %v4224, %v4231
    %v4242 = vadd.f32 %v4225, %v4231
    %v4243 = vadd.f32 %v4226, %v4231
    %vm4244 = vcmask 261120
    %4245 = vst.msk [vmem:[#allocation5] sm:$0xff] %vm4244, %v4232
    %4246 = vst.msk [vmem:[#allocation5 + $0x8] sm:$0xff] %vm4244, %v4233
    %4247 = vst.msk [vmem:[#allocation5 + $0x10] sm:$0xff] %vm4244, %v4234
    %4248 = vst.msk [vmem:[#allocation5 + $0x18] sm:$0xff] %vm4244, %v4235
    %4249 = vst.msk [vmem:[#allocation5 + $0x20] sm:$0xff] %vm4244, %v4236
    %4250 = vst.msk [vmem:[#allocation5 + $0x28] sm:$0xff] %vm4244, %v4237
    %4251 = vst.msk [vmem:[#allocation5 + $0x30] sm:$0xff] %vm4244, %v4238
    %4252 = vst.msk [vmem:[#allocation5 + $0x38] sm:$0xff] %vm4244, %v4239
    %4253 = vst.msk [vmem:[#allocation5 + $0x40] sm:$0xff] %vm4244, %v4240
    %4254 = vst.msk [vmem:[#allocation5 + $0x48] sm:$0xff] %vm4244, %v4241
    %4255 = vst.msk [vmem:[#allocation5 + $0x50] sm:$0xff] %vm4244, %v4242
    %4256 = vst.msk [vmem:[#allocation5 + $0x58] sm:$0xff] %vm4244, %v4243
    %v4257 = vld [vmem:[#allocation5] sm:$0xff]
    %v4258 = vld [vmem:[#allocation5 + $0x8] sm:$0xff]
    %v4259 = vld [vmem:[#allocation5 + $0x10] sm:$0x7]
    %v4260 = vsel %vm4244, %v4257, 0.0
    %v4261 = vsel %vm4244, %v4258, 0.0
    %v4262 = vadd.f32 %v4260, %v4261
    %vm4263 = vcmask 256000
    %v4264 = vsel %vm4263, %v4259, 0.0
    %v4265 = vadd.f32 %v4262, %v4264
    %v4266 = vrot.slane %v4265, 4
    %v4267 = vadd.f32 %v4265, %v4266
    %v4268 = vrot.slane %v4267, 2
    %v4269 = vadd.f32 %v4267, %v4268
    %v4270 = vrot.slane %v4269, 1
    %v4271 = vadd.f32 %v4269, %v4270
    %v4272 = vadd.f32 %v4271, 0.0
    %v4273 = vmul.f32 %v4257, %v4257
    %v4274 = vmul.f32 %v4258, %v4258
    %v4275 = vmul.f32 %v4259, %v4259
    %v4276 = vsel %vm4244, %v4273, 0.0
    %v4277 = vsel %vm4244, %v4274, 0.0
    %v4278 = vadd.f32 %v4276, %v4277
    %v4279 = vsel %vm4263, %v4275, 0.0
    %v4280 = vadd.f32 %v4278, %v4279
    %v4281 = vrot.slane %v4280, 4
    %v4282 = vadd.f32 %v4280, %v4281
    %v4283 = vrot.slane %v4282, 2
    %v4284 = vadd.f32 %v4282, %v4283
    %v4285 = vrot.slane %v4284, 1
    %v4286 = vadd.f32 %v4284, %v4285
    %v4287 = vadd.f32 %v4286, 0.0
    %v4288 = vld [vmem:[#allocation5 + $0x18] sm:$0xff]
    %v4289 = vld [vmem:[#allocation5 + $0x20] sm:$0xff]
    %v4290 = vld [vmem:[#allocation5 + $0x28] sm:$0x7]
    %v4291 = vsel %vm4244, %v4288, 0.0
    %v4292 = vsel %vm4244, %v4289, 0.0
    %v4293 = vadd.f32 %v4291, %v4292
    %v4294 = vsel %vm4263, %v4290, 0.0
    %v4295 = vadd.f32 %v4293, %v4294
    %v4296 = vrot.slane %v4295, 4
    %v4297 = vadd.f32 %v4295, %v4296
    %v4298 = vrot.slane %v4297, 2
    %v4299 = vadd.f32 %v4297, %v4298
    %v4300 = vrot.slane %v4299, 1
    %v4301 = vadd.f32 %v4299, %v4300
    %v4302 = vadd.f32 %v4272, %v4301
    %v4303 = vmul.f32 %v4288, %v4288
    %v4304 = vmul.f32 %v4289, %v4289
    %v4305 = vmul.f32 %v4290, %v4290
    %v4306 = vsel %vm4244, %v4303, 0.0
    %v4307 = vsel %vm4244, %v4304, 0.0
    %v4308 = vadd.f32 %v4306, %v4307
    %v4309 = vsel %vm4263, %v4305, 0.0
    %v4310 = vadd.f32 %v4308, %v4309
    %v4311 = vrot.slane %v4310, 4
    %v4312 = vadd.f32 %v4310, %v4311
    %v4313 = vrot.slane %v4312, 2
    %v4314 = vadd.f32 %v4312, %v4313
    %v4315 = vrot.slane %v4314, 1
    %v4316 = vadd.f32 %v4314, %v4315
    %v4317 = vadd.f32 %v4287, %v4316
    %v4318 = vld [vmem:[#allocation5 + $0x30] sm:$0xff]
    %v4319 = vld [vmem:[#allocation5 + $0x38] sm:$0xff]
    %v4320 = vld [vmem:[#allocation5 + $0x40] sm:$0x7]
    %v4321 = vsel %vm4244, %v4318, 0.0
    %v4322 = vsel %vm4244, %v4319, 0.0
    %v4323 = vadd.f32 %v4321, %v4322
    %v4324 = vsel %vm4263, %v4320, 0.0
    %v4325 = vadd.f32 %v4323, %v4324
    %v4326 = vrot.slane %v4325, 4
    %v4327 = vadd.f32 %v4325, %v4326
    %v4328 = vrot.slane %v4327, 2
    %v4329 = vadd.f32 %v4327, %v4328
    %v4330 = vrot.slane %v4329, 1
    %v4331 = vadd.f32 %v4329, %v4330
    %v4332 = vadd.f32 %v4302, %v4331
    %v4333 = vmul.f32 %v4318, %v4318
    %v4334 = vmul.f32 %v4319, %v4319
    %v4335 = vmul.f32 %v4320, %v4320
    %v4336 = vsel %vm4244, %v4333, 0.0
    %v4337 = vsel %vm4244, %v4334, 0.0
    %v4338 = vadd.f32 %v4336, %v4337
    %v4339 = vsel %vm4263, %v4335, 0.0
    %v4340 = vadd.f32 %v4338, %v4339
    %v4341 = vrot.slane %v4340, 4
    %v4342 = vadd.f32 %v4340, %v4341
    %v4343 = vrot.slane %v4342, 2
    %v4344 = vadd.f32 %v4342, %v4343
    %v4345 = vrot.slane %v4344, 1
    %v4346 = vadd.f32 %v4344, %v4345
    %v4347 = vadd.f32 %v4317, %v4346
    %v4348 = vld [vmem:[#allocation5 + $0x48] sm:$0xff]
    %v4349 = vld [vmem:[#allocation5 + $0x50] sm:$0xff]
    %v4350 = vld [vmem:[#allocation5 + $0x58] sm:$0x7]
    %v4351 = vsel %vm4244, %v4348, 0.0
    %v4352 = vsel %vm4244, %v4349, 0.0
    %v4353 = vadd.f32 %v4351, %v4352
    %v4354 = vsel %vm4263, %v4350, 0.0
    %v4355 = vadd.f32 %v4353, %v4354
    %v4356 = vrot.slane %v4355, 4
    %v4357 = vadd.f32 %v4355, %v4356
    %v4358 = vrot.slane %v4357, 2
    %v4359 = vadd.f32 %v4357, %v4358
    %v4360 = vrot.slane %v4359, 1
    %v4361 = vadd.f32 %v4359, %v4360
    %v4362 = vadd.f32 %v4332, %v4361
    %v4363 = vmul.f32 %v4348, %v4348
    %v4364 = vmul.f32 %v4349, %v4349
    %v4365 = vmul.f32 %v4350, %v4350
    %v4366 = vsel %vm4244, %v4363, 0.0
    %v4367 = vsel %vm4244, %v4364, 0.0
    %v4368 = vadd.f32 %v4366, %v4367
    %v4369 = vsel %vm4263, %v4365, 0.0
    %v4370 = vadd.f32 %v4368, %v4369
    %v4371 = vrot.slane %v4370, 4
    %v4372 = vadd.f32 %v4370, %v4371
    %v4373 = vrot.slane %v4372, 2
    %v4374 = vadd.f32 %v4372, %v4373
    %v4375 = vrot.slane %v4374, 1
    %v4376 = vadd.f32 %v4374, %v4375
    %v4377 = vadd.f32 %v4347, %v4376
    %v4378 = vrcp.pop 76.0
    %v4379 = vmul.f32 %v4362, %v4378
    %v4380 = vmul.f32 %v4377, %v4378
    %v4381 = vmul.f32 %v4379, %v4379
    %v4382 = vsub.f32 %v4380, %v4381
    %v4383 = vmax.f32 %v4382, 0.0
    %v4384 = vadd.f32 %v4383, 1e-05
    %v4385 = vrsqrt.pop %v4384
    %v4386 = vld [vmem:[#allocation5] ss:$3 sm:$0xff]
    %s4387 = scalar_lea.vmem [#allocation5], 24
    %v4388 = vld [vmem:[%s4387] ss:$3 sm:$0xff]
    %s4389 = scalar_lea.vmem [#allocation5], 48
    %v4390 = vld [vmem:[%s4389] ss:$3 sm:$0xff]
    %s4391 = scalar_lea.vmem [#allocation5], 72
    %v4392 = vld [vmem:[%s4391] ss:$3 sm:$0xff]
    %s4393 = scalar_lea.vmem [#allocation5], 1
    %v4394 = vld [vmem:[%s4393] ss:$3 sm:$0xff]
    %s4395 = scalar_lea.vmem [#allocation5], 25
    %v4396 = vld [vmem:[%s4395] ss:$3 sm:$0xff]
    %s4397 = scalar_lea.vmem [#allocation5], 49
    %v4398 = vld [vmem:[%s4397] ss:$3 sm:$0xff]
    %s4399 = scalar_lea.vmem [#allocation5], 73
    %v4400 = vld [vmem:[%s4399] ss:$3 sm:$0xff]
    %v4401 = vmax.f32 %v4386, %v4394
    %v4402 = vmax.f32 %v4388, %v4396
    %v4403 = vmax.f32 %v4390, %v4398
    %v4404 = vmax.f32 %v4392, %v4400
    %s4405 = scalar_lea.vmem [#allocation5], 2
    %v4406 = vld [vmem:[%s4405] ss:$3 sm:$0xff]
    %s4407 = scalar_lea.vmem [#allocation5], 26
    %v4408 = vld [vmem:[%s4407] ss:$3 sm:$0xff]
    %s4409 = scalar_lea.vmem [#allocation5], 50
    %v4410 = vld [vmem:[%s4409] ss:$3 sm:$0xff]
    %s4411 = scalar_lea.vmem [#allocation5], 74
    %v4412 = vld [vmem:[%s4411] ss:$3 sm:$0xff]
    %v4413 = vmax.f32 %v4401, %v4406
    %v4414 = vmax.f32 %v4402, %v4408
    %v4415 = vmax.f32 %v4403, %v4410
    %v4416 = vmax.f32 %v4404, %v4412
    %v4417 = vsub.f32 %v4413, %v4379
    %v4418 = vsub.f32 %v4414, %v4379
    %v4419 = vsub.f32 %v4415, %v4379
    %v4420 = vsub.f32 %v4416, %v4379
    %v4421 = vmul.f32 %v4417, %v4385
    %v4422 = vmul.f32 %v4418, %v4385
    %v4423 = vmul.f32 %v4419, %v4385
    %v4424 = vmul.f32 %v4420, %v4385
    %v4425 = vmax.f32 %v4421, 0.0
    %v4426 = vmax.f32 %v4422, 0.0
    %v4427 = vmax.f32 %v4423, 0.0
    %v4428 = vmax.f32 %v4424, 0.0
    %4429 = vst.msk [vmem:[#allocation6] sm:$0xff] %vm4244, %v4425
    %4430 = vst.msk [vmem:[#allocation6 + $0x8] sm:$0xff] %vm4244, %v4426
    %4431 = vst.msk [vmem:[#allocation6 + $0x10] sm:$0xff] %vm4244, %v4427
    %4432 = vst.msk [vmem:[#allocation6 + $0x18] sm:$0xff] %vm4244, %v4428
    %v4433 = vld [vmem:[#allocation6] ss:$8 sm:$0xf]
    %v4434 = vld [vmem:[#allocation7] sm:$0xff]
    %v4435 = vld [vmem:[#allocation7 + $0x8] sm:$0xff]
    %v4436 = vld [vmem:[#allocation7 + $0x10] sm:$0xff]
    %v4437 = vld [vmem:[#allocation7 + $0x18] sm:$0xff]
    %v4438 = vld [vmem:[#allocation7 + $0x20] sm:$0xff]
    %v4439 = vld [vmem:[#allocation7 + $0x28] sm:$0xff]
    %v4440 = vld [vmem:[#allocation7 + $0x30] sm:$0xff]
    %v4441 = vld [vmem:[#allocation7 + $0x38] sm:$0xff]
    %s4442 = scalar_lea.vmem [#allocation6], 1
    %v4443 = vld [vmem:[%s4442] ss:$8 sm:$0xf]
    %v4444 = vld [vmem:[#allocation7 + $0x40] sm:$0xff]
    %v4445 = vld [vmem:[#allocation7 + $0x48] sm:$0xff]
    %v4446 = vld [vmem:[#allocation7 + $0x50] sm:$0xff]
    %v4447 = vld [vmem:[#allocation7 + $0x58] sm:$0xff]
    %v4448 = vld [vmem:[#allocation7 + $0x60] sm:$0xff]
    %v4449 = vld [vmem:[#allocation7 + $0x68] sm:$0xff]
    %v4450 = vld [vmem:[#allocation7 + $0x70] sm:$0xff]
    %v4451 = vld [vmem:[#allocation7 + $0x78] sm:$0xff]
    %v4453 = vsel %vm4244, %v4443, 0
    %4455 = vmatprep.subr.mxu0 %v4445
    %4456 = vmatpush1.msra.mxu0 %v4444
    %4457 = vmatprep.subr.mxu0 %v4447
    %4458 = vmatpush1.msra.mxu0 %v4446
    %4459 = vmatprep.subr.mxu0 %v4449
    %4460 = vmatpush1.msra.mxu0 %v4448
    %4461 = vmatprep.subr.mxu0 %v4451
    %4462 = vmatpush1.msra.mxu0 %v4450
    %4463 = vmatprep.subr.mxu0 0.0
    %4464 = vmatpush1.msra.mxu0 0.0
    %4465 = vmatprep.subr.mxu0 0.0
    %4466 = vmatpush1.msra.mxu0 0.0
    %4467 = vmatprep.subr.mxu0 0.0
    %4468 = vmatpush1.msra.mxu0 0.0
    %4469 = vmatprep.subr.mxu0 0.0
    %4470 = vmatpush1.msra.mxu0 0.0
    %4471 = vmatprep.subr.mxu0 0.0
    %4472 = vmatpush1.msra.mxu0 0.0
    %4473 = vmatprep.subr.mxu0 0.0
    %4474 = vmatpush1.msra.mxu0 0.0
    %4475 = vmatprep.subr.mxu0 0.0
    %4476 = vmatpush1.msra.mxu0 0.0
    %4477 = vmatprep.subr.mxu0 0.0
    %4478 = vmatpush1.msra.mxu0 0.0
    %4479 = vmatprep.subr.mxu0 0.0
    %4480 = vmatpush1.msra.mxu0 0.0
    %4481 = vmatprep.subr.mxu0 0.0
    %4482 = vmatpush1.msra.mxu0 0.0
    %4483 = vmatprep.subr.mxu0 0.0
    %4484 = vmatpush1.msra.mxu0 0.0
    %4485 = vmatprep.subr.mxu0 0.0
    %4486 = vmatpush1.msra.mxu0 0.0
    %4487 = vmatprep.subr.mxu0 0.0
    %4488 = vmatpush1.msra.mxu0 0.0
    %4489 = vmatprep.subr.mxu0 0.0
    %4490 = vmatpush1.msra.mxu0 0.0
    %4491 = vmatprep.subr.mxu0 0.0
    %4492 = vmatpush1.msra.mxu0 0.0
    %4493 = vmatprep.subr.mxu0 0.0
    %4494 = vmatpush1.msra.mxu0 0.0
    %4495 = vmatprep.subr.mxu0 0.0
    %4496 = vmatpush1.msra.mxu0 0.0
    %4497 = vmatprep.subr.mxu0 0.0
    %4498 = vmatpush1.msra.mxu0 0.0
    %4499 = vmatprep.subr.mxu0 0.0
    %4500 = vmatpush1.msra.mxu0 0.0
    %4501 = vmatprep.subr.mxu0 0.0
    %4502 = vmatpush1.msra.mxu0 0.0
    %4503 = vmatprep.subr.mxu0 0.0
    %4504 = vmatpush1.msra.mxu0 0.0
    %4505 = vmatprep.subr.mxu0 0.0
    %4506 = vmatpush1.msra.mxu0 0.0
    %4507 = vmatprep.subr.mxu0 0.0
    %4508 = vmatpush1.msra.mxu0 0.0
    %4509 = vmatprep.subr.mxu0 0.0
    %4510 = vmatpush1.msra.mxu0 0.0
    %4511 = vmatprep.subr.mxu0 0.0
    %4512 = vmatpush1.msra.mxu0 0.0
    %4513 = vmatprep.subr.mxu0 0.0
    %4514 = vmatpush1.msra.mxu0 0.0
    %4515 = vmatprep.subr.mxu0 0.0
    %4516 = vmatpush1.msra.mxu0 0.0
    %4517 = vmatprep.subr.mxu0 0.0
    %4518 = vmatpush1.msra.mxu0 0.0
    %4519 = vmatprep.mubr.f32.mxu0 0.0
    %4520 = vmatmul.mubr.f32.gmra.mrb[0].mxu0 %v4453
    %v4521 = vpop.f32.mrb[0].mxu0
    %v4522 = vadd.f32 0.0, %v4521
    %v4523 = vpop.f32.mrb[0].mxu0
    %v4524 = vadd.f32 0.0, %v4523
    %4525 = vdwg.mxu0
    %v4527 = vsel %vm4244, %v4433, 0
    %4529 = vmatprep.subr.mxu0 %v4435
    %4530 = vmatpush1.msra.mxu0 %v4434
    %4531 = vmatprep.subr.mxu0 %v4437
    %4532 = vmatpush1.msra.mxu0 %v4436
    %4533 = vmatprep.subr.mxu0 %v4439
    %4534 = vmatpush1.msra.mxu0 %v4438
    %4535 = vmatprep.subr.mxu0 %v4441
    %4536 = vmatpush1.msra.mxu0 %v4440
    %4537 = vmatprep.subr.mxu0 0.0
    %4538 = vmatpush1.msra.mxu0 0.0
    %4539 = vmatprep.subr.mxu0 0.0
    %4540 = vmatpush1.msra.mxu0 0.0
    %4541 = vmatprep.subr.mxu0 0.0
    %4542 = vmatpush1.msra.mxu0 0.0
    %4543 = vmatprep.subr.mxu0 0.0
    %4544 = vmatpush1.msra.mxu0 0.0
    %4545 = vmatprep.subr.mxu0 0.0
    %4546 = vmatpush1.msra.mxu0 0.0
    %4547 = vmatprep.subr.mxu0 0.0
    %4548 = vmatpush1.msra.mxu0 0.0
    %4549 = vmatprep.subr.mxu0 0.0
    %4550 = vmatpush1.msra.mxu0 0.0
    %4551 = vmatprep.subr.mxu0 0.0
    %4552 = vmatpush1.msra.mxu0 0.0
    %4553 = vmatprep.subr.mxu0 0.0
    %4554 = vmatpush1.msra.mxu0 0.0
    %4555 = vmatprep.subr.mxu0 0.0
    %4556 = vmatpush1.msra.mxu0 0.0
    %4557 = vmatprep.subr.mxu0 0.0
    %4558 = vmatpush1.msra.mxu0 0.0
    %4559 = vmatprep.subr.mxu0 0.0
    %4560 = vmatpush1.msra.mxu0 0.0
    %4561 = vmatprep.subr.mxu0 0.0
    %4562 = vmatpush1.msra.mxu0 0.0
    %4563 = vmatprep.subr.mxu0 0.0
    %4564 = vmatpush1.msra.mxu0 0.0
    %4565 = vmatprep.subr.mxu0 0.0
    %4566 = vmatpush1.msra.mxu0 0.0
    %4567 = vmatprep.subr.mxu0 0.0
    %4568 = vmatpush1.msra.mxu0 0.0
    %4569 = vmatprep.subr.mxu0 0.0
    %4570 = vmatpush1.msra.mxu0 0.0
    %4571 = vmatprep.subr.mxu0 0.0
    %4572 = vmatpush1.msra.mxu0 0.0
    %4573 = vmatprep.subr.mxu0 0.0
    %4574 = vmatpush1.msra.mxu0 0.0
    %4575 = vmatprep.subr.mxu0 0.0
    %4576 = vmatpush1.msra.mxu0 0.0
    %4577 = vmatprep.subr.mxu0 0.0
    %4578 = vmatpush1.msra.mxu0 0.0
    %4579 = vmatprep.subr.mxu0 0.0
    %4580 = vmatpush1.msra.mxu0 0.0
    %4581 = vmatprep.subr.mxu0 0.0
    %4582 = vmatpush1.msra.mxu0 0.0
    %4583 = vmatprep.subr.mxu0 0.0
    %4584 = vmatpush1.msra.mxu0 0.0
    %4585 = vmatprep.subr.mxu0 0.0
    %4586 = vmatpush1.msra.mxu0 0.0
    %4587 = vmatprep.subr.mxu0 0.0
    %4588 = vmatpush1.msra.mxu0 0.0
    %4589 = vmatprep.subr.mxu0 0.0
    %4590 = vmatpush1.msra.mxu0 0.0
    %4591 = vmatprep.subr.mxu0 0.0
    %4592 = vmatpush1.msra.mxu0 0.0
    %4593 = vmatprep.mubr.f32.mxu0 0.0
    %4594 = vmatmul.mubr.f32.gmra.mrb[0].mxu0 %v4527
    %v4595 = vpop.f32.mrb[0].mxu0
    %v4596 = vadd.f32 %v4522, %v4595
    %v4597 = vpop.f32.mrb[0].mxu0
    %v4598 = vadd.f32 %v4524, %v4597
    %4599 = vdwg.mxu0
    %s4600 = scalar_lea.vmem [#allocation6], 2
    %v4601 = vld [vmem:[%s4600] ss:$8 sm:$0xf]
    %v4602 = vld [vmem:[#allocation7 + $0x80] sm:$0xff]
    %v4603 = vld [vmem:[#allocation7 + $0x88] sm:$0xff]
    %v4604 = vld [vmem:[#allocation7 + $0x90] sm:$0xff]
    %v4605 = vld [vmem:[#allocation7 + $0x98] sm:$0xff]
    %v4606 = vld [vmem:[#allocation7 + $0xa0] sm:$0xff]
    %v4607 = vld [vmem:[#allocation7 + $0xa8] sm:$0xff]
    %v4608 = vld [vmem:[#allocation7 + $0xb0] sm:$0xff]
    %v4609 = vld [vmem:[#allocation7 + $0xb8] sm:$0xff]
    %v4611 = vsel %vm4244, %v4601, 0
    %4613 = vmatprep.subr.mxu0 %v4603
    %4614 = vmatpush1.msra.mxu0 %v4602
    %4615 = vmatprep.subr.mxu0 %v4605
    %4616 = vmatpush1.msra.mxu0 %v4604
    %4617 = vmatprep.subr.mxu0 %v4607
    %4618 = vmatpush1.msra.mxu0 %v4606
    %4619 = vmatprep.subr.mxu0 %v4609
    %4620 = vmatpush1.msra.mxu0 %v4608
    %4621 = vmatprep.subr.mxu0 0.0
    %4622 = vmatpush1.msra.mxu0 0.0
    %4623 = vmatprep.subr.mxu0 0.0
    %4624 = vmatpush1.msra.mxu0 0.0
    %4625 = vmatprep.subr.mxu0 0.0
    %4626 = vmatpush1.msra.mxu0 0.0
    %4627 = vmatprep.subr.mxu0 0.0
    %4628 = vmatpush1.msra.mxu0 0.0
    %4629 = vmatprep.subr.mxu0 0.0
    %4630 = vmatpush1.msra.mxu0 0.0
    %4631 = vmatprep.subr.mxu0 0.0
    %4632 = vmatpush1.msra.mxu0 0.0
    %4633 = vmatprep.subr.mxu0 0.0
    %4634 = vmatpush1.msra.mxu0 0.0
    %4635 = vmatprep.subr.mxu0 0.0
    %4636 = vmatpush1.msra.mxu0 0.0
    %4637 = vmatprep.subr.mxu0 0.0
    %4638 = vmatpush1.msra.mxu0 0.0
    %4639 = vmatprep.subr.mxu0 0.0
    %4640 = vmatpush1.msra.mxu0 0.0
    %4641 = vmatprep.subr.mxu0 0.0
    %4642 = vmatpush1.msra.mxu0 0.0
    %4643 = vmatprep.subr.mxu0 0.0
    %4644 = vmatpush1.msra.mxu0 0.0
    %4645 = vmatprep.subr.mxu0 0.0
    %4646 = vmatpush1.msra.mxu0 0.0
    %4647 = vmatprep.subr.mxu0 0.0
    %4648 = vmatpush1.msra.mxu0 0.0
    %4649 = vmatprep.subr.mxu0 0.0
    %4650 = vmatpush1.msra.mxu0 0.0
    %4651 = vmatprep.subr.mxu0 0.0
    %4652 = vmatpush1.msra.mxu0 0.0
    %4653 = vmatprep.subr.mxu0 0.0
    %4654 = vmatpush1.msra.mxu0 0.0
    %4655 = vmatprep.subr.mxu0 0.0
    %4656 = vmatpush1.msra.mxu0 0.0
    %4657 = vmatprep.subr.mxu0 0.0
    %4658 = vmatpush1.msra.mxu0 0.0
    %4659 = vmatprep.subr.mxu0 0.0
    %4660 = vmatpush1.msra.mxu0 0.0
    %4661 = vmatprep.subr.mxu0 0.0
    %4662 = vmatpush1.msra.mxu0 0.0
    %4663 = vmatprep.subr.mxu0 0.0
    %4664 = vmatpush1.msra.mxu0 0.0
    %4665 = vmatprep.subr.mxu0 0.0
    %4666 = vmatpush1.msra.mxu0 0.0
    %4667 = vmatprep.subr.mxu0 0.0
    %4668 = vmatpush1.msra.mxu0 0.0
    %4669 = vmatprep.subr.mxu0 0.0
    %4670 = vmatpush1.msra.mxu0 0.0
    %4671 = vmatprep.subr.mxu0 0.0
    %4672 = vmatpush1.msra.mxu0 0.0
    %4673 = vmatprep.subr.mxu0 0.0
    %4674 = vmatpush1.msra.mxu0 0.0
    %4675 = vmatprep.subr.mxu0 0.0
    %4676 = vmatpush1.msra.mxu0 0.0
    %4677 = vmatprep.mubr.f32.mxu0 0.0
    %4678 = vmatmul.mubr.f32.gmra.mrb[0].mxu0 %v4611
    %v4679 = vpop.f32.mrb[0].mxu0
    %v4680 = vadd.f32 0.0, %v4679
    %v4681 = vpop.f32.mrb[0].mxu0
    %v4682 = vadd.f32 0.0, %v4681
    %4683 = vdwg.mxu0
    %v4684 = vadd.f32 %v4596, %v4680
    %v4685 = vadd.f32 %v4598, %v4682
    %s4686 = scalar_lea.vmem [#allocation6], 3
    %v4687 = vld [vmem:[%s4686] ss:$8 sm:$0xf]
    %v4688 = vld [vmem:[#allocation7 + $0xc0] sm:$0xff]
    %v4689 = vld [vmem:[#allocation7 + $0xc8] sm:$0xff]
    %v4690 = vld [vmem:[#allocation7 + $0xd0] sm:$0xff]
    %v4691 = vld [vmem:[#allocation7 + $0xd8] sm:$0xff]
    %v4692 = vld [vmem:[#allocation7 + $0xe0] sm:$0xff]
    %v4693 = vld [vmem:[#allocation7 + $0xe8] sm:$0xff]
    %v4694 = vld [vmem:[#allocation7 + $0xf0] sm:$0xff]
    %v4695 = vld [vmem:[#allocation7 + $0xf8] sm:$0xff]
    %v4697 = vsel %vm4244, %v4687, 0
    %4699 = vmatprep.subr.mxu0 %v4689
    %4700 = vmatpush1.msra.mxu0 %v4688
    %4701 = vmatprep.subr.mxu0 %v4691
    %4702 = vmatpush1.msra.mxu0 %v4690
    %4703 = vmatprep.subr.mxu0 %v4693
    %4704 = vmatpush1.msra.mxu0 %v4692
    %4705 = vmatprep.subr.mxu0 %v4695
    %4706 = vmatpush1.msra.mxu0 %v4694
    %4707 = vmatprep.subr.mxu0 0.0
    %4708 = vmatpush1.msra.mxu0 0.0
    %4709 = vmatprep.subr.mxu0 0.0
    %4710 = vmatpush1.msra.mxu0 0.0
    %4711 = vmatprep.subr.mxu0 0.0
    %4712 = vmatpush1.msra.mxu0 0.0
    %4713 = vmatprep.subr.mxu0 0.0
    %4714 = vmatpush1.msra.mxu0 0.0
    %4715 = vmatprep.subr.mxu0 0.0
    %4716 = vmatpush1.msra.mxu0 0.0
    %4717 = vmatprep.subr.mxu0 0.0
    %4718 = vmatpush1.msra.mxu0 0.0
    %4719 = vmatprep.subr.mxu0 0.0
    %4720 = vmatpush1.msra.mxu0 0.0
    %4721 = vmatprep.subr.mxu0 0.0
    %4722 = vmatpush1.msra.mxu0 0.0
    %4723 = vmatprep.subr.mxu0 0.0
    %4724 = vmatpush1.msra.mxu0 0.0
    %4725 = vmatprep.subr.mxu0 0.0
    %4726 = vmatpush1.msra.mxu0 0.0
    %4727 = vmatprep.subr.mxu0 0.0
    %4728 = vmatpush1.msra.mxu0 0.0
    %4729 = vmatprep.subr.mxu0 0.0
    %4730 = vmatpush1.msra.mxu0 0.0
    %4731 = vmatprep.subr.mxu0 0.0
    %4732 = vmatpush1.msra.mxu0 0.0
    %4733 = vmatprep.subr.mxu0 0.0
    %4734 = vmatpush1.msra.mxu0 0.0
    %4735 = vmatprep.subr.mxu0 0.0
    %4736 = vmatpush1.msra.mxu0 0.0
    %4737 = vmatprep.subr.mxu0 0.0
    %4738 = vmatpush1.msra.mxu0 0.0
    %4739 = vmatprep.subr.mxu0 0.0
    %4740 = vmatpush1.msra.mxu0 0.0
    %4741 = vmatprep.subr.mxu0 0.0
    %4742 = vmatpush1.msra.mxu0 0.0
    %4743 = vmatprep.subr.mxu0 0.0
    %4744 = vmatpush1.msra.mxu0 0.0
    %4745 = vmatprep.subr.mxu0 0.0
    %4746 = vmatpush1.msra.mxu0 0.0
    %4747 = vmatprep.subr.mxu0 0.0
    %4748 = vmatpush1.msra.mxu0 0.0
    %4749 = vmatprep.subr.mxu0 0.0
    %4750 = vmatpush1.msra.mxu0 0.0
    %4751 = vmatprep.subr.mxu0 0.0
    %4752 = vmatpush1.msra.mxu0 0.0
    %4753 = vmatprep.subr.mxu0 0.0
    %4754 = vmatpush1.msra.mxu0 0.0
    %4755 = vmatprep.subr.mxu0 0.0
    %4756 = vmatpush1.msra.mxu0 0.0
    %4757 = vmatprep.subr.mxu0 0.0
    %4758 = vmatpush1.msra.mxu0 0.0
    %4759 = vmatprep.subr.mxu0 0.0
    %4760 = vmatpush1.msra.mxu0 0.0
    %4761 = vmatprep.subr.mxu0 0.0
    %4762 = vmatpush1.msra.mxu0 0.0
    %4763 = vmatprep.mubr.f32.mxu0 0.0
    %4764 = vmatmul.mubr.f32.gmra.mrb[0].mxu0 %v4697
    %v4765 = vpop.f32.mrb[0].mxu0
    %v4766 = vadd.f32 0.0, %v4765
    %v4767 = vpop.f32.mrb[0].mxu0
    %v4768 = vadd.f32 0.0, %v4767
    %4769 = vdwg.mxu0
    %v4770 = vadd.f32 %v4684, %v4766
    %v4771 = vadd.f32 %v4685, %v4768
    %s4772 = scalar_lea.vmem [#allocation6], 4
    %v4773 = vld [vmem:[%s4772] ss:$8 sm:$0xf]
    %v4774 = vld [vmem:[#allocation7 + $0x100] sm:$0xff]
    %v4775 = vld [vmem:[#allocation7 + $0x108] sm:$0xff]
    %v4776 = vld [vmem:[#allocation7 + $0x110] sm:$0xff]
    %v4777 = vld [vmem:[#allocation7 + $0x118] sm:$0xff]
    %v4778 = vld [vmem:[#allocation7 + $0x120] sm:$0xff]
    %v4779 = vld [vmem:[#allocation7 + $0x128] sm:$0xff]
    %v4780 = vld [vmem:[#allocation7 + $0x130] sm:$0xff]
    %v4781 = vld [vmem:[#allocation7 + $0x138] sm:$0xff]
    %v4783 = vsel %vm4244, %v4773, 0
    %4785 = vmatprep.subr.mxu0 %v4775
    %4786 = vmatpush1.msra.mxu0 %v4774
    %4787 = vmatprep.subr.mxu0 %v4777
    %4788 = vmatpush1.msra.mxu0 %v4776
    %4789 = vmatprep.subr.mxu0 %v4779
    %4790 = vmatpush1.msra.mxu0 %v4778
    %4791 = vmatprep.subr.mxu0 %v4781
    %4792 = vmatpush1.msra.mxu0 %v4780
    %4793 = vmatprep.subr.mxu0 0.0
    %4794 = vmatpush1.msra.mxu0 0.0
    %4795 = vmatprep.subr.mxu0 0.0
    %4796 = vmatpush1.msra.mxu0 0.0
    %4797 = vmatprep.subr.mxu0 0.0
    %4798 = vmatpush1.msra.mxu0 0.0
    %4799 = vmatprep.subr.mxu0 0.0
    %4800 = vmatpush1.msra.mxu0 0.0
    %4801 = vmatprep.subr.mxu0 0.0
    %4802 = vmatpush1.msra.mxu0 0.0
    %4803 = vmatprep.subr.mxu0 0.0
    %4804 = vmatpush1.msra.mxu0 0.0
    %4805 = vmatprep.subr.mxu0 0.0
    %4806 = vmatpush1.msra.mxu0 0.0
    %4807 = vmatprep.subr.mxu0 0.0
    %4808 = vmatpush1.msra.mxu0 0.0
    %4809 = vmatprep.subr.mxu0 0.0
    %4810 = vmatpush1.msra.mxu0 0.0
    %4811 = vmatprep.subr.mxu0 0.0
    %4812 = vmatpush1.msra.mxu0 0.0
    %4813 = vmatprep.subr.mxu0 0.0
    %4814 = vmatpush1.msra.mxu0 0.0
    %4815 = vmatprep.subr.mxu0 0.0
    %4816 = vmatpush1.msra.mxu0 0.0
    %4817 = vmatprep.subr.mxu0 0.0
    %4818 = vmatpush1.msra.mxu0 0.0
    %4819 = vmatprep.subr.mxu0 0.0
    %4820 = vmatpush1.msra.mxu0 0.0
    %4821 = vmatprep.subr.mxu0 0.0
    %4822 = vmatpush1.msra.mxu0 0.0
    %4823 = vmatprep.subr.mxu0 0.0
    %4824 = vmatpush1.msra.mxu0 0.0
    %4825 = vmatprep.subr.mxu0 0.0
    %4826 = vmatpush1.msra.mxu0 0.0
    %4827 = vmatprep.subr.mxu0 0.0
    %4828 = vmatpush1.msra.mxu0 0.0
    %4829 = vmatprep.subr.mxu0 0.0
    %4830 = vmatpush1.msra.mxu0 0.0
    %4831 = vmatprep.subr.mxu0 0.0
    %4832 = vmatpush1.msra.mxu0 0.0
    %4833 = vmatprep.subr.mxu0 0.0
    %4834 = vmatpush1.msra.mxu0 0.0
    %4835 = vmatprep.subr.mxu0 0.0
    %4836 = vmatpush1.msra.mxu0 0.0
    %4837 = vmatprep.subr.mxu0 0.0
    %4838 = vmatpush1.msra.mxu0 0.0
    %4839 = vmatprep.subr.mxu0 0.0
    %4840 = vmatpush1.msra.mxu0 0.0
    %4841 = vmatprep.subr.mxu0 0.0
    %4842 = vmatpush1.msra.mxu0 0.0
    %4843 = vmatprep.subr.mxu0 0.0
    %4844 = vmatpush1.msra.mxu0 0.0
    %4845 = vmatprep.subr.mxu0 0.0
    %4846 = vmatpush1.msra.mxu0 0.0
    %4847 = vmatprep.subr.mxu0 0.0
    %4848 = vmatpush1.msra.mxu0 0.0
    %4849 = vmatprep.mubr.f32.mxu0 0.0
    %4850 = vmatmul.mubr.f32.gmra.mrb[0].mxu0 %v4783
    %v4851 = vpop.f32.mrb[0].mxu0
    %v4852 = vadd.f32 0.0, %v4851
    %v4853 = vpop.f32.mrb[0].mxu0
    %v4854 = vadd.f32 0.0, %v4853
    %4855 = vdwg.mxu0
    %v4856 = vadd.f32 %v4770, %v4852
    %v4857 = vadd.f32 %v4771, %v4854
    %s4858 = scalar_lea.vmem [#allocation6], 5
    %v4859 = vld [vmem:[%s4858] ss:$8 sm:$0xf]
    %v4860 = vld [vmem:[#allocation7 + $0x140] sm:$0xff]
    %v4861 = vld [vmem:[#allocation7 + $0x148] sm:$0xff]
    %v4862 = vld [vmem:[#allocation7 + $0x150] sm:$0xff]
    %v4863 = vld [vmem:[#allocation7 + $0x158] sm:$0xff]
    %v4864 = vld [vmem:[#allocation7 + $0x160] sm:$0xff]
    %v4865 = vld [vmem:[#allocation7 + $0x168] sm:$0xff]
    %v4866 = vld [vmem:[#allocation7 + $0x170] sm:$0xff]
    %v4867 = vld [vmem:[#allocation7 + $0x178] sm:$0xff]
    %v4869 = vsel %vm4244, %v4859, 0
    %4871 = vmatprep.subr.mxu0 %v4861
    %4872 = vmatpush1.msra.mxu0 %v4860
    %4873 = vmatprep.subr.mxu0 %v4863
    %4874 = vmatpush1.msra.mxu0 %v4862
    %4875 = vmatprep.subr.mxu0 %v4865
    %4876 = vmatpush1.msra.mxu0 %v4864
    %4877 = vmatprep.subr.mxu0 %v4867
    %4878 = vmatpush1.msra.mxu0 %v4866
    %4879 = vmatprep.subr.mxu0 0.0
    %4880 = vmatpush1.msra.mxu0 0.0
    %4881 = vmatprep.subr.mxu0 0.0
    %4882 = vmatpush1.msra.mxu0 0.0
    %4883 = vmatprep.subr.mxu0 0.0
    %4884 = vmatpush1.msra.mxu0 0.0
    %4885 = vmatprep.subr.mxu0 0.0
    %4886 = vmatpush1.msra.mxu0 0.0
    %4887 = vmatprep.subr.mxu0 0.0
    %4888 = vmatpush1.msra.mxu0 0.0
    %4889 = vmatprep.subr.mxu0 0.0
    %4890 = vmatpush1.msra.mxu0 0.0
    %4891 = vmatprep.subr.mxu0 0.0
    %4892 = vmatpush1.msra.mxu0 0.0
    %4893 = vmatprep.subr.mxu0 0.0
    %4894 = vmatpush1.msra.mxu0 0.0
    %4895 = vmatprep.subr.mxu0 0.0
    %4896 = vmatpush1.msra.mxu0 0.0
    %4897 = vmatprep.subr.mxu0 0.0
    %4898 = vmatpush1.msra.mxu0 0.0
    %4899 = vmatprep.subr.mxu0 0.0
    %4900 = vmatpush1.msra.mxu0 0.0
    %4901 = vmatprep.subr.mxu0 0.0
    %4902 = vmatpush1.msra.mxu0 0.0
    %4903 = vmatprep.subr.mxu0 0.0
    %4904 = vmatpush1.msra.mxu0 0.0
    %4905 = vmatprep.subr.mxu0 0.0
    %4906 = vmatpush1.msra.mxu0 0.0
    %4907 = vmatprep.subr.mxu0 0.0
    %4908 = vmatpush1.msra.mxu0 0.0
    %4909 = vmatprep.subr.mxu0 0.0
    %4910 = vmatpush1.msra.mxu0 0.0
    %4911 = vmatprep.subr.mxu0 0.0
    %4912 = vmatpush1.msra.mxu0 0.0
    %4913 = vmatprep.subr.mxu0 0.0
    %4914 = vmatpush1.msra.mxu0 0.0
    %4915 = vmatprep.subr.mxu0 0.0
    %4916 = vmatpush1.msra.mxu0 0.0
    %4917 = vmatprep.subr.mxu0 0.0
    %4918 = vmatpush1.msra.mxu0 0.0
    %4919 = vmatprep.subr.mxu0 0.0
    %4920 = vmatpush1.msra.mxu0 0.0
    %4921 = vmatprep.subr.mxu0 0.0
    %4922 = vmatpush1.msra.mxu0 0.0
    %4923 = vmatprep.subr.mxu0 0.0
    %4924 = vmatpush1.msra.mxu0 0.0
    %4925 = vmatprep.subr.mxu0 0.0
    %4926 = vmatpush1.msra.mxu0 0.0
    %4927 = vmatprep.subr.mxu0 0.0
    %4928 = vmatpush1.msra.mxu0 0.0
    %4929 = vmatprep.subr.mxu0 0.0
    %4930 = vmatpush1.msra.mxu0 0.0
    %4931 = vmatprep.subr.mxu0 0.0
    %4932 = vmatpush1.msra.mxu0 0.0
    %4933 = vmatprep.subr.mxu0 0.0
    %4934 = vmatpush1.msra.mxu0 0.0
    %4935 = vmatprep.mubr.f32.mxu0 0.0
    %4936 = vmatmul.mubr.f32.gmra.mrb[0].mxu0 %v4869
    %v4937 = vpop.f32.mrb[0].mxu0
    %v4938 = vadd.f32 0.0, %v4937
    %v4939 = vpop.f32.mrb[0].mxu0
    %v4940 = vadd.f32 0.0, %v4939
    %4941 = vdwg.mxu0
    %v4942 = vadd.f32 %v4856, %v4938
    %v4943 = vadd.f32 %v4857, %v4940
    %s4944 = scalar_lea.vmem [#allocation7], 384
    %v4945 = vld [vmem:[%s4944] ss:$8 sm:$0x3]
    %v4947 = vlaneseq
    %v4948 = vshrl.u32 %v4947, 7
    %v4949 = vsub.s32 0, %v4948
    %v4950 = vrot.slane %v4945, %v4949
    %v4951 = vlaneseq
    %v4952 = vshrl.u32 %v4951, 7
    %v4953 = vsub.s32 1, %v4952
    %v4954 = vrot.slane %v4945, %v4953
    %v4957 = vadd.f32 %v4942, %v4950
    %v4958 = vadd.f32 %v4943, %v4954
    %v4959 = vmax.f32 %v4957, 0.0
    %v4960 = vmax.f32 %v4958, 0.0
    %v4961 = vld [vmem:[#allocation7 + $0x190] sm:$0xff]
    %v4962 = vld [vmem:[#allocation7 + $0x1a0] sm:$0xff]
    %v4963 = vld [vmem:[#allocation7 + $0x1b0] sm:$0xff]
    %v4964 = vld [vmem:[#allocation7 + $0x1c0] sm:$0xff]
    %v4965 = vld [vmem:[#allocation7 + $0x1d0] sm:$0xff]
    %v4966 = vld [vmem:[#allocation7 + $0x1e0] sm:$0xff]
    %v4967 = vld [vmem:[#allocation7 + $0x1f0] sm:$0xff]
    %v4968 = vld [vmem:[#allocation7 + $0x200] sm:$0xff]
    %v4969 = vld [vmem:[#allocation7 + $0x210] sm:$0xff]
    %v4970 = vld [vmem:[#allocation7 + $0x220] sm:$0xff]
    %v4971 = vld [vmem:[#allocation7 + $0x230] sm:$0xff]
    %v4972 = vld [vmem:[#allocation7 + $0x240] sm:$0xff]
    %v4973 = vld [vmem:[#allocation7 + $0x250] sm:$0xff]
    %v4974 = vld [vmem:[#allocation7 + $0x260] sm:$0xff]
    %v4975 = vld [vmem:[#allocation7 + $0x270] sm:$0xff]
    %v4976 = vld [vmem:[#allocation7 + $0x280] sm:$0xff]
    %v4977 = vld [vmem:[#allocation7 + $0x290] sm:$0xff]
    %v4978 = vld [vmem:[#allocation7 + $0x2a0] sm:$0xff]
    %v4979 = vld [vmem:[#allocation7 + $0x2b0] sm:$0xff]
    %v4980 = vld [vmem:[#allocation7 + $0x2c0] sm:$0xff]
    %v4981 = vld [vmem:[#allocation7 + $0x2d0] sm:$0xff]
    %v4982 = vld [vmem:[#allocation7 + $0x2e0] sm:$0xff]
    %v4983 = vld [vmem:[#allocation7 + $0x2f0] sm:$0xff]
    %v4984 = vld [vmem:[#allocation7 + $0x300] sm:$0xff]
    %v4985 = vld [vmem:[#allocation7 + $0x310] sm:$0xff]
    %v4986 = vld [vmem:[#allocation7 + $0x181] ss:$0 sm:$0xff]
    %vm4987 = vcmask 588800
    %v4989 = vsel %vm4987, %v4960, 0
    %4991 = vmatprep.subr.mxu0 0.0
    %4992 = vmatpush1.msra.mxu0 %v4961
    %4993 = vmatprep.subr.mxu0 0.0
    %4994 = vmatpush1.msra.mxu0 %v4962
    %4995 = vmatprep.subr.mxu0 0.0
    %4996 = vmatpush1.msra.mxu0 %v4963
    %4997 = vmatprep.subr.mxu0 0.0
    %4998 = vmatpush1.msra.mxu0 %v4964
    %4999 = vmatprep.subr.mxu0 0.0
    %5000 = vmatpush1.msra.mxu0 %v4965
    %5001 = vmatprep.subr.mxu0 0.0
    %5002 = vmatpush1.msra.mxu0 %v4966
    %5003 = vmatprep.subr.mxu0 0.0
    %5004 = vmatpush1.msra.mxu0 %v4967
    %5005 = vmatprep.subr.mxu0 0.0
    %5006 = vmatpush1.msra.mxu0 %v4968
    %5007 = vmatprep.subr.mxu0 0.0
    %5008 = vmatpush1.msra.mxu0 %v4969
    %5009 = vmatprep.subr.mxu0 0.0
    %5010 = vmatpush1.msra.mxu0 %v4970
    %5011 = vmatprep.subr.mxu0 0.0
    %5012 = vmatpush1.msra.mxu0 %v4971
    %5013 = vmatprep.subr.mxu0 0.0
    %5014 = vmatpush1.msra.mxu0 %v4972
    %5015 = vmatprep.subr.mxu0 0.0
    %5016 = vmatpush1.msra.mxu0 %v4973
    %5017 = vmatprep.subr.mxu0 0.0
    %5018 = vmatpush1.msra.mxu0 %v4974
    %5019 = vmatprep.subr.mxu0 0.0
    %5020 = vmatpush1.msra.mxu0 %v4975
    %5021 = vmatprep.subr.mxu0 0.0
    %5022 = vmatpush1.msra.mxu0 %v4976
    %5023 = vmatprep.subr.mxu0 0.0
    %5024 = vmatpush1.msra.mxu0 %v4977
    %5025 = vmatprep.subr.mxu0 0.0
    %5026 = vmatpush1.msra.mxu0 %v4978
    %5027 = vmatprep.subr.mxu0 0.0
    %5028 = vmatpush1.msra.mxu0 %v4979
    %5029 = vmatprep.subr.mxu0 0.0
    %5030 = vmatpush1.msra.mxu0 %v4980
    %5031 = vmatprep.subr.mxu0 0.0
    %5032 = vmatpush1.msra.mxu0 %v4981
    %5033 = vmatprep.subr.mxu0 0.0
    %5034 = vmatpush1.msra.mxu0 %v4982
    %5035 = vmatprep.subr.mxu0 0.0
    %5036 = vmatpush1.msra.mxu0 %v4983
    %5037 = vmatprep.subr.mxu0 0.0
    %5038 = vmatpush1.msra.mxu0 %v4984
    %5039 = vmatprep.subr.mxu0 0.0
    %5040 = vmatpush1.msra.mxu0 %v4985
    %5041 = vmatprep.subr.mxu0 0.0
    %5042 = vmatpush1.msra.mxu0 0.0
    %5043 = vmatprep.subr.mxu0 0.0
    %5044 = vmatpush1.msra.mxu0 0.0
    %5045 = vmatprep.subr.mxu0 0.0
    %5046 = vmatpush1.msra.mxu0 0.0
    %5047 = vmatprep.subr.mxu0 0.0
    %5048 = vmatpush1.msra.mxu0 0.0
    %5049 = vmatprep.subr.mxu0 0.0
    %5050 = vmatpush1.msra.mxu0 0.0
    %5051 = vmatprep.subr.mxu0 0.0
    %5052 = vmatpush1.msra.mxu0 0.0
    %5053 = vmatprep.subr.mxu0 0.0
    %5054 = vmatpush1.msra.mxu0 0.0
    %5055 = vmatprep.mubr.f32.mxu0 %v4989
    %5056 = vmatmul.mubr.f32.gmra.mrb[0].mxu0 %v4959
    %v5057 = vpop.f32.mrb[0].mxu0
    %v5058 = vadd.f32 %v4986, %v5057
    %v5059 = vpop.f32.mrb[0].mxu0
    %5060 = vdwg.mxu0
    %vm5061 = vcmask 1043456
    %v5062 = vsel %vm5061, %v5058, -inf
    %5063 = vmax.xlane.f32.xlu0 %v5062
    %v5064 = vpop.xlane.xlu0 %5063
    %v5065 = vsub.f32 %v5058, %v5064
    %v5066 = vmul.f32 %v5065, 1.442695
    %v5067 = vpow.pop %v5066
    %v5068 = vsel %vm5061, %v5067, 0.0
    %5069 = vadd.xlane.f32.xlu0 %v5068
    %v5070 = vpop.xlane.xlu0 %5069
    %v5071 = vlog2.pop %v5070
    %v5072 = vmul.f32 %v5071, 0.6931472
    %v5073 = vadd.f32 %v5064, %v5072
    %v5074 = vsub.f32 %v5058, %v5073
    %5075 = vst [vmem:[%s3] sm:$0xf] %v5074
    // Predicated region
    $region18: #{cnn_forward.1} parent=1 // pred_check
      _
    $region19: #{cnn_forward.1} parent=1 // pred_check_branch
      %5077 = sbr.rel (0) target = $region21
    $region20: #{cnn_forward.1} parent=1 // pred_region
      _
    $region21: #{cnn_forward.1} parent=1 // pred_fallthru
      _
    // Predicated region
    $region22: #{cnn_forward.1} parent=1 // pred_check
      _
    $region23: #{cnn_forward.1} parent=1 // pred_check_branch
      %5079 = sbr.rel (0) target = $region25
    $region24: #{cnn_forward.1} parent=1 // pred_region
      _
    $region25: #{cnn_forward.1} parent=1 // pred_fallthru
      _
    %5080 = vsyncpa [#allocation8], 1

</llo_original>
